<compile_context>
chip_gen: v6e
topology: v6e:2x2x1
jax: 0.10.0
libtpu: 0.0.40
codegen_flags: <defaults>
</compile_context>

<pallas_src>
import functools

import jax
import jax.numpy as jnp
from jax import lax
from jax.experimental import pallas as pl
from jax.experimental.pallas import tpu as pltpu


def _round_up(x, m):
    return (x + m - 1) // m * m


def _lstm_chunk_kernel(len_ref, x_ref, w_ref, b_ref, wd_ref, bd_ref, out_ref,
                       xh_scr, c_scr, hcap_scr, *, hidden, embed, tc):
    """One grid step == `tc` LSTM timesteps for one batch block.

    len_ref  : (BB, 1)       int32  sequence lengths (resident)
    x_ref    : (tc, BB, Ep)  bf16   embedding chunk for this (batch block, time chunk)
    w_ref    : (Ep+Hp, 4Hp)  bf16   fused [W_ih^T; W_hh^T]  (PyTorch gate order i,f,g,o)
    b_ref    : (1, 4Hp)      f32    b_ih + b_hh
    wd_ref   : (Hp, 1)       f32    dense weight (transposed)
    bd_ref   : (1, 1)        f32    dense bias
    out_ref  : (BB, 1)       f32    sigmoid(dense(h_{len-1}))
    xh_scr   : (BB, Ep+Hp)   bf16   fused matmul operand [x_t | h_{t-1}]  (persists)
    c_scr    : (BB, Hp)      f32    cell state
    hcap_scr : (BB, Hp)      f32    hidden state captured at t == len-1
    """
    H = hidden
    E = embed
    t_chunk = pl.program_id(1)
    n_chunks = pl.num_programs(1)

    @pl.when(t_chunk == 0)
    def _():
        xh_scr[...] = jnp.zeros_like(xh_scr)
        c_scr[...] = jnp.zeros_like(c_scr)
        hcap_scr[...] = jnp.zeros_like(hcap_scr)

    lens_minus_1 = len_ref[...] - 1          # (BB, 1) int32, hoisted out of the loop
    bias = b_ref[...]                        # (1, 4H) f32, hoisted out of the loop

    def step(s, carry):
        t_global = t_chunk * tc + s

        # Stage x_t next to h_{t-1}: one fused MXU matmul with K = E + H.
        xh_scr[:, 0:E] = x_ref[s]
        gates = jnp.dot(xh_scr[...], w_ref[...],
                        preferred_element_type=jnp.float32) + bias      # (BB, 4H) f32

        i_g = jax.nn.sigmoid(gates[:, 0 * H:1 * H])
        f_g = jax.nn.sigmoid(gates[:, 1 * H:2 * H])
        g_g = jnp.tanh(gates[:, 2 * H:3 * H])
        o_g = jax.nn.sigmoid(gates[:, 3 * H:4 * H])

        c_t = f_g * c_scr[...] + i_g * g_g
        h_t = o_g * jnp.tanh(c_t)
        c_scr[...] = c_t
        xh_scr[:, E:E + H] = h_t.astype(xh_scr.dtype)

        # Capture h at t == length-1 (lane-dense VPU select; dense head deferred).
        sel = lens_minus_1 == t_global       # (BB, 1) bool
        hcap_scr[...] = jnp.where(sel, h_t, hcap_scr[...])
        return carry

    unroll = tc if tc <= 16 else 8
    lax.fori_loop(0, tc, step, 0, unroll=unroll)

    # Dense head + sigmoid once, at the very end of the time sweep for this batch block.
    @pl.when(t_chunk == n_chunks - 1)
    def _():
        d = jnp.dot(hcap_scr[...], wd_ref[...],
                    preferred_element_type=jnp.float32) + bd_ref[...]   # (BB, 1)
        out_ref[...] = jax.nn.sigmoid(d)


def lstm_classifier_forward(x, params, *, time_chunk=None):
    """Replicates LSTMClassifier.forward.

    x : (batch, 1 + seq_len) int32; after x.t(): row 0 = lengths, rows 1: = token ids.
    """
    emb = params["embedding"]          # (V, E)
    w_ih = params["w_ih"]              # (4H, E)
    w_hh = params["w_hh"]              # (4H, H)
    b_ih = params["b_ih"]              # (4H,)
    b_hh = params["b_hh"]              # (4H,)
    w_dense = params["w_dense"]        # (1, H)
    b_dense = params["b_dense"]        # (1,)

    H = w_hh.shape[1]
    E = w_ih.shape[1]

    xt = x.T                                   # (1 + T, B)
    lengths = xt[0, :].astype(jnp.int32)       # (B,)
    reviews = xt[1:, :].astype(jnp.int32)      # (T, B)
    T, B = reviews.shape

    # --- hardware-friendly padded sizes -------------------------------------------------
    Hp = _round_up(H, 128)                     # lane-aligned gate slices
    Ep = _round_up(E, 128)
    if B <= 128:
        Bp = _round_up(B, 8)
        BB = Bp                                # single batch block
    else:
        Bp = _round_up(B, 128)
        BB = 128                               # batch blocks -> "parallel" grid axis
    nb = Bp // BB

    # time chunk: ~2 MiB bf16 per pipelined embedding buffer
    if time_chunk is None:
        tc = max(1, (2 << 20) // (BB * Ep * 2))
    else:
        tc = int(time_chunk)
    tc = max(1, min(tc, T))
    Tp = _round_up(T, tc)
    nt = Tp // tc

    # --- pad & pack inputs ---------------------------------------------------------------
    # token 0 == padding_idx (zero embedding row), so zero-padded steps are inert.
    reviews_p = jnp.zeros((Tp, Bp), jnp.int32).at[:T, :B].set(reviews)
    len_p = jnp.ones((Bp,), jnp.int32).at[:B].set(lengths)

    emb_p = jnp.zeros((emb.shape[0], Ep), jnp.float32).at[:, :E].set(emb)
    embeds = jnp.take(emb_p, reviews_p, axis=0).astype(jnp.bfloat16)   # (Tp, Bp, Ep)

    # --- pad & fuse weights (gate-blocked so zero-padded H units stay exactly zero) ------
    def pad_gate_weight(w, in_dim, in_pad):
        w4 = w.reshape(4, H, in_dim)
        wp = jnp.zeros((4, Hp, in_pad), jnp.float32).at[:, :H, :in_dim].set(w4)
        return wp.reshape(4 * Hp, in_pad).T          # (in_pad, 4Hp)

    wih_p = pad_gate_weight(w_ih, E, Ep)             # (Ep, 4Hp)
    whh_p = pad_gate_weight(w_hh, H, Hp)             # (Hp, 4Hp)
    w_stack = jnp.concatenate([wih_p, whh_p], axis=0).astype(jnp.bfloat16)  # (Ep+Hp, 4Hp)

    b4 = (b_ih + b_hh).reshape(4, H)
    b_p = jnp.zeros((4, Hp), jnp.float32).at[:, :H].set(b4).reshape(1, 4 * Hp)

    wd_p = jnp.zeros((Hp, 1), jnp.float32).at[:H, 0].set(w_dense.reshape(H))
    bd = b_dense.reshape(1, 1).astype(jnp.float32)
    len2d = len_p.reshape(Bp, 1)

    # --- VMEM budget (v7x has 64 MiB physical; keep the scoped limit well below) ---------
    bytes_x = 2 * tc * BB * Ep * 2                                   # double-buffered x chunk
    bytes_w = 2 * ((Ep + Hp) * 4 * Hp * 2 + 4 * Hp * 4 + Hp * 4 + 4)  # weights (2-deep)
    bytes_scr = BB * (Ep + Hp) * 2 + 2 * BB * Hp * 4 + BB * 4 * Hp * 4
    vmem_limit = int(min(max(4 * (bytes_x + bytes_w + bytes_scr), 32 << 20), 56 << 20))

    kernel = functools.partial(_lstm_chunk_kernel, hidden=Hp, embed=Ep, tc=tc)

    out = pl.pallas_call(
        kernel,
        out_shape=jax.ShapeDtypeStruct((Bp, 1), jnp.float32),
        grid_spec=pltpu.PrefetchScalarGridSpec(
            num_scalar_prefetch=0,
            grid=(nb, nt),
            in_specs=[
                pl.BlockSpec((BB, 1), lambda i, t: (i, 0)),                 # lengths
                pl.BlockSpec((tc, BB, Ep), lambda i, t: (t, i, 0)),         # embeds chunk
                pl.BlockSpec((Ep + Hp, 4 * Hp), lambda i, t: (0, 0)),       # fused gate W
                pl.BlockSpec((1, 4 * Hp), lambda i, t: (0, 0)),             # gate bias
                pl.BlockSpec((Hp, 1), lambda i, t: (0, 0)),                 # dense W^T
                pl.BlockSpec((1, 1), lambda i, t: (0, 0)),                  # dense bias
            ],
            out_specs=pl.BlockSpec((BB, 1), lambda i, t: (i, 0)),
            scratch_shapes=[
                pltpu.VMEM((BB, Ep + Hp), jnp.bfloat16),   # [x_t | h_{t-1}]
                pltpu.VMEM((BB, Hp), jnp.float32),         # cell state
                pltpu.VMEM((BB, Hp), jnp.float32),         # captured h at len-1
            ],
        ),
        compiler_params=pltpu.CompilerParams(
            dimension_semantics=("parallel", "arbitrary"),
            vmem_limit_bytes=vmem_limit,
        ),
    )(len2d, embeds, w_stack, b_p, wd_p, bd)

    # strip batch padding; matches torch .squeeze() for batch > 1
    return out[:B, 0]


def _lstm_classifier_reference(x, params):
    """Pure-JAX f32 reference of the same forward pass (for a sanity check)."""
    emb = params["embedding"]
    w_ih, w_hh = params["w_ih"], params["w_hh"]
    b = params["b_ih"] + params["b_hh"]
    w_d, b_d = params["w_dense"], params["b_dense"]
    H = w_hh.shape[1]

    xt = x.T
    lengths = xt[0, :].astype(jnp.int32)
    reviews = xt[1:, :]
    T, B = reviews.shape
    embeds = jnp.take(emb, reviews, axis=0).astype(jnp.float32)   # (T, B, E)

    def step(carry, x_t):
        h, c = carry
        gates = x_t @ w_ih.T + h @ w_hh.T + b
        i_g = jax.nn.sigmoid(gates[:, 0 * H:1 * H])
        f_g = jax.nn.sigmoid(gates[:, 1 * H:2 * H])
        g_g = jnp.tanh(gates[:, 2 * H:3 * H])
        o_g = jax.nn.sigmoid(gates[:, 3 * H:4 * H])
        c = f_g * c + i_g * g_g
        h = o_g * jnp.tanh(c)
        return (h, c), h

    init = (jnp.zeros((B, H), jnp.float32), jnp.zeros((B, H), jnp.float32))
    _, hs = lax.scan(step, init, embeds)                 # (T, B, H)
    h_last = hs[lengths - 1, jnp.arange(B)]              # (B, H)
    out = h_last @ w_d.T + b_d
    return jax.nn.sigmoid(out[:, 0])


def init_params(key, vocab_size, embedding_dim, hidden_dim):
    ks = jax.random.split(key, 7)
    E, H, V = embedding_dim, hidden_dim, vocab_size
    emb = jax.random.normal(ks[0], (V, E), jnp.float32) * 0.1
    emb = emb.at[0].set(0.0)   # padding_idx=0
    s = 1.0 / jnp.sqrt(H)
    return {
        "embedding": emb,
        "w_ih": jax.random.uniform(ks[1], (4 * H, E), jnp.float32, -s, s),
        "w_hh": jax.random.uniform(ks[2], (4 * H, H), jnp.float32, -s, s),
        "b_ih": jax.random.uniform(ks[3], (4 * H,), jnp.float32, -s, s),
        "b_hh": jax.random.uniform(ks[4], (4 * H,), jnp.float32, -s, s),
        "w_dense": jax.random.uniform(ks[5], (1, H), jnp.float32, -s, s),
        "b_dense": jax.random.uniform(ks[6], (1,), jnp.float32, -s, s),
    }


if __name__ == "__main__":
    # Small deterministic problem: batch=4, seq_len=8, embed=32, hidden=32, vocab=50.
    B, T, E, H, V = 4, 8, 32, 32, 50
    key = jax.random.PRNGKey(0)
    kp, kx, kl = jax.random.split(key, 3)

    params = init_params(kp, vocab_size=V, embedding_dim=E, hidden_dim=H)

    tokens = jax.random.randint(kx, (B, T), 1, V, dtype=jnp.int32)
    lengths = jax.random.randint(kl, (B, 1), 1, T + 1, dtype=jnp.int32)   # in [1, T]
    x = jnp.concatenate([lengths, tokens], axis=1)   # (B, 1 + T), like the PyTorch input

    out = lstm_classifier_forward(x, params)
    jax.block_until_ready(out)
    assert out.shape == (B,)

    # Loose sanity check against an f32 pure-JAX reference (kernel uses bf16 MXU inputs).
    ref = _lstm_classifier_reference(x, params)
    err = float(jnp.max(jnp.abs(out - ref)))
    assert err < 5e-2, f"max abs err {err}"
    print("KERNEL_OK")
</pallas_src>

<mosaic_0001>
module attributes {stable_mosaic.version = 11 : i64} {
  func.func @_lstm_chunk_kernel(%arg0: i32, %arg1: i32, %arg2: memref<8x1xi32, #tpu.memory_space<vmem>>, %arg3: memref<8x8x128xbf16, #tpu.memory_space<vmem>>, %arg4: memref<256x512xbf16, #tpu.memory_space<vmem>>, %arg5: memref<1x512xf32, #tpu.memory_space<vmem>>, %arg6: memref<128x1xf32, #tpu.memory_space<vmem>>, %arg7: memref<1x1xf32, #tpu.memory_space<vmem>>, %arg8: memref<8x1xf32, #tpu.memory_space<vmem>>, %arg9: memref<8x256xbf16, #tpu.memory_space<vmem>>, %arg10: memref<8x128xf32, #tpu.memory_space<vmem>>, %arg11: memref<8x128xf32, #tpu.memory_space<vmem>>) attributes {dimension_semantics = [#tpu.dimension_semantics<parallel>, #tpu.dimension_semantics<arbitrary>], iteration_bounds = array<i64: 1, 1>, scalar_prefetch = 0 : i64, scratch_operands = 3 : i64, tpu.core_type = #tpu.core_type<tc>, window_params = [{transform_indices = @transform_0, window_bounds = array<i64: 8, 1>}, {transform_indices = @transform_1, window_bounds = array<i64: 8, 8, 128>}, {pipeline_mode = #tpu.pipeline_mode<synchronous>, transform_indices = @transform_2, window_bounds = array<i64: 256, 512>}, {pipeline_mode = #tpu.pipeline_mode<synchronous>, transform_indices = @transform_3, window_bounds = array<i64: 1, 512>}, {pipeline_mode = #tpu.pipeline_mode<synchronous>, transform_indices = @transform_4, window_bounds = array<i64: 128, 1>}, {pipeline_mode = #tpu.pipeline_mode<synchronous>, transform_indices = @transform_5, window_bounds = array<i64: 1, 1>}, {transform_indices = @transform_6, window_bounds = array<i64: 8, 1>}]} {
    %c0_i32 = arith.constant 0 : i32
    %0 = arith.cmpi eq, %arg1, %c0_i32 : i32
    %1 = arith.extui %0 : i1 to i32
    %c0_i32_0 = arith.constant 0 : i32
    %2 = arith.cmpi ne, %1, %c0_i32_0 : i32
    scf.if %2 {
      %cst_190 = arith.constant 0.000000e+00 : bf16
      %386 = vector.broadcast %cst_190 : bf16 to vector<8x256xbf16>
      %c0_191 = arith.constant 0 : index
      %c0_192 = arith.constant 0 : index
      %387 = vector.load %arg9[%c0_191, %c0_192] : memref<8x256xbf16, #tpu.memory_space<vmem>>, vector<8x256xbf16>
      tpu.vector_store %arg9[%c0_191, %c0_192], %386 {strides = array<i32>} : memref<8x256xbf16, #tpu.memory_space<vmem>>, vector<8x256xbf16>,
      %cst_193 = arith.constant 0.000000e+00 : f32
      %388 = vector.broadcast %cst_193 : f32 to vector<8x128xf32>
      %c0_194 = arith.constant 0 : index
      %c0_195 = arith.constant 0 : index
      %389 = vector.load %arg10[%c0_194, %c0_195] : memref<8x128xf32, #tpu.memory_space<vmem>>, vector<8x128xf32>
      tpu.vector_store %arg10[%c0_194, %c0_195], %388 {strides = array<i32>} : memref<8x128xf32, #tpu.memory_space<vmem>>, vector<8x128xf32>,
      %cst_196 = arith.constant 0.000000e+00 : f32
      %390 = vector.broadcast %cst_196 : f32 to vector<8x128xf32>
      %c0_197 = arith.constant 0 : index
      %c0_198 = arith.constant 0 : index
      %391 = vector.load %arg11[%c0_197, %c0_198] : memref<8x128xf32, #tpu.memory_space<vmem>>, vector<8x128xf32>
      tpu.vector_store %arg11[%c0_197, %c0_198], %390 {strides = array<i32>} : memref<8x128xf32, #tpu.memory_space<vmem>>, vector<8x128xf32>,
    } else {
    }
    %c0 = arith.constant 0 : index
    %c0_1 = arith.constant 0 : index
    %3 = vector.load %arg2[%c0, %c0_1] : memref<8x1xi32, #tpu.memory_space<vmem>>, vector<8x1xi32>
    %c1_i32 = arith.constant 1 : i32
    %4 = vector.broadcast %c1_i32 : i32 to vector<8x1xi32>
    %5 = arith.subi %3, %4 : vector<8x1xi32>
    %c0_2 = arith.constant 0 : index
    %c0_3 = arith.constant 0 : index
    %6 = vector.load %arg5[%c0_2, %c0_3] : memref<1x512xf32, #tpu.memory_space<vmem>>, vector<1x512xf32>
    %c0_i32_4 = arith.constant 0 : i32
    %c8_i32 = arith.constant 8 : i32
    %7 = arith.muli %arg1, %c8_i32 : i32
    %8 = arith.addi %7, %c0_i32_4 : i32
    %9 = arith.index_cast %c0_i32_4 : i32 to index
    %c0_5 = arith.constant 0 : index
    %c0_6 = arith.constant 0 : index
    %10 = vector.load %arg3[%9, %c0_5, %c0_6] : memref<8x8x128xbf16, #tpu.memory_space<vmem>>, vector<1x8x128xbf16>
    %11 = vector.shape_cast %10 : vector<1x8x128xbf16> to vector<8x128xbf16>
    %c0_7 = arith.constant 0 : index
    %c0_8 = arith.constant 0 : index
    %12 = vector.load %arg9[%c0_7, %c0_8] : memref<8x256xbf16, #tpu.memory_space<vmem>>, vector<8x128xbf16>
    tpu.vector_store %arg9[%c0_7, %c0_8], %11 {strides = array<i32>} : memref<8x256xbf16, #tpu.memory_space<vmem>>, vector<8x128xbf16>,
    %c0_9 = arith.constant 0 : index
    %c0_10 = arith.constant 0 : index
    %13 = vector.load %arg9[%c0_9, %c0_10] : memref<8x256xbf16, #tpu.memory_space<vmem>>, vector<8x256xbf16>
    %c0_11 = arith.constant 0 : index
    %c0_12 = arith.constant 0 : index
    %14 = vector.load %arg4[%c0_11, %c0_12] : memref<256x512xbf16, #tpu.memory_space<vmem>>, vector<256x512xbf16>
    %cst = arith.constant dense<0.000000e+00> : vector<8x512xf32>
    %15 = tpu.matmul %13, %14, %cst {dimension_numbers = #tpu.dot_dimension_numbers<[1], [0], [0], [1], [0, 0, 1, 1], [], []>} : vector<8x256xbf16>, vector<256x512xbf16>, vector<8x512xf32> -> vector<8x512xf32>
    %16 = vector.broadcast %6 : vector<1x512xf32> to vector<8x512xf32>
    %17 = arith.addf %15, %16 : vector<8x512xf32>
    %18 = vector.extract_strided_slice %17 {offsets = [0, 0], sizes = [8, 128], strides = [1, 1]} : vector<8x512xf32> to vector<8x128xf32>
    %19 = arith.negf %18 : vector<8x128xf32>
    %20 = math.exp %19 : vector<8x128xf32>
    %cst_13 = arith.constant 1.000000e+00 : f32
    %21 = vector.broadcast %cst_13 : f32 to vector<8x128xf32>
    %22 = arith.addf %21, %20 : vector<8x128xf32>
    %23 = arith.divf %21, %22 : vector<8x128xf32>
    %24 = vector.extract_strided_slice %17 {offsets = [0, 128], sizes = [8, 128], strides = [1, 1]} : vector<8x512xf32> to vector<8x128xf32>
    %25 = arith.negf %24 : vector<8x128xf32>
    %26 = math.exp %25 : vector<8x128xf32>
    %cst_14 = arith.constant 1.000000e+00 : f32
    %27 = vector.broadcast %cst_14 : f32 to vector<8x128xf32>
    %28 = arith.addf %27, %26 : vector<8x128xf32>
    %29 = arith.divf %27, %28 : vector<8x128xf32>
    %30 = vector.extract_strided_slice %17 {offsets = [0, 256], sizes = [8, 128], strides = [1, 1]} : vector<8x512xf32> to vector<8x128xf32>
    %31 = math.tanh %30 : vector<8x128xf32>
    %32 = vector.extract_strided_slice %17 {offsets = [0, 384], sizes = [8, 128], strides = [1, 1]} : vector<8x512xf32> to vector<8x128xf32>
    %33 = arith.negf %32 : vector<8x128xf32>
    %34 = math.exp %33 : vector<8x128xf32>
    %cst_15 = arith.constant 1.000000e+00 : f32
    %35 = vector.broadcast %cst_15 : f32 to vector<8x128xf32>
    %36 = arith.addf %35, %34 : vector<8x128xf32>
    %37 = arith.divf %35, %36 : vector<8x128xf32>
    %c0_16 = arith.constant 0 : index
    %c0_17 = arith.constant 0 : index
    %38 = vector.load %arg10[%c0_16, %c0_17] : memref<8x128xf32, #tpu.memory_space<vmem>>, vector<8x128xf32>
    %39 = arith.mulf %29, %38 : vector<8x128xf32>
    %40 = arith.mulf %23, %31 : vector<8x128xf32>
    %41 = arith.addf %39, %40 : vector<8x128xf32>
    %42 = math.tanh %41 : vector<8x128xf32>
    %43 = arith.mulf %37, %42 : vector<8x128xf32>
    %c0_18 = arith.constant 0 : index
    %c0_19 = arith.constant 0 : index
    %44 = vector.load %arg10[%c0_18, %c0_19] : memref<8x128xf32, #tpu.memory_space<vmem>>, vector<8x128xf32>
    tpu.vector_store %arg10[%c0_18, %c0_19], %41 {strides = array<i32>} : memref<8x128xf32, #tpu.memory_space<vmem>>, vector<8x128xf32>,
    %45 = arith.truncf %43 : vector<8x128xf32> to vector<8x128xbf16>
    %c0_20 = arith.constant 0 : index
    %c128 = arith.constant 128 : index
    %46 = vector.load %arg9[%c0_20, %c128] : memref<8x256xbf16, #tpu.memory_space<vmem>>, vector<8x128xbf16>
    tpu.vector_store %arg9[%c0_20, %c128], %45 {strides = array<i32>} : memref<8x256xbf16, #tpu.memory_space<vmem>>, vector<8x128xbf16>,
    %47 = vector.broadcast %8 : i32 to vector<8x1xi32>
    %48 = arith.cmpi eq, %5, %47 : vector<8x1xi32>
    %c0_21 = arith.constant 0 : index
    %c0_22 = arith.constant 0 : index
    %49 = vector.load %arg11[%c0_21, %c0_22] : memref<8x128xf32, #tpu.memory_space<vmem>>, vector<8x128xf32>
    %50 = vector.shape_cast %48 : vector<8x1xi1> to vector<8x1xi1>
    %51 = vector.broadcast %50 : vector<8x1xi1> to vector<8x128xi1>
    %52 = arith.select %51, %43, %49 : vector<8x128xi1>, vector<8x128xf32>
    %c0_23 = arith.constant 0 : index
    %c0_24 = arith.constant 0 : index
    %53 = vector.load %arg11[%c0_23, %c0_24] : memref<8x128xf32, #tpu.memory_space<vmem>>, vector<8x128xf32>
    tpu.vector_store %arg11[%c0_23, %c0_24], %52 {strides = array<i32>} : memref<8x128xf32, #tpu.memory_space<vmem>>, vector<8x128xf32>,
    %c1_i32_25 = arith.constant 1 : i32
    %c8_i32_26 = arith.constant 8 : i32
    %54 = arith.muli %arg1, %c8_i32_26 : i32
    %55 = arith.addi %54, %c1_i32_25 : i32
    %56 = arith.index_cast %c1_i32_25 : i32 to index
    %c0_27 = arith.constant 0 : index
    %c0_28 = arith.constant 0 : index
    %57 = vector.load %arg3[%56, %c0_27, %c0_28] : memref<8x8x128xbf16, #tpu.memory_space<vmem>>, vector<1x8x128xbf16>
    %58 = vector.shape_cast %57 : vector<1x8x128xbf16> to vector<8x128xbf16>
    %c0_29 = arith.constant 0 : index
    %c0_30 = arith.constant 0 : index
    %59 = vector.load %arg9[%c0_29, %c0_30] : memref<8x256xbf16, #tpu.memory_space<vmem>>, vector<8x128xbf16>
    tpu.vector_store %arg9[%c0_29, %c0_30], %58 {strides = array<i32>} : memref<8x256xbf16, #tpu.memory_space<vmem>>, vector<8x128xbf16>,
    %c0_31 = arith.constant 0 : index
    %c0_32 = arith.constant 0 : index
    %60 = vector.load %arg9[%c0_31, %c0_32] : memref<8x256xbf16, #tpu.memory_space<vmem>>, vector<8x256xbf16>
    %c0_33 = arith.constant 0 : index
    %c0_34 = arith.constant 0 : index
    %61 = vector.load %arg4[%c0_33, %c0_34] : memref<256x512xbf16, #tpu.memory_space<vmem>>, vector<256x512xbf16>
    %cst_35 = arith.constant dense<0.000000e+00> : vector<8x512xf32>
    %62 = tpu.matmul %60, %61, %cst_35 {dimension_numbers = #tpu.dot_dimension_numbers<[1], [0], [0], [1], [0, 0, 1, 1], [], []>} : vector<8x256xbf16>, vector<256x512xbf16>, vector<8x512xf32> -> vector<8x512xf32>
    %63 = vector.broadcast %6 : vector<1x512xf32> to vector<8x512xf32>
    %64 = arith.addf %62, %63 : vector<8x512xf32>
    %65 = vector.extract_strided_slice %64 {offsets = [0, 0], sizes = [8, 128], strides = [1, 1]} : vector<8x512xf32> to vector<8x128xf32>
    %66 = arith.negf %65 : vector<8x128xf32>
    %67 = math.exp %66 : vector<8x128xf32>
    %cst_36 = arith.constant 1.000000e+00 : f32
    %68 = vector.broadcast %cst_36 : f32 to vector<8x128xf32>
    %69 = arith.addf %68, %67 : vector<8x128xf32>
    %70 = arith.divf %68, %69 : vector<8x128xf32>
    %71 = vector.extract_strided_slice %64 {offsets = [0, 128], sizes = [8, 128], strides = [1, 1]} : vector<8x512xf32> to vector<8x128xf32>
    %72 = arith.negf %71 : vector<8x128xf32>
    %73 = math.exp %72 : vector<8x128xf32>
    %cst_37 = arith.constant 1.000000e+00 : f32
    %74 = vector.broadcast %cst_37 : f32 to vector<8x128xf32>
    %75 = arith.addf %74, %73 : vector<8x128xf32>
    %76 = arith.divf %74, %75 : vector<8x128xf32>
    %77 = vector.extract_strided_slice %64 {offsets = [0, 256], sizes = [8, 128], strides = [1, 1]} : vector<8x512xf32> to vector<8x128xf32>
    %78 = math.tanh %77 : vector<8x128xf32>
    %79 = vector.extract_strided_slice %64 {offsets = [0, 384], sizes = [8, 128], strides = [1, 1]} : vector<8x512xf32> to vector<8x128xf32>
    %80 = arith.negf %79 : vector<8x128xf32>
    %81 = math.exp %80 : vector<8x128xf32>
    %cst_38 = arith.constant 1.000000e+00 : f32
    %82 = vector.broadcast %cst_38 : f32 to vector<8x128xf32>
    %83 = arith.addf %82, %81 : vector<8x128xf32>
    %84 = arith.divf %82, %83 : vector<8x128xf32>
    %c0_39 = arith.constant 0 : index
    %c0_40 = arith.constant 0 : index
    %85 = vector.load %arg10[%c0_39, %c0_40] : memref<8x128xf32, #tpu.memory_space<vmem>>, vector<8x128xf32>
    %86 = arith.mulf %76, %85 : vector<8x128xf32>
    %87 = arith.mulf %70, %78 : vector<8x128xf32>
    %88 = arith.addf %86, %87 : vector<8x128xf32>
    %89 = math.tanh %88 : vector<8x128xf32>
    %90 = arith.mulf %84, %89 : vector<8x128xf32>
    %c0_41 = arith.constant 0 : index
    %c0_42 = arith.constant 0 : index
    %91 = vector.load %arg10[%c0_41, %c0_42] : memref<8x128xf32, #tpu.memory_space<vmem>>, vector<8x128xf32>
    tpu.vector_store %arg10[%c0_41, %c0_42], %88 {strides = array<i32>} : memref<8x128xf32, #tpu.memory_space<vmem>>, vector<8x128xf32>,
    %92 = arith.truncf %90 : vector<8x128xf32> to vector<8x128xbf16>
    %c0_43 = arith.constant 0 : index
    %c128_44 = arith.constant 128 : index
    %93 = vector.load %arg9[%c0_43, %c128_44] : memref<8x256xbf16, #tpu.memory_space<vmem>>, vector<8x128xbf16>
    tpu.vector_store %arg9[%c0_43, %c128_44], %92 {strides = array<i32>} : memref<8x256xbf16, #tpu.memory_space<vmem>>, vector<8x128xbf16>,
    %94 = vector.broadcast %55 : i32 to vector<8x1xi32>
    %95 = arith.cmpi eq, %5, %94 : vector<8x1xi32>
    %c0_45 = arith.constant 0 : index
    %c0_46 = arith.constant 0 : index
    %96 = vector.load %arg11[%c0_45, %c0_46] : memref<8x128xf32, #tpu.memory_space<vmem>>, vector<8x128xf32>
    %97 = vector.shape_cast %95 : vector<8x1xi1> to vector<8x1xi1>
    %98 = vector.broadcast %97 : vector<8x1xi1> to vector<8x128xi1>
    %99 = arith.select %98, %90, %96 : vector<8x128xi1>, vector<8x128xf32>
    %c0_47 = arith.constant 0 : index
    %c0_48 = arith.constant 0 : index
    %100 = vector.load %arg11[%c0_47, %c0_48] : memref<8x128xf32, #tpu.memory_space<vmem>>, vector<8x128xf32>
    tpu.vector_store %arg11[%c0_47, %c0_48], %99 {strides = array<i32>} : memref<8x128xf32, #tpu.memory_space<vmem>>, vector<8x128xf32>,
    %c2_i32 = arith.constant 2 : i32
    %c8_i32_49 = arith.constant 8 : i32
    %101 = arith.muli %arg1, %c8_i32_49 : i32
    %102 = arith.addi %101, %c2_i32 : i32
    %103 = arith.index_cast %c2_i32 : i32 to index
    %c0_50 = arith.constant 0 : index
    %c0_51 = arith.constant 0 : index
    %104 = vector.load %arg3[%103, %c0_50, %c0_51] : memref<8x8x128xbf16, #tpu.memory_space<vmem>>, vector<1x8x128xbf16>
    %105 = vector.shape_cast %104 : vector<1x8x128xbf16> to vector<8x128xbf16>
    %c0_52 = arith.constant 0 : index
    %c0_53 = arith.constant 0 : index
    %106 = vector.load %arg9[%c0_52, %c0_53] : memref<8x256xbf16, #tpu.memory_space<vmem>>, vector<8x128xbf16>
    tpu.vector_store %arg9[%c0_52, %c0_53], %105 {strides = array<i32>} : memref<8x256xbf16, #tpu.memory_space<vmem>>, vector<8x128xbf16>,
    %c0_54 = arith.constant 0 : index
    %c0_55 = arith.constant 0 : index
    %107 = vector.load %arg9[%c0_54, %c0_55] : memref<8x256xbf16, #tpu.memory_space<vmem>>, vector<8x256xbf16>
    %c0_56 = arith.constant 0 : index
    %c0_57 = arith.constant 0 : index
    %108 = vector.load %arg4[%c0_56, %c0_57] : memref<256x512xbf16, #tpu.memory_space<vmem>>, vector<256x512xbf16>
    %cst_58 = arith.constant dense<0.000000e+00> : vector<8x512xf32>
    %109 = tpu.matmul %107, %108, %cst_58 {dimension_numbers = #tpu.dot_dimension_numbers<[1], [0], [0], [1], [0, 0, 1, 1], [], []>} : vector<8x256xbf16>, vector<256x512xbf16>, vector<8x512xf32> -> vector<8x512xf32>
    %110 = vector.broadcast %6 : vector<1x512xf32> to vector<8x512xf32>
    %111 = arith.addf %109, %110 : vector<8x512xf32>
    %112 = vector.extract_strided_slice %111 {offsets = [0, 0], sizes = [8, 128], strides = [1, 1]} : vector<8x512xf32> to vector<8x128xf32>
    %113 = arith.negf %112 : vector<8x128xf32>
    %114 = math.exp %113 : vector<8x128xf32>
    %cst_59 = arith.constant 1.000000e+00 : f32
    %115 = vector.broadcast %cst_59 : f32 to vector<8x128xf32>
    %116 = arith.addf %115, %114 : vector<8x128xf32>
    %117 = arith.divf %115, %116 : vector<8x128xf32>
    %118 = vector.extract_strided_slice %111 {offsets = [0, 128], sizes = [8, 128], strides = [1, 1]} : vector<8x512xf32> to vector<8x128xf32>
    %119 = arith.negf %118 : vector<8x128xf32>
    %120 = math.exp %119 : vector<8x128xf32>
    %cst_60 = arith.constant 1.000000e+00 : f32
    %121 = vector.broadcast %cst_60 : f32 to vector<8x128xf32>
    %122 = arith.addf %121, %120 : vector<8x128xf32>
    %123 = arith.divf %121, %122 : vector<8x128xf32>
    %124 = vector.extract_strided_slice %111 {offsets = [0, 256], sizes = [8, 128], strides = [1, 1]} : vector<8x512xf32> to vector<8x128xf32>
    %125 = math.tanh %124 : vector<8x128xf32>
    %126 = vector.extract_strided_slice %111 {offsets = [0, 384], sizes = [8, 128], strides = [1, 1]} : vector<8x512xf32> to vector<8x128xf32>
    %127 = arith.negf %126 : vector<8x128xf32>
    %128 = math.exp %127 : vector<8x128xf32>
    %cst_61 = arith.constant 1.000000e+00 : f32
    %129 = vector.broadcast %cst_61 : f32 to vector<8x128xf32>
    %130 = arith.addf %129, %128 : vector<8x128xf32>
    %131 = arith.divf %129, %130 : vector<8x128xf32>
    %c0_62 = arith.constant 0 : index
    %c0_63 = arith.constant 0 : index
    %132 = vector.load %arg10[%c0_62, %c0_63] : memref<8x128xf32, #tpu.memory_space<vmem>>, vector<8x128xf32>
    %133 = arith.mulf %123, %132 : vector<8x128xf32>
    %134 = arith.mulf %117, %125 : vector<8x128xf32>
    %135 = arith.addf %133, %134 : vector<8x128xf32>
    %136 = math.tanh %135 : vector<8x128xf32>
    %137 = arith.mulf %131, %136 : vector<8x128xf32>
    %c0_64 = arith.constant 0 : index
    %c0_65 = arith.constant 0 : index
    %138 = vector.load %arg10[%c0_64, %c0_65] : memref<8x128xf32, #tpu.memory_space<vmem>>, vector<8x128xf32>
    tpu.vector_store %arg10[%c0_64, %c0_65], %135 {strides = array<i32>} : memref<8x128xf32, #tpu.memory_space<vmem>>, vector<8x128xf32>,
    %139 = arith.truncf %137 : vector<8x128xf32> to vector<8x128xbf16>
    %c0_66 = arith.constant 0 : index
    %c128_67 = arith.constant 128 : index
    %140 = vector.load %arg9[%c0_66, %c128_67] : memref<8x256xbf16, #tpu.memory_space<vmem>>, vector<8x128xbf16>
    tpu.vector_store %arg9[%c0_66, %c128_67], %139 {strides = array<i32>} : memref<8x256xbf16, #tpu.memory_space<vmem>>, vector<8x128xbf16>,
    %141 = vector.broadcast %102 : i32 to vector<8x1xi32>
    %142 = arith.cmpi eq, %5, %141 : vector<8x1xi32>
    %c0_68 = arith.constant 0 : index
    %c0_69 = arith.constant 0 : index
    %143 = vector.load %arg11[%c0_68, %c0_69] : memref<8x128xf32, #tpu.memory_space<vmem>>, vector<8x128xf32>
    %144 = vector.shape_cast %142 : vector<8x1xi1> to vector<8x1xi1>
    %145 = vector.broadcast %144 : vector<8x1xi1> to vector<8x128xi1>
    %146 = arith.select %145, %137, %143 : vector<8x128xi1>, vector<8x128xf32>
    %c0_70 = arith.constant 0 : index
    %c0_71 = arith.constant 0 : index
    %147 = vector.load %arg11[%c0_70, %c0_71] : memref<8x128xf32, #tpu.memory_space<vmem>>, vector<8x128xf32>
    tpu.vector_store %arg11[%c0_70, %c0_71], %146 {strides = array<i32>} : memref<8x128xf32, #tpu.memory_space<vmem>>, vector<8x128xf32>,
    %c3_i32 = arith.constant 3 : i32
    %c8_i32_72 = arith.constant 8 : i32
    %148 = arith.muli %arg1, %c8_i32_72 : i32
    %149 = arith.addi %148, %c3_i32 : i32
    %150 = arith.index_cast %c3_i32 : i32 to index
    %c0_73 = arith.constant 0 : index
    %c0_74 = arith.constant 0 : index
    %151 = vector.load %arg3[%150, %c0_73, %c0_74] : memref<8x8x128xbf16, #tpu.memory_space<vmem>>, vector<1x8x128xbf16>
    %152 = vector.shape_cast %151 : vector<1x8x128xbf16> to vector<8x128xbf16>
    %c0_75 = arith.constant 0 : index
    %c0_76 = arith.constant 0 : index
    %153 = vector.load %arg9[%c0_75, %c0_76] : memref<8x256xbf16, #tpu.memory_space<vmem>>, vector<8x128xbf16>
    tpu.vector_store %arg9[%c0_75, %c0_76], %152 {strides = array<i32>} : memref<8x256xbf16, #tpu.memory_space<vmem>>, vector<8x128xbf16>,
    %c0_77 = arith.constant 0 : index
    %c0_78 = arith.constant 0 : index
    %154 = vector.load %arg9[%c0_77, %c0_78] : memref<8x256xbf16, #tpu.memory_space<vmem>>, vector<8x256xbf16>
    %c0_79 = arith.constant 0 : index
    %c0_80 = arith.constant 0 : index
    %155 = vector.load %arg4[%c0_79, %c0_80] : memref<256x512xbf16, #tpu.memory_space<vmem>>, vector<256x512xbf16>
    %cst_81 = arith.constant dense<0.000000e+00> : vector<8x512xf32>
    %156 = tpu.matmul %154, %155, %cst_81 {dimension_numbers = #tpu.dot_dimension_numbers<[1], [0], [0], [1], [0, 0, 1, 1], [], []>} : vector<8x256xbf16>, vector<256x512xbf16>, vector<8x512xf32> -> vector<8x512xf32>
    %157 = vector.broadcast %6 : vector<1x512xf32> to vector<8x512xf32>
    %158 = arith.addf %156, %157 : vector<8x512xf32>
    %159 = vector.extract_strided_slice %158 {offsets = [0, 0], sizes = [8, 128], strides = [1, 1]} : vector<8x512xf32> to vector<8x128xf32>
    %160 = arith.negf %159 : vector<8x128xf32>
    %161 = math.exp %160 : vector<8x128xf32>
    %cst_82 = arith.constant 1.000000e+00 : f32
    %162 = vector.broadcast %cst_82 : f32 to vector<8x128xf32>
    %163 = arith.addf %162, %161 : vector<8x128xf32>
    %164 = arith.divf %162, %163 : vector<8x128xf32>
    %165 = vector.extract_strided_slice %158 {offsets = [0, 128], sizes = [8, 128], strides = [1, 1]} : vector<8x512xf32> to vector<8x128xf32>
    %166 = arith.negf %165 : vector<8x128xf32>
    %167 = math.exp %166 : vector<8x128xf32>
    %cst_83 = arith.constant 1.000000e+00 : f32
    %168 = vector.broadcast %cst_83 : f32 to vector<8x128xf32>
    %169 = arith.addf %168, %167 : vector<8x128xf32>
    %170 = arith.divf %168, %169 : vector<8x128xf32>
    %171 = vector.extract_strided_slice %158 {offsets = [0, 256], sizes = [8, 128], strides = [1, 1]} : vector<8x512xf32> to vector<8x128xf32>
    %172 = math.tanh %171 : vector<8x128xf32>
    %173 = vector.extract_strided_slice %158 {offsets = [0, 384], sizes = [8, 128], strides = [1, 1]} : vector<8x512xf32> to vector<8x128xf32>
    %174 = arith.negf %173 : vector<8x128xf32>
    %175 = math.exp %174 : vector<8x128xf32>
    %cst_84 = arith.constant 1.000000e+00 : f32
    %176 = vector.broadcast %cst_84 : f32 to vector<8x128xf32>
    %177 = arith.addf %176, %175 : vector<8x128xf32>
    %178 = arith.divf %176, %177 : vector<8x128xf32>
    %c0_85 = arith.constant 0 : index
    %c0_86 = arith.constant 0 : index
    %179 = vector.load %arg10[%c0_85, %c0_86] : memref<8x128xf32, #tpu.memory_space<vmem>>, vector<8x128xf32>
    %180 = arith.mulf %170, %179 : vector<8x128xf32>
    %181 = arith.mulf %164, %172 : vector<8x128xf32>
    %182 = arith.addf %180, %181 : vector<8x128xf32>
    %183 = math.tanh %182 : vector<8x128xf32>
    %184 = arith.mulf %178, %183 : vector<8x128xf32>
    %c0_87 = arith.constant 0 : index
    %c0_88 = arith.constant 0 : index
    %185 = vector.load %arg10[%c0_87, %c0_88] : memref<8x128xf32, #tpu.memory_space<vmem>>, vector<8x128xf32>
    tpu.vector_store %arg10[%c0_87, %c0_88], %182 {strides = array<i32>} : memref<8x128xf32, #tpu.memory_space<vmem>>, vector<8x128xf32>,
    %186 = arith.truncf %184 : vector<8x128xf32> to vector<8x128xbf16>
    %c0_89 = arith.constant 0 : index
    %c128_90 = arith.constant 128 : index
    %187 = vector.load %arg9[%c0_89, %c128_90] : memref<8x256xbf16, #tpu.memory_space<vmem>>, vector<8x128xbf16>
    tpu.vector_store %arg9[%c0_89, %c128_90], %186 {strides = array<i32>} : memref<8x256xbf16, #tpu.memory_space<vmem>>, vector<8x128xbf16>,
    %188 = vector.broadcast %149 : i32 to vector<8x1xi32>
    %189 = arith.cmpi eq, %5, %188 : vector<8x1xi32>
    %c0_91 = arith.constant 0 : index
    %c0_92 = arith.constant 0 : index
    %190 = vector.load %arg11[%c0_91, %c0_92] : memref<8x128xf32, #tpu.memory_space<vmem>>, vector<8x128xf32>
    %191 = vector.shape_cast %189 : vector<8x1xi1> to vector<8x1xi1>
    %192 = vector.broadcast %191 : vector<8x1xi1> to vector<8x128xi1>
    %193 = arith.select %192, %184, %190 : vector<8x128xi1>, vector<8x128xf32>
    %c0_93 = arith.constant 0 : index
    %c0_94 = arith.constant 0 : index
    %194 = vector.load %arg11[%c0_93, %c0_94] : memref<8x128xf32, #tpu.memory_space<vmem>>, vector<8x128xf32>
    tpu.vector_store %arg11[%c0_93, %c0_94], %193 {strides = array<i32>} : memref<8x128xf32, #tpu.memory_space<vmem>>, vector<8x128xf32>,
    %c4_i32 = arith.constant 4 : i32
    %c8_i32_95 = arith.constant 8 : i32
    %195 = arith.muli %arg1, %c8_i32_95 : i32
    %196 = arith.addi %195, %c4_i32 : i32
    %197 = arith.index_cast %c4_i32 : i32 to index
    %c0_96 = arith.constant 0 : index
    %c0_97 = arith.constant 0 : index
    %198 = vector.load %arg3[%197, %c0_96, %c0_97] : memref<8x8x128xbf16, #tpu.memory_space<vmem>>, vector<1x8x128xbf16>
    %199 = vector.shape_cast %198 : vector<1x8x128xbf16> to vector<8x128xbf16>
    %c0_98 = arith.constant 0 : index
    %c0_99 = arith.constant 0 : index
    %200 = vector.load %arg9[%c0_98, %c0_99] : memref<8x256xbf16, #tpu.memory_space<vmem>>, vector<8x128xbf16>
    tpu.vector_store %arg9[%c0_98, %c0_99], %199 {strides = array<i32>} : memref<8x256xbf16, #tpu.memory_space<vmem>>, vector<8x128xbf16>,
    %c0_100 = arith.constant 0 : index
    %c0_101 = arith.constant 0 : index
    %201 = vector.load %arg9[%c0_100, %c0_101] : memref<8x256xbf16, #tpu.memory_space<vmem>>, vector<8x256xbf16>
    %c0_102 = arith.constant 0 : index
    %c0_103 = arith.constant 0 : index
    %202 = vector.load %arg4[%c0_102, %c0_103] : memref<256x512xbf16, #tpu.memory_space<vmem>>, vector<256x512xbf16>
    %cst_104 = arith.constant dense<0.000000e+00> : vector<8x512xf32>
    %203 = tpu.matmul %201, %202, %cst_104 {dimension_numbers = #tpu.dot_dimension_numbers<[1], [0], [0], [1], [0, 0, 1, 1], [], []>} : vector<8x256xbf16>, vector<256x512xbf16>, vector<8x512xf32> -> vector<8x512xf32>
    %204 = vector.broadcast %6 : vector<1x512xf32> to vector<8x512xf32>
    %205 = arith.addf %203, %204 : vector<8x512xf32>
    %206 = vector.extract_strided_slice %205 {offsets = [0, 0], sizes = [8, 128], strides = [1, 1]} : vector<8x512xf32> to vector<8x128xf32>
    %207 = arith.negf %206 : vector<8x128xf32>
    %208 = math.exp %207 : vector<8x128xf32>
    %cst_105 = arith.constant 1.000000e+00 : f32
    %209 = vector.broadcast %cst_105 : f32 to vector<8x128xf32>
    %210 = arith.addf %209, %208 : vector<8x128xf32>
    %211 = arith.divf %209, %210 : vector<8x128xf32>
    %212 = vector.extract_strided_slice %205 {offsets = [0, 128], sizes = [8, 128], strides = [1, 1]} : vector<8x512xf32> to vector<8x128xf32>
    %213 = arith.negf %212 : vector<8x128xf32>
    %214 = math.exp %213 : vector<8x128xf32>
    %cst_106 = arith.constant 1.000000e+00 : f32
    %215 = vector.broadcast %cst_106 : f32 to vector<8x128xf32>
    %216 = arith.addf %215, %214 : vector<8x128xf32>
    %217 = arith.divf %215, %216 : vector<8x128xf32>
    %218 = vector.extract_strided_slice %205 {offsets = [0, 256], sizes = [8, 128], strides = [1, 1]} : vector<8x512xf32> to vector<8x128xf32>
    %219 = math.tanh %218 : vector<8x128xf32>
    %220 = vector.extract_strided_slice %205 {offsets = [0, 384], sizes = [8, 128], strides = [1, 1]} : vector<8x512xf32> to vector<8x128xf32>
    %221 = arith.negf %220 : vector<8x128xf32>
    %222 = math.exp %221 : vector<8x128xf32>
    %cst_107 = arith.constant 1.000000e+00 : f32
    %223 = vector.broadcast %cst_107 : f32 to vector<8x128xf32>
    %224 = arith.addf %223, %222 : vector<8x128xf32>
    %225 = arith.divf %223, %224 : vector<8x128xf32>
    %c0_108 = arith.constant 0 : index
    %c0_109 = arith.constant 0 : index
    %226 = vector.load %arg10[%c0_108, %c0_109] : memref<8x128xf32, #tpu.memory_space<vmem>>, vector<8x128xf32>
    %227 = arith.mulf %217, %226 : vector<8x128xf32>
    %228 = arith.mulf %211, %219 : vector<8x128xf32>
    %229 = arith.addf %227, %228 : vector<8x128xf32>
    %230 = math.tanh %229 : vector<8x128xf32>
    %231 = arith.mulf %225, %230 : vector<8x128xf32>
    %c0_110 = arith.constant 0 : index
    %c0_111 = arith.constant 0 : index
    %232 = vector.load %arg10[%c0_110, %c0_111] : memref<8x128xf32, #tpu.memory_space<vmem>>, vector<8x128xf32>
    tpu.vector_store %arg10[%c0_110, %c0_111], %229 {strides = array<i32>} : memref<8x128xf32, #tpu.memory_space<vmem>>, vector<8x128xf32>,
    %233 = arith.truncf %231 : vector<8x128xf32> to vector<8x128xbf16>
    %c0_112 = arith.constant 0 : index
    %c128_113 = arith.constant 128 : index
    %234 = vector.load %arg9[%c0_112, %c128_113] : memref<8x256xbf16, #tpu.memory_space<vmem>>, vector<8x128xbf16>
    tpu.vector_store %arg9[%c0_112, %c128_113], %233 {strides = array<i32>} : memref<8x256xbf16, #tpu.memory_space<vmem>>, vector<8x128xbf16>,
    %235 = vector.broadcast %196 : i32 to vector<8x1xi32>
    %236 = arith.cmpi eq, %5, %235 : vector<8x1xi32>
    %c0_114 = arith.constant 0 : index
    %c0_115 = arith.constant 0 : index
    %237 = vector.load %arg11[%c0_114, %c0_115] : memref<8x128xf32, #tpu.memory_space<vmem>>, vector<8x128xf32>
    %238 = vector.shape_cast %236 : vector<8x1xi1> to vector<8x1xi1>
    %239 = vector.broadcast %238 : vector<8x1xi1> to vector<8x128xi1>
    %240 = arith.select %239, %231, %237 : vector<8x128xi1>, vector<8x128xf32>
    %c0_116 = arith.constant 0 : index
    %c0_117 = arith.constant 0 : index
    %241 = vector.load %arg11[%c0_116, %c0_117] : memref<8x128xf32, #tpu.memory_space<vmem>>, vector<8x128xf32>
    tpu.vector_store %arg11[%c0_116, %c0_117], %240 {strides = array<i32>} : memref<8x128xf32, #tpu.memory_space<vmem>>, vector<8x128xf32>,
    %c5_i32 = arith.constant 5 : i32
    %c8_i32_118 = arith.constant 8 : i32
    %242 = arith.muli %arg1, %c8_i32_118 : i32
    %243 = arith.addi %242, %c5_i32 : i32
    %244 = arith.index_cast %c5_i32 : i32 to index
    %c0_119 = arith.constant 0 : index
    %c0_120 = arith.constant 0 : index
    %245 = vector.load %arg3[%244, %c0_119, %c0_120] : memref<8x8x128xbf16, #tpu.memory_space<vmem>>, vector<1x8x128xbf16>
    %246 = vector.shape_cast %245 : vector<1x8x128xbf16> to vector<8x128xbf16>
    %c0_121 = arith.constant 0 : index
    %c0_122 = arith.constant 0 : index
    %247 = vector.load %arg9[%c0_121, %c0_122] : memref<8x256xbf16, #tpu.memory_space<vmem>>, vector<8x128xbf16>
    tpu.vector_store %arg9[%c0_121, %c0_122], %246 {strides = array<i32>} : memref<8x256xbf16, #tpu.memory_space<vmem>>, vector<8x128xbf16>,
    %c0_123 = arith.constant 0 : index
    %c0_124 = arith.constant 0 : index
    %248 = vector.load %arg9[%c0_123, %c0_124] : memref<8x256xbf16, #tpu.memory_space<vmem>>, vector<8x256xbf16>
    %c0_125 = arith.constant 0 : index
    %c0_126 = arith.constant 0 : index
    %249 = vector.load %arg4[%c0_125, %c0_126] : memref<256x512xbf16, #tpu.memory_space<vmem>>, vector<256x512xbf16>
    %cst_127 = arith.constant dense<0.000000e+00> : vector<8x512xf32>
    %250 = tpu.matmul %248, %249, %cst_127 {dimension_numbers = #tpu.dot_dimension_numbers<[1], [0], [0], [1], [0, 0, 1, 1], [], []>} : vector<8x256xbf16>, vector<256x512xbf16>, vector<8x512xf32> -> vector<8x512xf32>
    %251 = vector.broadcast %6 : vector<1x512xf32> to vector<8x512xf32>
    %252 = arith.addf %250, %251 : vector<8x512xf32>
    %253 = vector.extract_strided_slice %252 {offsets = [0, 0], sizes = [8, 128], strides = [1, 1]} : vector<8x512xf32> to vector<8x128xf32>
    %254 = arith.negf %253 : vector<8x128xf32>
    %255 = math.exp %254 : vector<8x128xf32>
    %cst_128 = arith.constant 1.000000e+00 : f32
    %256 = vector.broadcast %cst_128 : f32 to vector<8x128xf32>
    %257 = arith.addf %256, %255 : vector<8x128xf32>
    %258 = arith.divf %256, %257 : vector<8x128xf32>
    %259 = vector.extract_strided_slice %252 {offsets = [0, 128], sizes = [8, 128], strides = [1, 1]} : vector<8x512xf32> to vector<8x128xf32>
    %260 = arith.negf %259 : vector<8x128xf32>
    %261 = math.exp %260 : vector<8x128xf32>
    %cst_129 = arith.constant 1.000000e+00 : f32
    %262 = vector.broadcast %cst_129 : f32 to vector<8x128xf32>
    %263 = arith.addf %262, %261 : vector<8x128xf32>
    %264 = arith.divf %262, %263 : vector<8x128xf32>
    %265 = vector.extract_strided_slice %252 {offsets = [0, 256], sizes = [8, 128], strides = [1, 1]} : vector<8x512xf32> to vector<8x128xf32>
    %266 = math.tanh %265 : vector<8x128xf32>
    %267 = vector.extract_strided_slice %252 {offsets = [0, 384], sizes = [8, 128], strides = [1, 1]} : vector<8x512xf32> to vector<8x128xf32>
    %268 = arith.negf %267 : vector<8x128xf32>
    %269 = math.exp %268 : vector<8x128xf32>
    %cst_130 = arith.constant 1.000000e+00 : f32
    %270 = vector.broadcast %cst_130 : f32 to vector<8x128xf32>
    %271 = arith.addf %270, %269 : vector<8x128xf32>
    %272 = arith.divf %270, %271 : vector<8x128xf32>
    %c0_131 = arith.constant 0 : index
    %c0_132 = arith.constant 0 : index
    %273 = vector.load %arg10[%c0_131, %c0_132] : memref<8x128xf32, #tpu.memory_space<vmem>>, vector<8x128xf32>
    %274 = arith.mulf %264, %273 : vector<8x128xf32>
    %275 = arith.mulf %258, %266 : vector<8x128xf32>
    %276 = arith.addf %274, %275 : vector<8x128xf32>
    %277 = math.tanh %276 : vector<8x128xf32>
    %278 = arith.mulf %272, %277 : vector<8x128xf32>
    %c0_133 = arith.constant 0 : index
    %c0_134 = arith.constant 0 : index
    %279 = vector.load %arg10[%c0_133, %c0_134] : memref<8x128xf32, #tpu.memory_space<vmem>>, vector<8x128xf32>
    tpu.vector_store %arg10[%c0_133, %c0_134], %276 {strides = array<i32>} : memref<8x128xf32, #tpu.memory_space<vmem>>, vector<8x128xf32>,
    %280 = arith.truncf %278 : vector<8x128xf32> to vector<8x128xbf16>
    %c0_135 = arith.constant 0 : index
    %c128_136 = arith.constant 128 : index
    %281 = vector.load %arg9[%c0_135, %c128_136] : memref<8x256xbf16, #tpu.memory_space<vmem>>, vector<8x128xbf16>
    tpu.vector_store %arg9[%c0_135, %c128_136], %280 {strides = array<i32>} : memref<8x256xbf16, #tpu.memory_space<vmem>>, vector<8x128xbf16>,
    %282 = vector.broadcast %243 : i32 to vector<8x1xi32>
    %283 = arith.cmpi eq, %5, %282 : vector<8x1xi32>
    %c0_137 = arith.constant 0 : index
    %c0_138 = arith.constant 0 : index
    %284 = vector.load %arg11[%c0_137, %c0_138] : memref<8x128xf32, #tpu.memory_space<vmem>>, vector<8x128xf32>
    %285 = vector.shape_cast %283 : vector<8x1xi1> to vector<8x1xi1>
    %286 = vector.broadcast %285 : vector<8x1xi1> to vector<8x128xi1>
    %287 = arith.select %286, %278, %284 : vector<8x128xi1>, vector<8x128xf32>
    %c0_139 = arith.constant 0 : index
    %c0_140 = arith.constant 0 : index
    %288 = vector.load %arg11[%c0_139, %c0_140] : memref<8x128xf32, #tpu.memory_space<vmem>>, vector<8x128xf32>
    tpu.vector_store %arg11[%c0_139, %c0_140], %287 {strides = array<i32>} : memref<8x128xf32, #tpu.memory_space<vmem>>, vector<8x128xf32>,
    %c6_i32 = arith.constant 6 : i32
    %c8_i32_141 = arith.constant 8 : i32
    %289 = arith.muli %arg1, %c8_i32_141 : i32
    %290 = arith.addi %289, %c6_i32 : i32
    %291 = arith.index_cast %c6_i32 : i32 to index
    %c0_142 = arith.constant 0 : index
    %c0_143 = arith.constant 0 : index
    %292 = vector.load %arg3[%291, %c0_142, %c0_143] : memref<8x8x128xbf16, #tpu.memory_space<vmem>>, vector<1x8x128xbf16>
    %293 = vector.shape_cast %292 : vector<1x8x128xbf16> to vector<8x128xbf16>
    %c0_144 = arith.constant 0 : index
    %c0_145 = arith.constant 0 : index
    %294 = vector.load %arg9[%c0_144, %c0_145] : memref<8x256xbf16, #tpu.memory_space<vmem>>, vector<8x128xbf16>
    tpu.vector_store %arg9[%c0_144, %c0_145], %293 {strides = array<i32>} : memref<8x256xbf16, #tpu.memory_space<vmem>>, vector<8x128xbf16>,
    %c0_146 = arith.constant 0 : index
    %c0_147 = arith.constant 0 : index
    %295 = vector.load %arg9[%c0_146, %c0_147] : memref<8x256xbf16, #tpu.memory_space<vmem>>, vector<8x256xbf16>
    %c0_148 = arith.constant 0 : index
    %c0_149 = arith.constant 0 : index
    %296 = vector.load %arg4[%c0_148, %c0_149] : memref<256x512xbf16, #tpu.memory_space<vmem>>, vector<256x512xbf16>
    %cst_150 = arith.constant dense<0.000000e+00> : vector<8x512xf32>
    %297 = tpu.matmul %295, %296, %cst_150 {dimension_numbers = #tpu.dot_dimension_numbers<[1], [0], [0], [1], [0, 0, 1, 1], [], []>} : vector<8x256xbf16>, vector<256x512xbf16>, vector<8x512xf32> -> vector<8x512xf32>
    %298 = vector.broadcast %6 : vector<1x512xf32> to vector<8x512xf32>
    %299 = arith.addf %297, %298 : vector<8x512xf32>
    %300 = vector.extract_strided_slice %299 {offsets = [0, 0], sizes = [8, 128], strides = [1, 1]} : vector<8x512xf32> to vector<8x128xf32>
    %301 = arith.negf %300 : vector<8x128xf32>
    %302 = math.exp %301 : vector<8x128xf32>
    %cst_151 = arith.constant 1.000000e+00 : f32
    %303 = vector.broadcast %cst_151 : f32 to vector<8x128xf32>
    %304 = arith.addf %303, %302 : vector<8x128xf32>
    %305 = arith.divf %303, %304 : vector<8x128xf32>
    %306 = vector.extract_strided_slice %299 {offsets = [0, 128], sizes = [8, 128], strides = [1, 1]} : vector<8x512xf32> to vector<8x128xf32>
    %307 = arith.negf %306 : vector<8x128xf32>
    %308 = math.exp %307 : vector<8x128xf32>
    %cst_152 = arith.constant 1.000000e+00 : f32
    %309 = vector.broadcast %cst_152 : f32 to vector<8x128xf32>
    %310 = arith.addf %309, %308 : vector<8x128xf32>
    %311 = arith.divf %309, %310 : vector<8x128xf32>
    %312 = vector.extract_strided_slice %299 {offsets = [0, 256], sizes = [8, 128], strides = [1, 1]} : vector<8x512xf32> to vector<8x128xf32>
    %313 = math.tanh %312 : vector<8x128xf32>
    %314 = vector.extract_strided_slice %299 {offsets = [0, 384], sizes = [8, 128], strides = [1, 1]} : vector<8x512xf32> to vector<8x128xf32>
    %315 = arith.negf %314 : vector<8x128xf32>
    %316 = math.exp %315 : vector<8x128xf32>
    %cst_153 = arith.constant 1.000000e+00 : f32
    %317 = vector.broadcast %cst_153 : f32 to vector<8x128xf32>
    %318 = arith.addf %317, %316 : vector<8x128xf32>
    %319 = arith.divf %317, %318 : vector<8x128xf32>
    %c0_154 = arith.constant 0 : index
    %c0_155 = arith.constant 0 : index
    %320 = vector.load %arg10[%c0_154, %c0_155] : memref<8x128xf32, #tpu.memory_space<vmem>>, vector<8x128xf32>
    %321 = arith.mulf %311, %320 : vector<8x128xf32>
    %322 = arith.mulf %305, %313 : vector<8x128xf32>
    %323 = arith.addf %321, %322 : vector<8x128xf32>
    %324 = math.tanh %323 : vector<8x128xf32>
    %325 = arith.mulf %319, %324 : vector<8x128xf32>
    %c0_156 = arith.constant 0 : index
    %c0_157 = arith.constant 0 : index
    %326 = vector.load %arg10[%c0_156, %c0_157] : memref<8x128xf32, #tpu.memory_space<vmem>>, vector<8x128xf32>
    tpu.vector_store %arg10[%c0_156, %c0_157], %323 {strides = array<i32>} : memref<8x128xf32, #tpu.memory_space<vmem>>, vector<8x128xf32>,
    %327 = arith.truncf %325 : vector<8x128xf32> to vector<8x128xbf16>
    %c0_158 = arith.constant 0 : index
    %c128_159 = arith.constant 128 : index
    %328 = vector.load %arg9[%c0_158, %c128_159] : memref<8x256xbf16, #tpu.memory_space<vmem>>, vector<8x128xbf16>
    tpu.vector_store %arg9[%c0_158, %c128_159], %327 {strides = array<i32>} : memref<8x256xbf16, #tpu.memory_space<vmem>>, vector<8x128xbf16>,
    %329 = vector.broadcast %290 : i32 to vector<8x1xi32>
    %330 = arith.cmpi eq, %5, %329 : vector<8x1xi32>
    %c0_160 = arith.constant 0 : index
    %c0_161 = arith.constant 0 : index
    %331 = vector.load %arg11[%c0_160, %c0_161] : memref<8x128xf32, #tpu.memory_space<vmem>>, vector<8x128xf32>
    %332 = vector.shape_cast %330 : vector<8x1xi1> to vector<8x1xi1>
    %333 = vector.broadcast %332 : vector<8x1xi1> to vector<8x128xi1>
    %334 = arith.select %333, %325, %331 : vector<8x128xi1>, vector<8x128xf32>
    %c0_162 = arith.constant 0 : index
    %c0_163 = arith.constant 0 : index
    %335 = vector.load %arg11[%c0_162, %c0_163] : memref<8x128xf32, #tpu.memory_space<vmem>>, vector<8x128xf32>
    tpu.vector_store %arg11[%c0_162, %c0_163], %334 {strides = array<i32>} : memref<8x128xf32, #tpu.memory_space<vmem>>, vector<8x128xf32>,
    %c7_i32 = arith.constant 7 : i32
    %c8_i32_164 = arith.constant 8 : i32
    %336 = arith.muli %arg1, %c8_i32_164 : i32
    %337 = arith.addi %336, %c7_i32 : i32
    %338 = arith.index_cast %c7_i32 : i32 to index
    %c0_165 = arith.constant 0 : index
    %c0_166 = arith.constant 0 : index
    %339 = vector.load %arg3[%338, %c0_165, %c0_166] : memref<8x8x128xbf16, #tpu.memory_space<vmem>>, vector<1x8x128xbf16>
    %340 = vector.shape_cast %339 : vector<1x8x128xbf16> to vector<8x128xbf16>
    %c0_167 = arith.constant 0 : index
    %c0_168 = arith.constant 0 : index
    %341 = vector.load %arg9[%c0_167, %c0_168] : memref<8x256xbf16, #tpu.memory_space<vmem>>, vector<8x128xbf16>
    tpu.vector_store %arg9[%c0_167, %c0_168], %340 {strides = array<i32>} : memref<8x256xbf16, #tpu.memory_space<vmem>>, vector<8x128xbf16>,
    %c0_169 = arith.constant 0 : index
    %c0_170 = arith.constant 0 : index
    %342 = vector.load %arg9[%c0_169, %c0_170] : memref<8x256xbf16, #tpu.memory_space<vmem>>, vector<8x256xbf16>
    %c0_171 = arith.constant 0 : index
    %c0_172 = arith.constant 0 : index
    %343 = vector.load %arg4[%c0_171, %c0_172] : memref<256x512xbf16, #tpu.memory_space<vmem>>, vector<256x512xbf16>
    %cst_173 = arith.constant dense<0.000000e+00> : vector<8x512xf32>
    %344 = tpu.matmul %342, %343, %cst_173 {dimension_numbers = #tpu.dot_dimension_numbers<[1], [0], [0], [1], [0, 0, 1, 1], [], []>} : vector<8x256xbf16>, vector<256x512xbf16>, vector<8x512xf32> -> vector<8x512xf32>
    %345 = vector.broadcast %6 : vector<1x512xf32> to vector<8x512xf32>
    %346 = arith.addf %344, %345 : vector<8x512xf32>
    %347 = vector.extract_strided_slice %346 {offsets = [0, 0], sizes = [8, 128], strides = [1, 1]} : vector<8x512xf32> to vector<8x128xf32>
    %348 = arith.negf %347 : vector<8x128xf32>
    %349 = math.exp %348 : vector<8x128xf32>
    %cst_174 = arith.constant 1.000000e+00 : f32
    %350 = vector.broadcast %cst_174 : f32 to vector<8x128xf32>
    %351 = arith.addf %350, %349 : vector<8x128xf32>
    %352 = arith.divf %350, %351 : vector<8x128xf32>
    %353 = vector.extract_strided_slice %346 {offsets = [0, 128], sizes = [8, 128], strides = [1, 1]} : vector<8x512xf32> to vector<8x128xf32>
    %354 = arith.negf %353 : vector<8x128xf32>
    %355 = math.exp %354 : vector<8x128xf32>
    %cst_175 = arith.constant 1.000000e+00 : f32
    %356 = vector.broadcast %cst_175 : f32 to vector<8x128xf32>
    %357 = arith.addf %356, %355 : vector<8x128xf32>
    %358 = arith.divf %356, %357 : vector<8x128xf32>
    %359 = vector.extract_strided_slice %346 {offsets = [0, 256], sizes = [8, 128], strides = [1, 1]} : vector<8x512xf32> to vector<8x128xf32>
    %360 = math.tanh %359 : vector<8x128xf32>
    %361 = vector.extract_strided_slice %346 {offsets = [0, 384], sizes = [8, 128], strides = [1, 1]} : vector<8x512xf32> to vector<8x128xf32>
    %362 = arith.negf %361 : vector<8x128xf32>
    %363 = math.exp %362 : vector<8x128xf32>
    %cst_176 = arith.constant 1.000000e+00 : f32
    %364 = vector.broadcast %cst_176 : f32 to vector<8x128xf32>
    %365 = arith.addf %364, %363 : vector<8x128xf32>
    %366 = arith.divf %364, %365 : vector<8x128xf32>
    %c0_177 = arith.constant 0 : index
    %c0_178 = arith.constant 0 : index
    %367 = vector.load %arg10[%c0_177, %c0_178] : memref<8x128xf32, #tpu.memory_space<vmem>>, vector<8x128xf32>
    %368 = arith.mulf %358, %367 : vector<8x128xf32>
    %369 = arith.mulf %352, %360 : vector<8x128xf32>
    %370 = arith.addf %368, %369 : vector<8x128xf32>
    %371 = math.tanh %370 : vector<8x128xf32>
    %372 = arith.mulf %366, %371 : vector<8x128xf32>
    %c0_179 = arith.constant 0 : index
    %c0_180 = arith.constant 0 : index
    %373 = vector.load %arg10[%c0_179, %c0_180] : memref<8x128xf32, #tpu.memory_space<vmem>>, vector<8x128xf32>
    tpu.vector_store %arg10[%c0_179, %c0_180], %370 {strides = array<i32>} : memref<8x128xf32, #tpu.memory_space<vmem>>, vector<8x128xf32>,
    %374 = arith.truncf %372 : vector<8x128xf32> to vector<8x128xbf16>
    %c0_181 = arith.constant 0 : index
    %c128_182 = arith.constant 128 : index
    %375 = vector.load %arg9[%c0_181, %c128_182] : memref<8x256xbf16, #tpu.memory_space<vmem>>, vector<8x128xbf16>
    tpu.vector_store %arg9[%c0_181, %c128_182], %374 {strides = array<i32>} : memref<8x256xbf16, #tpu.memory_space<vmem>>, vector<8x128xbf16>,
    %376 = vector.broadcast %337 : i32 to vector<8x1xi32>
    %377 = arith.cmpi eq, %5, %376 : vector<8x1xi32>
    %c0_183 = arith.constant 0 : index
    %c0_184 = arith.constant 0 : index
    %378 = vector.load %arg11[%c0_183, %c0_184] : memref<8x128xf32, #tpu.memory_space<vmem>>, vector<8x128xf32>
    %379 = vector.shape_cast %377 : vector<8x1xi1> to vector<8x1xi1>
    %380 = vector.broadcast %379 : vector<8x1xi1> to vector<8x128xi1>
    %381 = arith.select %380, %372, %378 : vector<8x128xi1>, vector<8x128xf32>
    %c0_185 = arith.constant 0 : index
    %c0_186 = arith.constant 0 : index
    %382 = vector.load %arg11[%c0_185, %c0_186] : memref<8x128xf32, #tpu.memory_space<vmem>>, vector<8x128xf32>
    tpu.vector_store %arg11[%c0_185, %c0_186], %381 {strides = array<i32>} : memref<8x128xf32, #tpu.memory_space<vmem>>, vector<8x128xf32>,
    %c8_i32_187 = arith.constant 8 : i32
    %c0_i32_188 = arith.constant 0 : i32
    %383 = arith.cmpi eq, %arg1, %c0_i32_188 : i32
    %384 = arith.extui %383 : i1 to i32
    %c0_i32_189 = arith.constant 0 : i32
    %385 = arith.cmpi ne, %384, %c0_i32_189 : i32
    scf.if %385 {
      %c0_190 = arith.constant 0 : index
      %c0_191 = arith.constant 0 : index
      %386 = vector.load %arg11[%c0_190, %c0_191] : memref<8x128xf32, #tpu.memory_space<vmem>>, vector<8x128xf32>
      %c0_192 = arith.constant 0 : index
      %c0_193 = arith.constant 0 : index
      %387 = vector.load %arg6[%c0_192, %c0_193] : memref<128x1xf32, #tpu.memory_space<vmem>>, vector<128x1xf32>
      %cst_194 = arith.constant dense<0.000000e+00> : vector<8x1xf32>
      %388 = tpu.matmul %386, %387, %cst_194 {dimension_numbers = #tpu.dot_dimension_numbers<[1], [0], [0], [1], [0, 0, 1, 1], [], []>} : vector<8x128xf32>, vector<128x1xf32>, vector<8x1xf32> -> vector<8x1xf32>
      %c0_195 = arith.constant 0 : index
      %c0_196 = arith.constant 0 : index
      %389 = vector.load %arg7[%c0_195, %c0_196] : memref<1x1xf32, #tpu.memory_space<vmem>>, vector<1x1xf32>
      %390 = vector.broadcast %389 : vector<1x1xf32> to vector<8x1xf32>
      %391 = arith.addf %388, %390 : vector<8x1xf32>
      %392 = arith.negf %391 : vector<8x1xf32>
      %393 = math.exp %392 : vector<8x1xf32>
      %cst_197 = arith.constant 1.000000e+00 : f32
      %394 = vector.broadcast %cst_197 : f32 to vector<8x1xf32>
      %395 = arith.addf %394, %393 : vector<8x1xf32>
      %396 = arith.divf %394, %395 : vector<8x1xf32>
      %c0_198 = arith.constant 0 : index
      %c0_199 = arith.constant 0 : index
      %397 = vector.load %arg8[%c0_198, %c0_199] : memref<8x1xf32, #tpu.memory_space<vmem>>, vector<8x1xf32>
      tpu.vector_store %arg8[%c0_198, %c0_199], %396 {strides = array<i32>} : memref<8x1xf32, #tpu.memory_space<vmem>>, vector<8x1xf32>,
    } else {
    }
    return
  }
  func.func @transform_0(%arg0: i32, %arg1: i32) -> (i32, i32) {
    %c0_i32 = arith.constant 0 : i32
    %c0_i32_0 = arith.constant 0 : i32
    return %arg0, %c0_i32 : i32, i32
  }
  func.func @transform_1(%arg0: i32, %arg1: i32) -> (i32, i32, i32) {
    %c0_i32 = arith.constant 0 : i32
    %c0_i32_0 = arith.constant 0 : i32
    return %arg1, %arg0, %c0_i32 : i32, i32, i32
  }
  func.func @transform_2(%arg0: i32, %arg1: i32) -> (i32, i32) {
    %c0_i32 = arith.constant 0 : i32
    %c0_i32_0 = arith.constant 0 : i32
    %c0_i32_1 = arith.constant 0 : i32
    return %c0_i32, %c0_i32_0 : i32, i32
  }
  func.func @transform_3(%arg0: i32, %arg1: i32) -> (i32, i32) {
    %c0_i32 = arith.constant 0 : i32
    %c0_i32_0 = arith.constant 0 : i32
    %c0_i32_1 = arith.constant 0 : i32
    return %c0_i32, %c0_i32_0 : i32, i32
  }
  func.func @transform_4(%arg0: i32, %arg1: i32) -> (i32, i32) {
    %c0_i32 = arith.constant 0 : i32
    %c0_i32_0 = arith.constant 0 : i32
    %c0_i32_1 = arith.constant 0 : i32
    return %c0_i32, %c0_i32_0 : i32, i32
  }
  func.func @transform_5(%arg0: i32, %arg1: i32) -> (i32, i32) {
    %c0_i32 = arith.constant 0 : i32
    %c0_i32_0 = arith.constant 0 : i32
    %c0_i32_1 = arith.constant 0 : i32
    return %c0_i32, %c0_i32_0 : i32, i32
  }
  func.func @transform_6(%arg0: i32, %arg1: i32) -> (i32, i32) {
    %c0_i32 = arith.constant 0 : i32
    %c0_i32_0 = arith.constant 0 : i32
    return %arg0, %c0_i32 : i32, i32
  }
}

</mosaic_0001>

<llo_original>
// kernel: tpu_custom_call.1
$region0: #{tpu_custom_call.1}
  #allocation0 [shape = 'u32[]', space=smem, size = 0x4, offset = 0x4, fixed_abs, tag = 'smem constant byte address 0x4 - core index']
  #allocation1 [shape = 'u32[144,128]{1,0:T(1,128)}', space=vmem, size = 0x12000, scoped, tag = 'internal scratch']
  #allocation2 [shape = 'bf16[8,256]{1,0:T(8,128)(2,1)}', space=vmem, size = 0x1000, scoped, tag = 'scratch operand']
  #allocation3 [shape = 'f32[8,128]{1,0:T(8,128)}', space=vmem, size = 0x1000, scoped, tag = 'scratch operand']
  #allocation4 [shape = 'f32[8,128]{1,0:T(8,128)}', space=vmem, size = 0x1000, scoped, tag = 'scratch operand']
  #allocation5 [shape = 'f32[1,1]{1,0:T(1,128)S(1)}', space=vmem, size = 0x200, scoped, tag = 'scoped memory for tpu_custom_call.1']
  %s0 = inlined_call_operand.vmem [shape: s32[8,1], index: 0, kind: input, shape index: {}]
  %s1 = inlined_call_operand.vmem [shape: bf16[8,8,128], index: 1, kind: input, shape index: {}]
  %s2 = inlined_call_operand.hbm [shape: bf16[256,512], index: 2, kind: input, shape index: {}]
  %s3 = inlined_call_operand.vmem [shape: f32[1,512], index: 3, kind: input, shape index: {}]
  %s4 = inlined_call_operand.vmem [shape: f32[128,1], index: 4, kind: input, shape index: {}]
  %s5 = inlined_call_operand.<no memory space> [shape: f32[1,1], index: 5, kind: input, shape index: {}]
  %s6 = inlined_call_operand.vmem [shape: f32[8,1], index: 6, kind: output, shape index: {}]
  %s7 = sld [smem:[#allocation0]]
  $region46: #{tpu_custom_call.1} parent=0
    _
  %s9 = ssub.s32 1, %s7
  %s10 = scalar_select 0, %s9, %s7
  %v11 = vstv %s5
  %12 = vst [vmem:[#allocation5] sm:$0x1] %v11
  $region1: #{tpu_custom_call.1} parent=0
    #allocation6 [shape = 'u8[262144]{0}', space=vmem, size = 0x40000, scoped, tag = 'input window, operand 2, single buffered']
    #allocation7 [shape = 's32[1]{0}', space=sflag, size = 0x4, scoped, tag = 'scoped memory for tpu_custom_call.1']
    %13 = vsyncpa [#allocation7], 0
    // Predicated region
    $region2: #{tpu_custom_call.1} parent=1 // pred_check
      _
    $region3: #{tpu_custom_call.1} parent=1 // pred_check_branch
      %15 = sbr.rel (0) target = $region5
    $region4: #{tpu_custom_call.1} parent=1 // pred_region
      _
    $region5: #{tpu_custom_call.1} parent=1 // pred_fallthru
      _
    // Predicated region
    $region6: #{tpu_custom_call.1} parent=1 // pred_check
      _
    $region7: #{tpu_custom_call.1} parent=1 // pred_check_branch
      %17 = sbr.rel (0) target = $region9
    $region8: #{tpu_custom_call.1} parent=1 // pred_region
      _
    $region9: #{tpu_custom_call.1} parent=1 // pred_fallthru
      _
    // Predicated region
    $region10: #{tpu_custom_call.1} parent=1 // pred_check
      _
    $region11: #{tpu_custom_call.1} parent=1 // pred_check_branch
      %19 = sbr.rel (0) target = $region13
    $region12: #{tpu_custom_call.1} parent=1 // pred_region
      %s21 = ssub.s32 8192, 8192
      %22 = vsyncadd [#allocation7], %s21
      %s23 = sshll.u32 [#allocation6], 4
      %s24 = int_to_ptr.vmem [resolvable:$true] %s23
      %29 = dma.hbm_to_vmem [thread:$0]  %s2, 8192, %s24, [#allocation7], 256, 256, 16
    $region13: #{tpu_custom_call.1} parent=1 // pred_fallthru
      _
    // Predicated region
    $region14: #{tpu_custom_call.1} parent=1 // pred_check
      _
    $region15: #{tpu_custom_call.1} parent=1 // pred_check_branch
      %31 = sbr.rel (0) target = $region17
    $region16: #{tpu_custom_call.1} parent=1 // pred_region
      _
    $region17: #{tpu_custom_call.1} parent=1 // pred_fallthru
      _
    // Predicated region
    $region18: #{tpu_custom_call.1} parent=1 // pred_check
      _
    $region19: #{tpu_custom_call.1} parent=1 // pred_check_branch
      %33 = sbr.rel (0) target = $region21
    $region20: #{tpu_custom_call.1} parent=1 // pred_region
      _
    $region21: #{tpu_custom_call.1} parent=1 // pred_fallthru
      _
    // Predicated region
    $region22: #{tpu_custom_call.1} parent=1 // pred_check
      _
    $region23: #{tpu_custom_call.1} parent=1 // pred_check_branch
      %35 = sbr.rel (0) target = $region25
    $region24: #{tpu_custom_call.1} parent=1 // pred_region
      _
    $region25: #{tpu_custom_call.1} parent=1 // pred_fallthru
      _
    // Predicated region
    $region26: #{tpu_custom_call.1} parent=1 // pred_check
      _
    $region27: #{tpu_custom_call.1} parent=1 // pred_check_branch
      %37 = sbr.rel (0) target = $region29
    $region28: #{tpu_custom_call.1} parent=1 // pred_region
      %38 = dma.done [#allocation7], 8192
    $region29: #{tpu_custom_call.1} parent=1 // pred_fallthru
      _
    %p40 = scmp.eq.s32.totalorder 0, 0
    // Predicated region
    $region30: #{tpu_custom_call.1} parent=1 // pred_check
      %p41 = pneg %p40
    $region31: #{tpu_custom_call.1} parent=1 // pred_check_branch
      %43 = sbr.rel (%p41) target = $region33
    $region32: #{tpu_custom_call.1} parent=1 // pred_region
      %44 = vst [vmem:[#allocation2] sm:$0xff] 0
      %45 = vst [vmem:[#allocation3] sm:$0xff] 0.0
      %46 = vst [vmem:[#allocation4] sm:$0xff] 0.0
    $region33: #{tpu_custom_call.1} parent=1 // pred_fallthru
      _
    %v47 = vld [vmem:[%s0] sm:$0xff]
    %v48 = vsub.s32 %v47, 1
    %v49 = vld [vmem:[%s3] sm:$0xf]
    %s50 = smul.u32 0, 8
    %v51 = vld [vmem:[%s1] sm:$0xf]
    %52 = vst [vmem:[#allocation2] sm:$0xf] %v51
    %v53 = vld [vmem:[#allocation2] sm:$0xff]
    %v54 = vld [vmem:[#allocation6] sm:$0xff]
    %v55 = vld [vmem:[#allocation6 + $0x8] sm:$0xff]
    %v56 = vld [vmem:[#allocation6 + $0x10] sm:$0xff]
    %v57 = vld [vmem:[#allocation6 + $0x18] sm:$0xff]
    %v58 = vld [vmem:[#allocation6 + $0x20] sm:$0xff]
    %v59 = vld [vmem:[#allocation6 + $0x28] sm:$0xff]
    %v60 = vld [vmem:[#allocation6 + $0x30] sm:$0xff]
    %v61 = vld [vmem:[#allocation6 + $0x38] sm:$0xff]
    %v62 = vld [vmem:[#allocation6 + $0x40] sm:$0xff]
    %v63 = vld [vmem:[#allocation6 + $0x48] sm:$0xff]
    %v64 = vld [vmem:[#allocation6 + $0x50] sm:$0xff]
    %v65 = vld [vmem:[#allocation6 + $0x58] sm:$0xff]
    %v66 = vld [vmem:[#allocation6 + $0x60] sm:$0xff]
    %v67 = vld [vmem:[#allocation6 + $0x68] sm:$0xff]
    %v68 = vld [vmem:[#allocation6 + $0x70] sm:$0xff]
    %v69 = vld [vmem:[#allocation6 + $0x78] sm:$0xff]
    %v70 = vld [vmem:[#allocation6 + $0x80] sm:$0xff]
    %v71 = vld [vmem:[#allocation6 + $0x88] sm:$0xff]
    %v72 = vld [vmem:[#allocation6 + $0x90] sm:$0xff]
    %v73 = vld [vmem:[#allocation6 + $0x98] sm:$0xff]
    %v74 = vld [vmem:[#allocation6 + $0xa0] sm:$0xff]
    %v75 = vld [vmem:[#allocation6 + $0xa8] sm:$0xff]
    %v76 = vld [vmem:[#allocation6 + $0xb0] sm:$0xff]
    %v77 = vld [vmem:[#allocation6 + $0xb8] sm:$0xff]
    %v78 = vld [vmem:[#allocation6 + $0xc0] sm:$0xff]
    %v79 = vld [vmem:[#allocation6 + $0xc8] sm:$0xff]
    %v80 = vld [vmem:[#allocation6 + $0xd0] sm:$0xff]
    %v81 = vld [vmem:[#allocation6 + $0xd8] sm:$0xff]
    %v82 = vld [vmem:[#allocation6 + $0xe0] sm:$0xff]
    %v83 = vld [vmem:[#allocation6 + $0xe8] sm:$0xff]
    %v84 = vld [vmem:[#allocation6 + $0xf0] sm:$0xff]
    %v85 = vld [vmem:[#allocation6 + $0xf8] sm:$0xff]
    %v86 = vld [vmem:[#allocation6 + $0x100] sm:$0xff]
    %v87 = vld [vmem:[#allocation6 + $0x108] sm:$0xff]
    %v88 = vld [vmem:[#allocation6 + $0x110] sm:$0xff]
    %v89 = vld [vmem:[#allocation6 + $0x118] sm:$0xff]
    %v90 = vld [vmem:[#allocation6 + $0x120] sm:$0xff]
    %v91 = vld [vmem:[#allocation6 + $0x128] sm:$0xff]
    %v92 = vld [vmem:[#allocation6 + $0x130] sm:$0xff]
    %v93 = vld [vmem:[#allocation6 + $0x138] sm:$0xff]
    %v94 = vld [vmem:[#allocation6 + $0x140] sm:$0xff]
    %v95 = vld [vmem:[#allocation6 + $0x148] sm:$0xff]
    %v96 = vld [vmem:[#allocation6 + $0x150] sm:$0xff]
    %v97 = vld [vmem:[#allocation6 + $0x158] sm:$0xff]
    %v98 = vld [vmem:[#allocation6 + $0x160] sm:$0xff]
    %v99 = vld [vmem:[#allocation6 + $0x168] sm:$0xff]
    %v100 = vld [vmem:[#allocation6 + $0x170] sm:$0xff]
    %v101 = vld [vmem:[#allocation6 + $0x178] sm:$0xff]
    %v102 = vld [vmem:[#allocation6 + $0x180] sm:$0xff]
    %v103 = vld [vmem:[#allocation6 + $0x188] sm:$0xff]
    %v104 = vld [vmem:[#allocation6 + $0x190] sm:$0xff]
    %v105 = vld [vmem:[#allocation6 + $0x198] sm:$0xff]
    %v106 = vld [vmem:[#allocation6 + $0x1a0] sm:$0xff]
    %v107 = vld [vmem:[#allocation6 + $0x1a8] sm:$0xff]
    %v108 = vld [vmem:[#allocation6 + $0x1b0] sm:$0xff]
    %v109 = vld [vmem:[#allocation6 + $0x1b8] sm:$0xff]
    %v110 = vld [vmem:[#allocation6 + $0x1c0] sm:$0xff]
    %v111 = vld [vmem:[#allocation6 + $0x1c8] sm:$0xff]
    %v112 = vld [vmem:[#allocation6 + $0x1d0] sm:$0xff]
    %v113 = vld [vmem:[#allocation6 + $0x1d8] sm:$0xff]
    %v114 = vld [vmem:[#allocation6 + $0x1e0] sm:$0xff]
    %v115 = vld [vmem:[#allocation6 + $0x1e8] sm:$0xff]
    %v116 = vld [vmem:[#allocation6 + $0x1f0] sm:$0xff]
    %v117 = vld [vmem:[#allocation6 + $0x1f8] sm:$0xff]
    %v119 = vlaneseq
    %v120 = vshrl.u32 %v119, 7
    %v121 = vsub.s32 0, %v120
    %v122 = vrot.slane %v49, %v121
    %v123 = vlaneseq
    %v124 = vshrl.u32 %v123, 7
    %v125 = vsub.s32 1, %v124
    %v126 = vrot.slane %v49, %v125
    %v127 = vlaneseq
    %v128 = vshrl.u32 %v127, 7
    %v129 = vsub.s32 2, %v128
    %v130 = vrot.slane %v49, %v129
    %v131 = vlaneseq
    %v132 = vshrl.u32 %v131, 7
    %v133 = vsub.s32 3, %v132
    %v134 = vrot.slane %v49, %v133
    %v140 = vunpack.c.l.b16 %v53
    %v141 = vunpack.c.h.b16 %v53
    %v142 = vpack.c.b16 %v140, %v140
    %v143 = vpack.c.b16 %v141, %v141
    %v210 = vunpack.c.l.b16 %v54
    %v211 = vunpack.c.h.b16 %v54
    %v212 = vunpack.c.l.b16 %v55
    %v213 = vunpack.c.h.b16 %v55
    %v214 = vunpack.c.l.b16 %v56
    %v215 = vunpack.c.h.b16 %v56
    %v216 = vunpack.c.l.b16 %v57
    %v217 = vunpack.c.h.b16 %v57
    %v218 = vunpack.c.l.b16 %v58
    %v219 = vunpack.c.h.b16 %v58
    %v220 = vunpack.c.l.b16 %v59
    %v221 = vunpack.c.h.b16 %v59
    %v222 = vunpack.c.l.b16 %v60
    %v223 = vunpack.c.h.b16 %v60
    %v224 = vunpack.c.l.b16 %v61
    %v225 = vunpack.c.h.b16 %v61
    %v226 = vunpack.c.l.b16 %v62
    %v227 = vunpack.c.h.b16 %v62
    %v228 = vunpack.c.l.b16 %v63
    %v229 = vunpack.c.h.b16 %v63
    %v230 = vunpack.c.l.b16 %v64
    %v231 = vunpack.c.h.b16 %v64
    %v232 = vunpack.c.l.b16 %v65
    %v233 = vunpack.c.h.b16 %v65
    %v234 = vunpack.c.l.b16 %v66
    %v235 = vunpack.c.h.b16 %v66
    %v236 = vunpack.c.l.b16 %v67
    %v237 = vunpack.c.h.b16 %v67
    %v238 = vunpack.c.l.b16 %v68
    %v239 = vunpack.c.h.b16 %v68
    %v240 = vunpack.c.l.b16 %v69
    %v241 = vunpack.c.h.b16 %v69
    %v242 = vunpack.c.l.b16 %v70
    %v243 = vunpack.c.h.b16 %v70
    %v244 = vunpack.c.l.b16 %v71
    %v245 = vunpack.c.h.b16 %v71
    %v246 = vunpack.c.l.b16 %v72
    %v247 = vunpack.c.h.b16 %v72
    %v248 = vunpack.c.l.b16 %v73
    %v249 = vunpack.c.h.b16 %v73
    %v250 = vunpack.c.l.b16 %v74
    %v251 = vunpack.c.h.b16 %v74
    %v252 = vunpack.c.l.b16 %v75
    %v253 = vunpack.c.h.b16 %v75
    %v254 = vunpack.c.l.b16 %v76
    %v255 = vunpack.c.h.b16 %v76
    %v256 = vunpack.c.l.b16 %v77
    %v257 = vunpack.c.h.b16 %v77
    %v258 = vunpack.c.l.b16 %v78
    %v259 = vunpack.c.h.b16 %v78
    %v260 = vunpack.c.l.b16 %v79
    %v261 = vunpack.c.h.b16 %v79
    %v262 = vunpack.c.l.b16 %v80
    %v263 = vunpack.c.h.b16 %v80
    %v264 = vunpack.c.l.b16 %v81
    %v265 = vunpack.c.h.b16 %v81
    %v266 = vunpack.c.l.b16 %v82
    %v267 = vunpack.c.h.b16 %v82
    %v268 = vunpack.c.l.b16 %v83
    %v269 = vunpack.c.h.b16 %v83
    %v270 = vunpack.c.l.b16 %v84
    %v271 = vunpack.c.h.b16 %v84
    %v272 = vunpack.c.l.b16 %v85
    %v273 = vunpack.c.h.b16 %v85
    %v274 = vunpack.c.l.b16 %v86
    %v275 = vunpack.c.h.b16 %v86
    %v276 = vunpack.c.l.b16 %v87
    %v277 = vunpack.c.h.b16 %v87
    %v278 = vunpack.c.l.b16 %v88
    %v279 = vunpack.c.h.b16 %v88
    %v280 = vunpack.c.l.b16 %v89
    %v281 = vunpack.c.h.b16 %v89
    %v282 = vunpack.c.l.b16 %v90
    %v283 = vunpack.c.h.b16 %v90
    %v284 = vunpack.c.l.b16 %v91
    %v285 = vunpack.c.h.b16 %v91
    %v286 = vunpack.c.l.b16 %v92
    %v287 = vunpack.c.h.b16 %v92
    %v288 = vunpack.c.l.b16 %v93
    %v289 = vunpack.c.h.b16 %v93
    %v290 = vunpack.c.l.b16 %v94
    %v291 = vunpack.c.h.b16 %v94
    %v292 = vunpack.c.l.b16 %v95
    %v293 = vunpack.c.h.b16 %v95
    %v294 = vunpack.c.l.b16 %v96
    %v295 = vunpack.c.h.b16 %v96
    %v296 = vunpack.c.l.b16 %v97
    %v297 = vunpack.c.h.b16 %v97
    %v298 = vunpack.c.l.b16 %v98
    %v299 = vunpack.c.h.b16 %v98
    %v300 = vunpack.c.l.b16 %v99
    %v301 = vunpack.c.h.b16 %v99
    %v302 = vunpack.c.l.b16 %v100
    %v303 = vunpack.c.h.b16 %v100
    %v304 = vunpack.c.l.b16 %v101
    %v305 = vunpack.c.h.b16 %v101
    %v306 = vunpack.c.l.b16 %v102
    %v307 = vunpack.c.h.b16 %v102
    %v308 = vunpack.c.l.b16 %v103
    %v309 = vunpack.c.h.b16 %v103
    %v310 = vunpack.c.l.b16 %v104
    %v311 = vunpack.c.h.b16 %v104
    %v312 = vunpack.c.l.b16 %v105
    %v313 = vunpack.c.h.b16 %v105
    %v314 = vunpack.c.l.b16 %v106
    %v315 = vunpack.c.h.b16 %v106
    %v316 = vunpack.c.l.b16 %v107
    %v317 = vunpack.c.h.b16 %v107
    %v318 = vunpack.c.l.b16 %v108
    %v319 = vunpack.c.h.b16 %v108
    %v320 = vunpack.c.l.b16 %v109
    %v321 = vunpack.c.h.b16 %v109
    %v322 = vunpack.c.l.b16 %v110
    %v323 = vunpack.c.h.b16 %v110
    %v324 = vunpack.c.l.b16 %v111
    %v325 = vunpack.c.h.b16 %v111
    %v326 = vunpack.c.l.b16 %v112
    %v327 = vunpack.c.h.b16 %v112
    %v328 = vunpack.c.l.b16 %v113
    %v329 = vunpack.c.h.b16 %v113
    %v330 = vunpack.c.l.b16 %v114
    %v331 = vunpack.c.h.b16 %v114
    %v332 = vunpack.c.l.b16 %v115
    %v333 = vunpack.c.h.b16 %v115
    %v334 = vunpack.c.l.b16 %v116
    %v335 = vunpack.c.h.b16 %v116
    %v336 = vunpack.c.l.b16 %v117
    %v337 = vunpack.c.h.b16 %v117
    %v338 = vpack.c.b16 %v214, %v210
    %v339 = vpack.c.b16 %v215, %v211
    %v340 = vpack.c.b16 %v216, %v212
    %v341 = vpack.c.b16 %v217, %v213
    %v342 = vpack.c.b16 %v222, %v218
    %v343 = vpack.c.b16 %v223, %v219
    %v344 = vpack.c.b16 %v224, %v220
    %v345 = vpack.c.b16 %v225, %v221
    %v346 = vpack.c.b16 %v230, %v226
    %v347 = vpack.c.b16 %v231, %v227
    %v348 = vpack.c.b16 %v232, %v228
    %v349 = vpack.c.b16 %v233, %v229
    %v350 = vpack.c.b16 %v238, %v234
    %v351 = vpack.c.b16 %v239, %v235
    %v352 = vpack.c.b16 %v240, %v236
    %v353 = vpack.c.b16 %v241, %v237
    %v354 = vpack.c.b16 %v246, %v242
    %v355 = vpack.c.b16 %v247, %v243
    %v356 = vpack.c.b16 %v248, %v244
    %v357 = vpack.c.b16 %v249, %v245
    %v358 = vpack.c.b16 %v254, %v250
    %v359 = vpack.c.b16 %v255, %v251
    %v360 = vpack.c.b16 %v256, %v252
    %v361 = vpack.c.b16 %v257, %v253
    %v362 = vpack.c.b16 %v262, %v258
    %v363 = vpack.c.b16 %v263, %v259
    %v364 = vpack.c.b16 %v264, %v260
    %v365 = vpack.c.b16 %v265, %v261
    %v366 = vpack.c.b16 %v270, %v266
    %v367 = vpack.c.b16 %v271, %v267
    %v368 = vpack.c.b16 %v272, %v268
    %v369 = vpack.c.b16 %v273, %v269
    %v370 = vpack.c.b16 %v278, %v274
    %v371 = vpack.c.b16 %v279, %v275
    %v372 = vpack.c.b16 %v280, %v276
    %v373 = vpack.c.b16 %v281, %v277
    %v374 = vpack.c.b16 %v286, %v282
    %v375 = vpack.c.b16 %v287, %v283
    %v376 = vpack.c.b16 %v288, %v284
    %v377 = vpack.c.b16 %v289, %v285
    %v378 = vpack.c.b16 %v294, %v290
    %v379 = vpack.c.b16 %v295, %v291
    %v380 = vpack.c.b16 %v296, %v292
    %v381 = vpack.c.b16 %v297, %v293
    %v382 = vpack.c.b16 %v302, %v298
    %v383 = vpack.c.b16 %v303, %v299
    %v384 = vpack.c.b16 %v304, %v300
    %v385 = vpack.c.b16 %v305, %v301
    %v386 = vpack.c.b16 %v310, %v306
    %v387 = vpack.c.b16 %v311, %v307
    %v388 = vpack.c.b16 %v312, %v308
    %v389 = vpack.c.b16 %v313, %v309
    %v390 = vpack.c.b16 %v318, %v314
    %v391 = vpack.c.b16 %v319, %v315
    %v392 = vpack.c.b16 %v320, %v316
    %v393 = vpack.c.b16 %v321, %v317
    %v394 = vpack.c.b16 %v326, %v322
    %v395 = vpack.c.b16 %v327, %v323
    %v396 = vpack.c.b16 %v328, %v324
    %v397 = vpack.c.b16 %v329, %v325
    %v398 = vpack.c.b16 %v334, %v330
    %v399 = vpack.c.b16 %v335, %v331
    %v400 = vpack.c.b16 %v336, %v332
    %v401 = vpack.c.b16 %v337, %v333
    %466 = vmatprep.subr.bf16.mxu0 %v367
    %467 = vmatpush1.bf16.msra.mxu0 %v366
    %468 = vmatprep.subr.bf16.mxu0 %v363
    %469 = vmatpush1.bf16.msra.mxu0 %v362
    %470 = vmatprep.subr.bf16.mxu0 %v359
    %471 = vmatpush1.bf16.msra.mxu0 %v358
    %472 = vmatprep.subr.bf16.mxu0 %v355
    %473 = vmatpush1.bf16.msra.mxu0 %v354
    %474 = vmatprep.subr.bf16.mxu0 %v351
    %475 = vmatpush1.bf16.msra.mxu0 %v350
    %476 = vmatprep.subr.bf16.mxu0 %v347
    %477 = vmatpush1.bf16.msra.mxu0 %v346
    %478 = vmatprep.subr.bf16.mxu0 %v343
    %479 = vmatpush1.bf16.msra.mxu0 %v342
    %480 = vmatprep.subr.bf16.mxu0 %v339
    %481 = vmatpush1.bf16.msra.mxu0 %v338
    %482 = vmatprep.subr.bf16.mxu0 %v399
    %483 = vmatpush2.bf16.msra.mxu0 %v398
    %484 = vmatprep.subr.bf16.mxu0 %v395
    %485 = vmatpush2.bf16.msra.mxu0 %v394
    %486 = vmatprep.subr.bf16.mxu0 %v391
    %487 = vmatpush2.bf16.msra.mxu0 %v390
    %488 = vmatprep.subr.bf16.mxu0 %v387
    %489 = vmatpush2.bf16.msra.mxu0 %v386
    %490 = vmatprep.subr.bf16.mxu0 %v383
    %491 = vmatpush2.bf16.msra.mxu0 %v382
    %492 = vmatprep.subr.bf16.mxu0 %v379
    %493 = vmatpush2.bf16.msra.mxu0 %v378
    %494 = vmatprep.subr.bf16.mxu0 %v375
    %495 = vmatpush2.bf16.msra.mxu0 %v374
    %496 = vmatprep.subr.bf16.mxu0 %v371
    %497 = vmatpush2.bf16.msra.mxu0 %v370
    %498 = vmatprep.mubr.bf16.mxu0 %v143
    %499 = vmatmul.mubr.bf16.gmra.mxu0 %v142
    %v500 = vpop.f32.mrf.mxu0
    %v501 = vadd.f32 %v122, %v500
    %v502 = vpop.f32.mrf.mxu0
    %v503 = vadd.f32 %v126, %v502
    %v504 = vpop.f32.mrf.mxu0
    %v505 = vpop.f32.mrf.mxu0
    %506 = vdwg.mxu0
    %507 = vmatprep.subr.bf16.mxu0 %v369
    %508 = vmatpush1.bf16.msra.mxu0 %v368
    %509 = vmatprep.subr.bf16.mxu0 %v365
    %510 = vmatpush1.bf16.msra.mxu0 %v364
    %511 = vmatprep.subr.bf16.mxu0 %v361
    %512 = vmatpush1.bf16.msra.mxu0 %v360
    %513 = vmatprep.subr.bf16.mxu0 %v357
    %514 = vmatpush1.bf16.msra.mxu0 %v356
    %515 = vmatprep.subr.bf16.mxu0 %v353
    %516 = vmatpush1.bf16.msra.mxu0 %v352
    %517 = vmatprep.subr.bf16.mxu0 %v349
    %518 = vmatpush1.bf16.msra.mxu0 %v348
    %519 = vmatprep.subr.bf16.mxu0 %v345
    %520 = vmatpush1.bf16.msra.mxu0 %v344
    %521 = vmatprep.subr.bf16.mxu0 %v341
    %522 = vmatpush1.bf16.msra.mxu0 %v340
    %523 = vmatprep.subr.bf16.mxu0 %v401
    %524 = vmatpush2.bf16.msra.mxu0 %v400
    %525 = vmatprep.subr.bf16.mxu0 %v397
    %526 = vmatpush2.bf16.msra.mxu0 %v396
    %527 = vmatprep.subr.bf16.mxu0 %v393
    %528 = vmatpush2.bf16.msra.mxu0 %v392
    %529 = vmatprep.subr.bf16.mxu0 %v389
    %530 = vmatpush2.bf16.msra.mxu0 %v388
    %531 = vmatprep.subr.bf16.mxu0 %v385
    %532 = vmatpush2.bf16.msra.mxu0 %v384
    %533 = vmatprep.subr.bf16.mxu0 %v381
    %534 = vmatpush2.bf16.msra.mxu0 %v380
    %535 = vmatprep.subr.bf16.mxu0 %v377
    %536 = vmatpush2.bf16.msra.mxu0 %v376
    %537 = vmatprep.subr.bf16.mxu0 %v373
    %538 = vmatpush2.bf16.msra.mxu0 %v372
    %539 = vmatprep.mubr.bf16.mxu0 %v143
    %540 = vmatmul.mubr.bf16.gmra.mxu0 %v142
    %v541 = vpop.f32.mrf.mxu0
    %v542 = vadd.f32 %v130, %v541
    %v543 = vpop.f32.mrf.mxu0
    %v544 = vadd.f32 %v134, %v543
    %v545 = vpop.f32.mrf.mxu0
    %v546 = vpop.f32.mrf.mxu0
    %547 = vdwg.mxu0
    %v548 = vxor.u32 %v501, 2147483648
    %v549 = vmul.f32 %v548, 1.442695
    %v550 = vpow.pop %v549
    %v551 = vadd.f32 %v550, 1.0
    %v552 = vrcp.pop %v551
    %v553 = vmul.f32 1.0, %v552
    %v554 = vxor.u32 %v503, 2147483648
    %v555 = vmul.f32 %v554, 1.442695
    %v556 = vpow.pop %v555
    %v557 = vadd.f32 %v556, 1.0
    %v558 = vrcp.pop %v557
    %v559 = vmul.f32 1.0, %v558
    %v560 = vtanh.pop %v542
    %v561 = vxor.u32 %v544, 2147483648
    %v562 = vmul.f32 %v561, 1.442695
    %v563 = vpow.pop %v562
    %v564 = vadd.f32 %v563, 1.0
    %v565 = vrcp.pop %v564
    %v566 = vmul.f32 1.0, %v565
    %v567 = vld [vmem:[#allocation3] sm:$0xff]
    %v568 = vmul.f32 %v559, %v567
    %v569 = vmul.f32 %v553, %v560
    %v570 = vadd.f32 %v568, %v569
    %v571 = vtanh.pop %v570
    %v572 = vmul.f32 %v566, %v571
    %573 = vst [vmem:[#allocation3] sm:$0xff] %v570
    %v574 = vpack.c.bf16 %v572, %v572
    %575 = vst [vmem:[#allocation2 + $0x4] sm:$0xf] %v574
    %v576 = vstv %s50
    %vm577 = vcmp.eq.s32.totalorder %v48, %v576
    %v578 = vld [vmem:[#allocation4] sm:$0xff]
    %v579 = vsel %vm577, 1, 0
    %580 = vset.pattern.permute.xlu0 0
    %581 = vperm.xlu0 %580, %v579
    %v582 = vpop.permute.xlu0 %581
    %vm583 = vcmp.eq.s32.totalorder %v582, 1
    %v584 = vsel %vm583, %v572, %v578
    %585 = vst [vmem:[#allocation4] sm:$0xff] %v584
    %s586 = sadd.s32 %s50, 1
    %s587 = scalar_lea.vmem %s1, 4
    %v588 = vld [vmem:[%s587] sm:$0xf]
    %589 = vst [vmem:[#allocation2] sm:$0xf] %v588
    %v590 = vld [vmem:[#allocation2] sm:$0xff]
    %v591 = vld [vmem:[#allocation6] sm:$0xff]
    %v592 = vld [vmem:[#allocation6 + $0x8] sm:$0xff]
    %v593 = vld [vmem:[#allocation6 + $0x10] sm:$0xff]
    %v594 = vld [vmem:[#allocation6 + $0x18] sm:$0xff]
    %v595 = vld [vmem:[#allocation6 + $0x20] sm:$0xff]
    %v596 = vld [vmem:[#allocation6 + $0x28] sm:$0xff]
    %v597 = vld [vmem:[#allocation6 + $0x30] sm:$0xff]
    %v598 = vld [vmem:[#allocation6 + $0x38] sm:$0xff]
    %v599 = vld [vmem:[#allocation6 + $0x40] sm:$0xff]
    %v600 = vld [vmem:[#allocation6 + $0x48] sm:$0xff]
    %v601 = vld [vmem:[#allocation6 + $0x50] sm:$0xff]
    %v602 = vld [vmem:[#allocation6 + $0x58] sm:$0xff]
    %v603 = vld [vmem:[#allocation6 + $0x60] sm:$0xff]
    %v604 = vld [vmem:[#allocation6 + $0x68] sm:$0xff]
    %v605 = vld [vmem:[#allocation6 + $0x70] sm:$0xff]
    %v606 = vld [vmem:[#allocation6 + $0x78] sm:$0xff]
    %v607 = vld [vmem:[#allocation6 + $0x80] sm:$0xff]
    %v608 = vld [vmem:[#allocation6 + $0x88] sm:$0xff]
    %v609 = vld [vmem:[#allocation6 + $0x90] sm:$0xff]
    %v610 = vld [vmem:[#allocation6 + $0x98] sm:$0xff]
    %v611 = vld [vmem:[#allocation6 + $0xa0] sm:$0xff]
    %v612 = vld [vmem:[#allocation6 + $0xa8] sm:$0xff]
    %v613 = vld [vmem:[#allocation6 + $0xb0] sm:$0xff]
    %v614 = vld [vmem:[#allocation6 + $0xb8] sm:$0xff]
    %v615 = vld [vmem:[#allocation6 + $0xc0] sm:$0xff]
    %v616 = vld [vmem:[#allocation6 + $0xc8] sm:$0xff]
    %v617 = vld [vmem:[#allocation6 + $0xd0] sm:$0xff]
    %v618 = vld [vmem:[#allocation6 + $0xd8] sm:$0xff]
    %v619 = vld [vmem:[#allocation6 + $0xe0] sm:$0xff]
    %v620 = vld [vmem:[#allocation6 + $0xe8] sm:$0xff]
    %v621 = vld [vmem:[#allocation6 + $0xf0] sm:$0xff]
    %v622 = vld [vmem:[#allocation6 + $0xf8] sm:$0xff]
    %v623 = vld [vmem:[#allocation6 + $0x100] sm:$0xff]
    %v624 = vld [vmem:[#allocation6 + $0x108] sm:$0xff]
    %v625 = vld [vmem:[#allocation6 + $0x110] sm:$0xff]
    %v626 = vld [vmem:[#allocation6 + $0x118] sm:$0xff]
    %v627 = vld [vmem:[#allocation6 + $0x120] sm:$0xff]
    %v628 = vld [vmem:[#allocation6 + $0x128] sm:$0xff]
    %v629 = vld [vmem:[#allocation6 + $0x130] sm:$0xff]
    %v630 = vld [vmem:[#allocation6 + $0x138] sm:$0xff]
    %v631 = vld [vmem:[#allocation6 + $0x140] sm:$0xff]
    %v632 = vld [vmem:[#allocation6 + $0x148] sm:$0xff]
    %v633 = vld [vmem:[#allocation6 + $0x150] sm:$0xff]
    %v634 = vld [vmem:[#allocation6 + $0x158] sm:$0xff]
    %v635 = vld [vmem:[#allocation6 + $0x160] sm:$0xff]
    %v636 = vld [vmem:[#allocation6 + $0x168] sm:$0xff]
    %v637 = vld [vmem:[#allocation6 + $0x170] sm:$0xff]
    %v638 = vld [vmem:[#allocation6 + $0x178] sm:$0xff]
    %v639 = vld [vmem:[#allocation6 + $0x180] sm:$0xff]
    %v640 = vld [vmem:[#allocation6 + $0x188] sm:$0xff]
    %v641 = vld [vmem:[#allocation6 + $0x190] sm:$0xff]
    %v642 = vld [vmem:[#allocation6 + $0x198] sm:$0xff]
    %v643 = vld [vmem:[#allocation6 + $0x1a0] sm:$0xff]
    %v644 = vld [vmem:[#allocation6 + $0x1a8] sm:$0xff]
    %v645 = vld [vmem:[#allocation6 + $0x1b0] sm:$0xff]
    %v646 = vld [vmem:[#allocation6 + $0x1b8] sm:$0xff]
    %v647 = vld [vmem:[#allocation6 + $0x1c0] sm:$0xff]
    %v648 = vld [vmem:[#allocation6 + $0x1c8] sm:$0xff]
    %v649 = vld [vmem:[#allocation6 + $0x1d0] sm:$0xff]
    %v650 = vld [vmem:[#allocation6 + $0x1d8] sm:$0xff]
    %v651 = vld [vmem:[#allocation6 + $0x1e0] sm:$0xff]
    %v652 = vld [vmem:[#allocation6 + $0x1e8] sm:$0xff]
    %v653 = vld [vmem:[#allocation6 + $0x1f0] sm:$0xff]
    %v654 = vld [vmem:[#allocation6 + $0x1f8] sm:$0xff]
    %v656 = vunpack.c.l.b16 %v590
    %v657 = vunpack.c.h.b16 %v590
    %v658 = vpack.c.b16 %v656, %v656
    %v659 = vpack.c.b16 %v657, %v657
    %v726 = vunpack.c.l.b16 %v591
    %v727 = vunpack.c.h.b16 %v591
    %v728 = vunpack.c.l.b16 %v592
    %v729 = vunpack.c.h.b16 %v592
    %v730 = vunpack.c.l.b16 %v593
    %v731 = vunpack.c.h.b16 %v593
    %v732 = vunpack.c.l.b16 %v594
    %v733 = vunpack.c.h.b16 %v594
    %v734 = vunpack.c.l.b16 %v595
    %v735 = vunpack.c.h.b16 %v595
    %v736 = vunpack.c.l.b16 %v596
    %v737 = vunpack.c.h.b16 %v596
    %v738 = vunpack.c.l.b16 %v597
    %v739 = vunpack.c.h.b16 %v597
    %v740 = vunpack.c.l.b16 %v598
    %v741 = vunpack.c.h.b16 %v598
    %v742 = vunpack.c.l.b16 %v599
    %v743 = vunpack.c.h.b16 %v599
    %v744 = vunpack.c.l.b16 %v600
    %v745 = vunpack.c.h.b16 %v600
    %v746 = vunpack.c.l.b16 %v601
    %v747 = vunpack.c.h.b16 %v601
    %v748 = vunpack.c.l.b16 %v602
    %v749 = vunpack.c.h.b16 %v602
    %v750 = vunpack.c.l.b16 %v603
    %v751 = vunpack.c.h.b16 %v603
    %v752 = vunpack.c.l.b16 %v604
    %v753 = vunpack.c.h.b16 %v604
    %v754 = vunpack.c.l.b16 %v605
    %v755 = vunpack.c.h.b16 %v605
    %v756 = vunpack.c.l.b16 %v606
    %v757 = vunpack.c.h.b16 %v606
    %v758 = vunpack.c.l.b16 %v607
    %v759 = vunpack.c.h.b16 %v607
    %v760 = vunpack.c.l.b16 %v608
    %v761 = vunpack.c.h.b16 %v608
    %v762 = vunpack.c.l.b16 %v609
    %v763 = vunpack.c.h.b16 %v609
    %v764 = vunpack.c.l.b16 %v610
    %v765 = vunpack.c.h.b16 %v610
    %v766 = vunpack.c.l.b16 %v611
    %v767 = vunpack.c.h.b16 %v611
    %v768 = vunpack.c.l.b16 %v612
    %v769 = vunpack.c.h.b16 %v612
    %v770 = vunpack.c.l.b16 %v613
    %v771 = vunpack.c.h.b16 %v613
    %v772 = vunpack.c.l.b16 %v614
    %v773 = vunpack.c.h.b16 %v614
    %v774 = vunpack.c.l.b16 %v615
    %v775 = vunpack.c.h.b16 %v615
    %v776 = vunpack.c.l.b16 %v616
    %v777 = vunpack.c.h.b16 %v616
    %v778 = vunpack.c.l.b16 %v617
    %v779 = vunpack.c.h.b16 %v617
    %v780 = vunpack.c.l.b16 %v618
    %v781 = vunpack.c.h.b16 %v618
    %v782 = vunpack.c.l.b16 %v619
    %v783 = vunpack.c.h.b16 %v619
    %v784 = vunpack.c.l.b16 %v620
    %v785 = vunpack.c.h.b16 %v620
    %v786 = vunpack.c.l.b16 %v621
    %v787 = vunpack.c.h.b16 %v621
    %v788 = vunpack.c.l.b16 %v622
    %v789 = vunpack.c.h.b16 %v622
    %v790 = vunpack.c.l.b16 %v623
    %v791 = vunpack.c.h.b16 %v623
    %v792 = vunpack.c.l.b16 %v624
    %v793 = vunpack.c.h.b16 %v624
    %v794 = vunpack.c.l.b16 %v625
    %v795 = vunpack.c.h.b16 %v625
    %v796 = vunpack.c.l.b16 %v626
    %v797 = vunpack.c.h.b16 %v626
    %v798 = vunpack.c.l.b16 %v627
    %v799 = vunpack.c.h.b16 %v627
    %v800 = vunpack.c.l.b16 %v628
    %v801 = vunpack.c.h.b16 %v628
    %v802 = vunpack.c.l.b16 %v629
    %v803 = vunpack.c.h.b16 %v629
    %v804 = vunpack.c.l.b16 %v630
    %v805 = vunpack.c.h.b16 %v630
    %v806 = vunpack.c.l.b16 %v631
    %v807 = vunpack.c.h.b16 %v631
    %v808 = vunpack.c.l.b16 %v632
    %v809 = vunpack.c.h.b16 %v632
    %v810 = vunpack.c.l.b16 %v633
    %v811 = vunpack.c.h.b16 %v633
    %v812 = vunpack.c.l.b16 %v634
    %v813 = vunpack.c.h.b16 %v634
    %v814 = vunpack.c.l.b16 %v635
    %v815 = vunpack.c.h.b16 %v635
    %v816 = vunpack.c.l.b16 %v636
    %v817 = vunpack.c.h.b16 %v636
    %v818 = vunpack.c.l.b16 %v637
    %v819 = vunpack.c.h.b16 %v637
    %v820 = vunpack.c.l.b16 %v638
    %v821 = vunpack.c.h.b16 %v638
    %v822 = vunpack.c.l.b16 %v639
    %v823 = vunpack.c.h.b16 %v639
    %v824 = vunpack.c.l.b16 %v640
    %v825 = vunpack.c.h.b16 %v640
    %v826 = vunpack.c.l.b16 %v641
    %v827 = vunpack.c.h.b16 %v641
    %v828 = vunpack.c.l.b16 %v642
    %v829 = vunpack.c.h.b16 %v642
    %v830 = vunpack.c.l.b16 %v643
    %v831 = vunpack.c.h.b16 %v643
    %v832 = vunpack.c.l.b16 %v644
    %v833 = vunpack.c.h.b16 %v644
    %v834 = vunpack.c.l.b16 %v645
    %v835 = vunpack.c.h.b16 %v645
    %v836 = vunpack.c.l.b16 %v646
    %v837 = vunpack.c.h.b16 %v646
    %v838 = vunpack.c.l.b16 %v647
    %v839 = vunpack.c.h.b16 %v647
    %v840 = vunpack.c.l.b16 %v648
    %v841 = vunpack.c.h.b16 %v648
    %v842 = vunpack.c.l.b16 %v649
    %v843 = vunpack.c.h.b16 %v649
    %v844 = vunpack.c.l.b16 %v650
    %v845 = vunpack.c.h.b16 %v650
    %v846 = vunpack.c.l.b16 %v651
    %v847 = vunpack.c.h.b16 %v651
    %v848 = vunpack.c.l.b16 %v652
    %v849 = vunpack.c.h.b16 %v652
    %v850 = vunpack.c.l.b16 %v653
    %v851 = vunpack.c.h.b16 %v653
    %v852 = vunpack.c.l.b16 %v654
    %v853 = vunpack.c.h.b16 %v654
    %v854 = vpack.c.b16 %v730, %v726
    %v855 = vpack.c.b16 %v731, %v727
    %v856 = vpack.c.b16 %v732, %v728
    %v857 = vpack.c.b16 %v733, %v729
    %v858 = vpack.c.b16 %v738, %v734
    %v859 = vpack.c.b16 %v739, %v735
    %v860 = vpack.c.b16 %v740, %v736
    %v861 = vpack.c.b16 %v741, %v737
    %v862 = vpack.c.b16 %v746, %v742
    %v863 = vpack.c.b16 %v747, %v743
    %v864 = vpack.c.b16 %v748, %v744
    %v865 = vpack.c.b16 %v749, %v745
    %v866 = vpack.c.b16 %v754, %v750
    %v867 = vpack.c.b16 %v755, %v751
    %v868 = vpack.c.b16 %v756, %v752
    %v869 = vpack.c.b16 %v757, %v753
    %v870 = vpack.c.b16 %v762, %v758
    %v871 = vpack.c.b16 %v763, %v759
    %v872 = vpack.c.b16 %v764, %v760
    %v873 = vpack.c.b16 %v765, %v761
    %v874 = vpack.c.b16 %v770, %v766
    %v875 = vpack.c.b16 %v771, %v767
    %v876 = vpack.c.b16 %v772, %v768
    %v877 = vpack.c.b16 %v773, %v769
    %v878 = vpack.c.b16 %v778, %v774
    %v879 = vpack.c.b16 %v779, %v775
    %v880 = vpack.c.b16 %v780, %v776
    %v881 = vpack.c.b16 %v781, %v777
    %v882 = vpack.c.b16 %v786, %v782
    %v883 = vpack.c.b16 %v787, %v783
    %v884 = vpack.c.b16 %v788, %v784
    %v885 = vpack.c.b16 %v789, %v785
    %v886 = vpack.c.b16 %v794, %v790
    %v887 = vpack.c.b16 %v795, %v791
    %v888 = vpack.c.b16 %v796, %v792
    %v889 = vpack.c.b16 %v797, %v793
    %v890 = vpack.c.b16 %v802, %v798
    %v891 = vpack.c.b16 %v803, %v799
    %v892 = vpack.c.b16 %v804, %v800
    %v893 = vpack.c.b16 %v805, %v801
    %v894 = vpack.c.b16 %v810, %v806
    %v895 = vpack.c.b16 %v811, %v807
    %v896 = vpack.c.b16 %v812, %v808
    %v897 = vpack.c.b16 %v813, %v809
    %v898 = vpack.c.b16 %v818, %v814
    %v899 = vpack.c.b16 %v819, %v815
    %v900 = vpack.c.b16 %v820, %v816
    %v901 = vpack.c.b16 %v821, %v817
    %v902 = vpack.c.b16 %v826, %v822
    %v903 = vpack.c.b16 %v827, %v823
    %v904 = vpack.c.b16 %v828, %v824
    %v905 = vpack.c.b16 %v829, %v825
    %v906 = vpack.c.b16 %v834, %v830
    %v907 = vpack.c.b16 %v835, %v831
    %v908 = vpack.c.b16 %v836, %v832
    %v909 = vpack.c.b16 %v837, %v833
    %v910 = vpack.c.b16 %v842, %v838
    %v911 = vpack.c.b16 %v843, %v839
    %v912 = vpack.c.b16 %v844, %v840
    %v913 = vpack.c.b16 %v845, %v841
    %v914 = vpack.c.b16 %v850, %v846
    %v915 = vpack.c.b16 %v851, %v847
    %v916 = vpack.c.b16 %v852, %v848
    %v917 = vpack.c.b16 %v853, %v849
    %982 = vmatprep.subr.bf16.mxu0 %v883
    %983 = vmatpush1.bf16.msra.mxu0 %v882
    %984 = vmatprep.subr.bf16.mxu0 %v879
    %985 = vmatpush1.bf16.msra.mxu0 %v878
    %986 = vmatprep.subr.bf16.mxu0 %v875
    %987 = vmatpush1.bf16.msra.mxu0 %v874
    %988 = vmatprep.subr.bf16.mxu0 %v871
    %989 = vmatpush1.bf16.msra.mxu0 %v870
    %990 = vmatprep.subr.bf16.mxu0 %v867
    %991 = vmatpush1.bf16.msra.mxu0 %v866
    %992 = vmatprep.subr.bf16.mxu0 %v863
    %993 = vmatpush1.bf16.msra.mxu0 %v862
    %994 = vmatprep.subr.bf16.mxu0 %v859
    %995 = vmatpush1.bf16.msra.mxu0 %v858
    %996 = vmatprep.subr.bf16.mxu0 %v855
    %997 = vmatpush1.bf16.msra.mxu0 %v854
    %998 = vmatprep.subr.bf16.mxu0 %v915
    %999 = vmatpush2.bf16.msra.mxu0 %v914
    %1000 = vmatprep.subr.bf16.mxu0 %v911
    %1001 = vmatpush2.bf16.msra.mxu0 %v910
    %1002 = vmatprep.subr.bf16.mxu0 %v907
    %1003 = vmatpush2.bf16.msra.mxu0 %v906
    %1004 = vmatprep.subr.bf16.mxu0 %v903
    %1005 = vmatpush2.bf16.msra.mxu0 %v902
    %1006 = vmatprep.subr.bf16.mxu0 %v899
    %1007 = vmatpush2.bf16.msra.mxu0 %v898
    %1008 = vmatprep.subr.bf16.mxu0 %v895
    %1009 = vmatpush2.bf16.msra.mxu0 %v894
    %1010 = vmatprep.subr.bf16.mxu0 %v891
    %1011 = vmatpush2.bf16.msra.mxu0 %v890
    %1012 = vmatprep.subr.bf16.mxu0 %v887
    %1013 = vmatpush2.bf16.msra.mxu0 %v886
    %1014 = vmatprep.mubr.bf16.mxu0 %v659
    %1015 = vmatmul.mubr.bf16.gmra.mxu0 %v658
    %v1016 = vpop.f32.mrf.mxu0
    %v1017 = vadd.f32 %v122, %v1016
    %v1018 = vpop.f32.mrf.mxu0
    %v1019 = vadd.f32 %v126, %v1018
    %v1020 = vpop.f32.mrf.mxu0
    %v1021 = vpop.f32.mrf.mxu0
    %1022 = vdwg.mxu0
    %1023 = vmatprep.subr.bf16.mxu0 %v885
    %1024 = vmatpush1.bf16.msra.mxu0 %v884
    %1025 = vmatprep.subr.bf16.mxu0 %v881
    %1026 = vmatpush1.bf16.msra.mxu0 %v880
    %1027 = vmatprep.subr.bf16.mxu0 %v877
    %1028 = vmatpush1.bf16.msra.mxu0 %v876
    %1029 = vmatprep.subr.bf16.mxu0 %v873
    %1030 = vmatpush1.bf16.msra.mxu0 %v872
    %1031 = vmatprep.subr.bf16.mxu0 %v869
    %1032 = vmatpush1.bf16.msra.mxu0 %v868
    %1033 = vmatprep.subr.bf16.mxu0 %v865
    %1034 = vmatpush1.bf16.msra.mxu0 %v864
    %1035 = vmatprep.subr.bf16.mxu0 %v861
    %1036 = vmatpush1.bf16.msra.mxu0 %v860
    %1037 = vmatprep.subr.bf16.mxu0 %v857
    %1038 = vmatpush1.bf16.msra.mxu0 %v856
    %1039 = vmatprep.subr.bf16.mxu0 %v917
    %1040 = vmatpush2.bf16.msra.mxu0 %v916
    %1041 = vmatprep.subr.bf16.mxu0 %v913
    %1042 = vmatpush2.bf16.msra.mxu0 %v912
    %1043 = vmatprep.subr.bf16.mxu0 %v909
    %1044 = vmatpush2.bf16.msra.mxu0 %v908
    %1045 = vmatprep.subr.bf16.mxu0 %v905
    %1046 = vmatpush2.bf16.msra.mxu0 %v904
    %1047 = vmatprep.subr.bf16.mxu0 %v901
    %1048 = vmatpush2.bf16.msra.mxu0 %v900
    %1049 = vmatprep.subr.bf16.mxu0 %v897
    %1050 = vmatpush2.bf16.msra.mxu0 %v896
    %1051 = vmatprep.subr.bf16.mxu0 %v893
    %1052 = vmatpush2.bf16.msra.mxu0 %v892
    %1053 = vmatprep.subr.bf16.mxu0 %v889
    %1054 = vmatpush2.bf16.msra.mxu0 %v888
    %1055 = vmatprep.mubr.bf16.mxu0 %v659
    %1056 = vmatmul.mubr.bf16.gmra.mxu0 %v658
    %v1057 = vpop.f32.mrf.mxu0
    %v1058 = vadd.f32 %v130, %v1057
    %v1059 = vpop.f32.mrf.mxu0
    %v1060 = vadd.f32 %v134, %v1059
    %v1061 = vpop.f32.mrf.mxu0
    %v1062 = vpop.f32.mrf.mxu0
    %1063 = vdwg.mxu0
    %v1064 = vxor.u32 %v1017, 2147483648
    %v1065 = vmul.f32 %v1064, 1.442695
    %v1066 = vpow.pop %v1065
    %v1067 = vadd.f32 %v1066, 1.0
    %v1068 = vrcp.pop %v1067
    %v1069 = vmul.f32 1.0, %v1068
    %v1070 = vxor.u32 %v1019, 2147483648
    %v1071 = vmul.f32 %v1070, 1.442695
    %v1072 = vpow.pop %v1071
    %v1073 = vadd.f32 %v1072, 1.0
    %v1074 = vrcp.pop %v1073
    %v1075 = vmul.f32 1.0, %v1074
    %v1076 = vtanh.pop %v1058
    %v1077 = vxor.u32 %v1060, 2147483648
    %v1078 = vmul.f32 %v1077, 1.442695
    %v1079 = vpow.pop %v1078
    %v1080 = vadd.f32 %v1079, 1.0
    %v1081 = vrcp.pop %v1080
    %v1082 = vmul.f32 1.0, %v1081
    %v1083 = vld [vmem:[#allocation3] sm:$0xff]
    %v1084 = vmul.f32 %v1075, %v1083
    %v1085 = vmul.f32 %v1069, %v1076
    %v1086 = vadd.f32 %v1084, %v1085
    %v1087 = vtanh.pop %v1086
    %v1088 = vmul.f32 %v1082, %v1087
    %1089 = vst [vmem:[#allocation3] sm:$0xff] %v1086
    %v1090 = vpack.c.bf16 %v1088, %v1088
    %1091 = vst [vmem:[#allocation2 + $0x4] sm:$0xf] %v1090
    %v1092 = vstv %s586
    %vm1093 = vcmp.eq.s32.totalorder %v48, %v1092
    %v1094 = vld [vmem:[#allocation4] sm:$0xff]
    %v1095 = vsel %vm1093, 1, 0
    %1096 = vset.pattern.permute.xlu0 0
    %1097 = vperm.xlu0 %1096, %v1095
    %v1098 = vpop.permute.xlu0 %1097
    %vm1099 = vcmp.eq.s32.totalorder %v1098, 1
    %v1100 = vsel %vm1099, %v1088, %v1094
    %1101 = vst [vmem:[#allocation4] sm:$0xff] %v1100
    %s1102 = sadd.s32 %s50, 2
    %s1103 = scalar_lea.vmem %s1, 8
    %v1104 = vld [vmem:[%s1103] sm:$0xf]
    %1105 = vst [vmem:[#allocation2] sm:$0xf] %v1104
    %v1106 = vld [vmem:[#allocation2] sm:$0xff]
    %v1107 = vld [vmem:[#allocation6] sm:$0xff]
    %v1108 = vld [vmem:[#allocation6 + $0x8] sm:$0xff]
    %v1109 = vld [vmem:[#allocation6 + $0x10] sm:$0xff]
    %v1110 = vld [vmem:[#allocation6 + $0x18] sm:$0xff]
    %v1111 = vld [vmem:[#allocation6 + $0x20] sm:$0xff]
    %v1112 = vld [vmem:[#allocation6 + $0x28] sm:$0xff]
    %v1113 = vld [vmem:[#allocation6 + $0x30] sm:$0xff]
    %v1114 = vld [vmem:[#allocation6 + $0x38] sm:$0xff]
    %v1115 = vld [vmem:[#allocation6 + $0x40] sm:$0xff]
    %v1116 = vld [vmem:[#allocation6 + $0x48] sm:$0xff]
    %v1117 = vld [vmem:[#allocation6 + $0x50] sm:$0xff]
    %v1118 = vld [vmem:[#allocation6 + $0x58] sm:$0xff]
    %v1119 = vld [vmem:[#allocation6 + $0x60] sm:$0xff]
    %v1120 = vld [vmem:[#allocation6 + $0x68] sm:$0xff]
    %v1121 = vld [vmem:[#allocation6 + $0x70] sm:$0xff]
    %v1122 = vld [vmem:[#allocation6 + $0x78] sm:$0xff]
    %v1123 = vld [vmem:[#allocation6 + $0x80] sm:$0xff]
    %v1124 = vld [vmem:[#allocation6 + $0x88] sm:$0xff]
    %v1125 = vld [vmem:[#allocation6 + $0x90] sm:$0xff]
    %v1126 = vld [vmem:[#allocation6 + $0x98] sm:$0xff]
    %v1127 = vld [vmem:[#allocation6 + $0xa0] sm:$0xff]
    %v1128 = vld [vmem:[#allocation6 + $0xa8] sm:$0xff]
    %v1129 = vld [vmem:[#allocation6 + $0xb0] sm:$0xff]
    %v1130 = vld [vmem:[#allocation6 + $0xb8] sm:$0xff]
    %v1131 = vld [vmem:[#allocation6 + $0xc0] sm:$0xff]
    %v1132 = vld [vmem:[#allocation6 + $0xc8] sm:$0xff]
    %v1133 = vld [vmem:[#allocation6 + $0xd0] sm:$0xff]
    %v1134 = vld [vmem:[#allocation6 + $0xd8] sm:$0xff]
    %v1135 = vld [vmem:[#allocation6 + $0xe0] sm:$0xff]
    %v1136 = vld [vmem:[#allocation6 + $0xe8] sm:$0xff]
    %v1137 = vld [vmem:[#allocation6 + $0xf0] sm:$0xff]
    %v1138 = vld [vmem:[#allocation6 + $0xf8] sm:$0xff]
    %v1139 = vld [vmem:[#allocation6 + $0x100] sm:$0xff]
    %v1140 = vld [vmem:[#allocation6 + $0x108] sm:$0xff]
    %v1141 = vld [vmem:[#allocation6 + $0x110] sm:$0xff]
    %v1142 = vld [vmem:[#allocation6 + $0x118] sm:$0xff]
    %v1143 = vld [vmem:[#allocation6 + $0x120] sm:$0xff]
    %v1144 = vld [vmem:[#allocation6 + $0x128] sm:$0xff]
    %v1145 = vld [vmem:[#allocation6 + $0x130] sm:$0xff]
    %v1146 = vld [vmem:[#allocation6 + $0x138] sm:$0xff]
    %v1147 = vld [vmem:[#allocation6 + $0x140] sm:$0xff]
    %v1148 = vld [vmem:[#allocation6 + $0x148] sm:$0xff]
    %v1149 = vld [vmem:[#allocation6 + $0x150] sm:$0xff]
    %v1150 = vld [vmem:[#allocation6 + $0x158] sm:$0xff]
    %v1151 = vld [vmem:[#allocation6 + $0x160] sm:$0xff]
    %v1152 = vld [vmem:[#allocation6 + $0x168] sm:$0xff]
    %v1153 = vld [vmem:[#allocation6 + $0x170] sm:$0xff]
    %v1154 = vld [vmem:[#allocation6 + $0x178] sm:$0xff]
    %v1155 = vld [vmem:[#allocation6 + $0x180] sm:$0xff]
    %v1156 = vld [vmem:[#allocation6 + $0x188] sm:$0xff]
    %v1157 = vld [vmem:[#allocation6 + $0x190] sm:$0xff]
    %v1158 = vld [vmem:[#allocation6 + $0x198] sm:$0xff]
    %v1159 = vld [vmem:[#allocation6 + $0x1a0] sm:$0xff]
    %v1160 = vld [vmem:[#allocation6 + $0x1a8] sm:$0xff]
    %v1161 = vld [vmem:[#allocation6 + $0x1b0] sm:$0xff]
    %v1162 = vld [vmem:[#allocation6 + $0x1b8] sm:$0xff]
    %v1163 = vld [vmem:[#allocation6 + $0x1c0] sm:$0xff]
    %v1164 = vld [vmem:[#allocation6 + $0x1c8] sm:$0xff]
    %v1165 = vld [vmem:[#allocation6 + $0x1d0] sm:$0xff]
    %v1166 = vld [vmem:[#allocation6 + $0x1d8] sm:$0xff]
    %v1167 = vld [vmem:[#allocation6 + $0x1e0] sm:$0xff]
    %v1168 = vld [vmem:[#allocation6 + $0x1e8] sm:$0xff]
    %v1169 = vld [vmem:[#allocation6 + $0x1f0] sm:$0xff]
    %v1170 = vld [vmem:[#allocation6 + $0x1f8] sm:$0xff]
    %v1172 = vunpack.c.l.b16 %v1106
    %v1173 = vunpack.c.h.b16 %v1106
    %v1174 = vpack.c.b16 %v1172, %v1172
    %v1175 = vpack.c.b16 %v1173, %v1173
    %v1242 = vunpack.c.l.b16 %v1107
    %v1243 = vunpack.c.h.b16 %v1107
    %v1244 = vunpack.c.l.b16 %v1108
    %v1245 = vunpack.c.h.b16 %v1108
    %v1246 = vunpack.c.l.b16 %v1109
    %v1247 = vunpack.c.h.b16 %v1109
    %v1248 = vunpack.c.l.b16 %v1110
    %v1249 = vunpack.c.h.b16 %v1110
    %v1250 = vunpack.c.l.b16 %v1111
    %v1251 = vunpack.c.h.b16 %v1111
    %v1252 = vunpack.c.l.b16 %v1112
    %v1253 = vunpack.c.h.b16 %v1112
    %v1254 = vunpack.c.l.b16 %v1113
    %v1255 = vunpack.c.h.b16 %v1113
    %v1256 = vunpack.c.l.b16 %v1114
    %v1257 = vunpack.c.h.b16 %v1114
    %v1258 = vunpack.c.l.b16 %v1115
    %v1259 = vunpack.c.h.b16 %v1115
    %v1260 = vunpack.c.l.b16 %v1116
    %v1261 = vunpack.c.h.b16 %v1116
    %v1262 = vunpack.c.l.b16 %v1117
    %v1263 = vunpack.c.h.b16 %v1117
    %v1264 = vunpack.c.l.b16 %v1118
    %v1265 = vunpack.c.h.b16 %v1118
    %v1266 = vunpack.c.l.b16 %v1119
    %v1267 = vunpack.c.h.b16 %v1119
    %v1268 = vunpack.c.l.b16 %v1120
    %v1269 = vunpack.c.h.b16 %v1120
    %v1270 = vunpack.c.l.b16 %v1121
    %v1271 = vunpack.c.h.b16 %v1121
    %v1272 = vunpack.c.l.b16 %v1122
    %v1273 = vunpack.c.h.b16 %v1122
    %v1274 = vunpack.c.l.b16 %v1123
    %v1275 = vunpack.c.h.b16 %v1123
    %v1276 = vunpack.c.l.b16 %v1124
    %v1277 = vunpack.c.h.b16 %v1124
    %v1278 = vunpack.c.l.b16 %v1125
    %v1279 = vunpack.c.h.b16 %v1125
    %v1280 = vunpack.c.l.b16 %v1126
    %v1281 = vunpack.c.h.b16 %v1126
    %v1282 = vunpack.c.l.b16 %v1127
    %v1283 = vunpack.c.h.b16 %v1127
    %v1284 = vunpack.c.l.b16 %v1128
    %v1285 = vunpack.c.h.b16 %v1128
    %v1286 = vunpack.c.l.b16 %v1129
    %v1287 = vunpack.c.h.b16 %v1129
    %v1288 = vunpack.c.l.b16 %v1130
    %v1289 = vunpack.c.h.b16 %v1130
    %v1290 = vunpack.c.l.b16 %v1131
    %v1291 = vunpack.c.h.b16 %v1131
    %v1292 = vunpack.c.l.b16 %v1132
    %v1293 = vunpack.c.h.b16 %v1132
    %v1294 = vunpack.c.l.b16 %v1133
    %v1295 = vunpack.c.h.b16 %v1133
    %v1296 = vunpack.c.l.b16 %v1134
    %v1297 = vunpack.c.h.b16 %v1134
    %v1298 = vunpack.c.l.b16 %v1135
    %v1299 = vunpack.c.h.b16 %v1135
    %v1300 = vunpack.c.l.b16 %v1136
    %v1301 = vunpack.c.h.b16 %v1136
    %v1302 = vunpack.c.l.b16 %v1137
    %v1303 = vunpack.c.h.b16 %v1137
    %v1304 = vunpack.c.l.b16 %v1138
    %v1305 = vunpack.c.h.b16 %v1138
    %v1306 = vunpack.c.l.b16 %v1139
    %v1307 = vunpack.c.h.b16 %v1139
    %v1308 = vunpack.c.l.b16 %v1140
    %v1309 = vunpack.c.h.b16 %v1140
    %v1310 = vunpack.c.l.b16 %v1141
    %v1311 = vunpack.c.h.b16 %v1141
    %v1312 = vunpack.c.l.b16 %v1142
    %v1313 = vunpack.c.h.b16 %v1142
    %v1314 = vunpack.c.l.b16 %v1143
    %v1315 = vunpack.c.h.b16 %v1143
    %v1316 = vunpack.c.l.b16 %v1144
    %v1317 = vunpack.c.h.b16 %v1144
    %v1318 = vunpack.c.l.b16 %v1145
    %v1319 = vunpack.c.h.b16 %v1145
    %v1320 = vunpack.c.l.b16 %v1146
    %v1321 = vunpack.c.h.b16 %v1146
    %v1322 = vunpack.c.l.b16 %v1147
    %v1323 = vunpack.c.h.b16 %v1147
    %v1324 = vunpack.c.l.b16 %v1148
    %v1325 = vunpack.c.h.b16 %v1148
    %v1326 = vunpack.c.l.b16 %v1149
    %v1327 = vunpack.c.h.b16 %v1149
    %v1328 = vunpack.c.l.b16 %v1150
    %v1329 = vunpack.c.h.b16 %v1150
    %v1330 = vunpack.c.l.b16 %v1151
    %v1331 = vunpack.c.h.b16 %v1151
    %v1332 = vunpack.c.l.b16 %v1152
    %v1333 = vunpack.c.h.b16 %v1152
    %v1334 = vunpack.c.l.b16 %v1153
    %v1335 = vunpack.c.h.b16 %v1153
    %v1336 = vunpack.c.l.b16 %v1154
    %v1337 = vunpack.c.h.b16 %v1154
    %v1338 = vunpack.c.l.b16 %v1155
    %v1339 = vunpack.c.h.b16 %v1155
    %v1340 = vunpack.c.l.b16 %v1156
    %v1341 = vunpack.c.h.b16 %v1156
    %v1342 = vunpack.c.l.b16 %v1157
    %v1343 = vunpack.c.h.b16 %v1157
    %v1344 = vunpack.c.l.b16 %v1158
    %v1345 = vunpack.c.h.b16 %v1158
    %v1346 = vunpack.c.l.b16 %v1159
    %v1347 = vunpack.c.h.b16 %v1159
    %v1348 = vunpack.c.l.b16 %v1160
    %v1349 = vunpack.c.h.b16 %v1160
    %v1350 = vunpack.c.l.b16 %v1161
    %v1351 = vunpack.c.h.b16 %v1161
    %v1352 = vunpack.c.l.b16 %v1162
    %v1353 = vunpack.c.h.b16 %v1162
    %v1354 = vunpack.c.l.b16 %v1163
    %v1355 = vunpack.c.h.b16 %v1163
    %v1356 = vunpack.c.l.b16 %v1164
    %v1357 = vunpack.c.h.b16 %v1164
    %v1358 = vunpack.c.l.b16 %v1165
    %v1359 = vunpack.c.h.b16 %v1165
    %v1360 = vunpack.c.l.b16 %v1166
    %v1361 = vunpack.c.h.b16 %v1166
    %v1362 = vunpack.c.l.b16 %v1167
    %v1363 = vunpack.c.h.b16 %v1167
    %v1364 = vunpack.c.l.b16 %v1168
    %v1365 = vunpack.c.h.b16 %v1168
    %v1366 = vunpack.c.l.b16 %v1169
    %v1367 = vunpack.c.h.b16 %v1169
    %v1368 = vunpack.c.l.b16 %v1170
    %v1369 = vunpack.c.h.b16 %v1170
    %v1370 = vpack.c.b16 %v1246, %v1242
    %v1371 = vpack.c.b16 %v1247, %v1243
    %v1372 = vpack.c.b16 %v1248, %v1244
    %v1373 = vpack.c.b16 %v1249, %v1245
    %v1374 = vpack.c.b16 %v1254, %v1250
    %v1375 = vpack.c.b16 %v1255, %v1251
    %v1376 = vpack.c.b16 %v1256, %v1252
    %v1377 = vpack.c.b16 %v1257, %v1253
    %v1378 = vpack.c.b16 %v1262, %v1258
    %v1379 = vpack.c.b16 %v1263, %v1259
    %v1380 = vpack.c.b16 %v1264, %v1260
    %v1381 = vpack.c.b16 %v1265, %v1261
    %v1382 = vpack.c.b16 %v1270, %v1266
    %v1383 = vpack.c.b16 %v1271, %v1267
    %v1384 = vpack.c.b16 %v1272, %v1268
    %v1385 = vpack.c.b16 %v1273, %v1269
    %v1386 = vpack.c.b16 %v1278, %v1274
    %v1387 = vpack.c.b16 %v1279, %v1275
    %v1388 = vpack.c.b16 %v1280, %v1276
    %v1389 = vpack.c.b16 %v1281, %v1277
    %v1390 = vpack.c.b16 %v1286, %v1282
    %v1391 = vpack.c.b16 %v1287, %v1283
    %v1392 = vpack.c.b16 %v1288, %v1284
    %v1393 = vpack.c.b16 %v1289, %v1285
    %v1394 = vpack.c.b16 %v1294, %v1290
    %v1395 = vpack.c.b16 %v1295, %v1291
    %v1396 = vpack.c.b16 %v1296, %v1292
    %v1397 = vpack.c.b16 %v1297, %v1293
    %v1398 = vpack.c.b16 %v1302, %v1298
    %v1399 = vpack.c.b16 %v1303, %v1299
    %v1400 = vpack.c.b16 %v1304, %v1300
    %v1401 = vpack.c.b16 %v1305, %v1301
    %v1402 = vpack.c.b16 %v1310, %v1306
    %v1403 = vpack.c.b16 %v1311, %v1307
    %v1404 = vpack.c.b16 %v1312, %v1308
    %v1405 = vpack.c.b16 %v1313, %v1309
    %v1406 = vpack.c.b16 %v1318, %v1314
    %v1407 = vpack.c.b16 %v1319, %v1315
    %v1408 = vpack.c.b16 %v1320, %v1316
    %v1409 = vpack.c.b16 %v1321, %v1317
    %v1410 = vpack.c.b16 %v1326, %v1322
    %v1411 = vpack.c.b16 %v1327, %v1323
    %v1412 = vpack.c.b16 %v1328, %v1324
    %v1413 = vpack.c.b16 %v1329, %v1325
    %v1414 = vpack.c.b16 %v1334, %v1330
    %v1415 = vpack.c.b16 %v1335, %v1331
    %v1416 = vpack.c.b16 %v1336, %v1332
    %v1417 = vpack.c.b16 %v1337, %v1333
    %v1418 = vpack.c.b16 %v1342, %v1338
    %v1419 = vpack.c.b16 %v1343, %v1339
    %v1420 = vpack.c.b16 %v1344, %v1340
    %v1421 = vpack.c.b16 %v1345, %v1341
    %v1422 = vpack.c.b16 %v1350, %v1346
    %v1423 = vpack.c.b16 %v1351, %v1347
    %v1424 = vpack.c.b16 %v1352, %v1348
    %v1425 = vpack.c.b16 %v1353, %v1349
    %v1426 = vpack.c.b16 %v1358, %v1354
    %v1427 = vpack.c.b16 %v1359, %v1355
    %v1428 = vpack.c.b16 %v1360, %v1356
    %v1429 = vpack.c.b16 %v1361, %v1357
    %v1430 = vpack.c.b16 %v1366, %v1362
    %v1431 = vpack.c.b16 %v1367, %v1363
    %v1432 = vpack.c.b16 %v1368, %v1364
    %v1433 = vpack.c.b16 %v1369, %v1365
    %1498 = vmatprep.subr.bf16.mxu0 %v1399
    %1499 = vmatpush1.bf16.msra.mxu0 %v1398
    %1500 = vmatprep.subr.bf16.mxu0 %v1395
    %1501 = vmatpush1.bf16.msra.mxu0 %v1394
    %1502 = vmatprep.subr.bf16.mxu0 %v1391
    %1503 = vmatpush1.bf16.msra.mxu0 %v1390
    %1504 = vmatprep.subr.bf16.mxu0 %v1387
    %1505 = vmatpush1.bf16.msra.mxu0 %v1386
    %1506 = vmatprep.subr.bf16.mxu0 %v1383
    %1507 = vmatpush1.bf16.msra.mxu0 %v1382
    %1508 = vmatprep.subr.bf16.mxu0 %v1379
    %1509 = vmatpush1.bf16.msra.mxu0 %v1378
    %1510 = vmatprep.subr.bf16.mxu0 %v1375
    %1511 = vmatpush1.bf16.msra.mxu0 %v1374
    %1512 = vmatprep.subr.bf16.mxu0 %v1371
    %1513 = vmatpush1.bf16.msra.mxu0 %v1370
    %1514 = vmatprep.subr.bf16.mxu0 %v1431
    %1515 = vmatpush2.bf16.msra.mxu0 %v1430
    %1516 = vmatprep.subr.bf16.mxu0 %v1427
    %1517 = vmatpush2.bf16.msra.mxu0 %v1426
    %1518 = vmatprep.subr.bf16.mxu0 %v1423
    %1519 = vmatpush2.bf16.msra.mxu0 %v1422
    %1520 = vmatprep.subr.bf16.mxu0 %v1419
    %1521 = vmatpush2.bf16.msra.mxu0 %v1418
    %1522 = vmatprep.subr.bf16.mxu0 %v1415
    %1523 = vmatpush2.bf16.msra.mxu0 %v1414
    %1524 = vmatprep.subr.bf16.mxu0 %v1411
    %1525 = vmatpush2.bf16.msra.mxu0 %v1410
    %1526 = vmatprep.subr.bf16.mxu0 %v1407
    %1527 = vmatpush2.bf16.msra.mxu0 %v1406
    %1528 = vmatprep.subr.bf16.mxu0 %v1403
    %1529 = vmatpush2.bf16.msra.mxu0 %v1402
    %1530 = vmatprep.mubr.bf16.mxu0 %v1175
    %1531 = vmatmul.mubr.bf16.gmra.mxu0 %v1174
    %v1532 = vpop.f32.mrf.mxu0
    %v1533 = vadd.f32 %v122, %v1532
    %v1534 = vpop.f32.mrf.mxu0
    %v1535 = vadd.f32 %v126, %v1534
    %v1536 = vpop.f32.mrf.mxu0
    %v1537 = vpop.f32.mrf.mxu0
    %1538 = vdwg.mxu0
    %1539 = vmatprep.subr.bf16.mxu0 %v1401
    %1540 = vmatpush1.bf16.msra.mxu0 %v1400
    %1541 = vmatprep.subr.bf16.mxu0 %v1397
    %1542 = vmatpush1.bf16.msra.mxu0 %v1396
    %1543 = vmatprep.subr.bf16.mxu0 %v1393
    %1544 = vmatpush1.bf16.msra.mxu0 %v1392
    %1545 = vmatprep.subr.bf16.mxu0 %v1389
    %1546 = vmatpush1.bf16.msra.mxu0 %v1388
    %1547 = vmatprep.subr.bf16.mxu0 %v1385
    %1548 = vmatpush1.bf16.msra.mxu0 %v1384
    %1549 = vmatprep.subr.bf16.mxu0 %v1381
    %1550 = vmatpush1.bf16.msra.mxu0 %v1380
    %1551 = vmatprep.subr.bf16.mxu0 %v1377
    %1552 = vmatpush1.bf16.msra.mxu0 %v1376
    %1553 = vmatprep.subr.bf16.mxu0 %v1373
    %1554 = vmatpush1.bf16.msra.mxu0 %v1372
    %1555 = vmatprep.subr.bf16.mxu0 %v1433
    %1556 = vmatpush2.bf16.msra.mxu0 %v1432
    %1557 = vmatprep.subr.bf16.mxu0 %v1429
    %1558 = vmatpush2.bf16.msra.mxu0 %v1428
    %1559 = vmatprep.subr.bf16.mxu0 %v1425
    %1560 = vmatpush2.bf16.msra.mxu0 %v1424
    %1561 = vmatprep.subr.bf16.mxu0 %v1421
    %1562 = vmatpush2.bf16.msra.mxu0 %v1420
    %1563 = vmatprep.subr.bf16.mxu0 %v1417
    %1564 = vmatpush2.bf16.msra.mxu0 %v1416
    %1565 = vmatprep.subr.bf16.mxu0 %v1413
    %1566 = vmatpush2.bf16.msra.mxu0 %v1412
    %1567 = vmatprep.subr.bf16.mxu0 %v1409
    %1568 = vmatpush2.bf16.msra.mxu0 %v1408
    %1569 = vmatprep.subr.bf16.mxu0 %v1405
    %1570 = vmatpush2.bf16.msra.mxu0 %v1404
    %1571 = vmatprep.mubr.bf16.mxu0 %v1175
    %1572 = vmatmul.mubr.bf16.gmra.mxu0 %v1174
    %v1573 = vpop.f32.mrf.mxu0
    %v1574 = vadd.f32 %v130, %v1573
    %v1575 = vpop.f32.mrf.mxu0
    %v1576 = vadd.f32 %v134, %v1575
    %v1577 = vpop.f32.mrf.mxu0
    %v1578 = vpop.f32.mrf.mxu0
    %1579 = vdwg.mxu0
    %v1580 = vxor.u32 %v1533, 2147483648
    %v1581 = vmul.f32 %v1580, 1.442695
    %v1582 = vpow.pop %v1581
    %v1583 = vadd.f32 %v1582, 1.0
    %v1584 = vrcp.pop %v1583
    %v1585 = vmul.f32 1.0, %v1584
    %v1586 = vxor.u32 %v1535, 2147483648
    %v1587 = vmul.f32 %v1586, 1.442695
    %v1588 = vpow.pop %v1587
    %v1589 = vadd.f32 %v1588, 1.0
    %v1590 = vrcp.pop %v1589
    %v1591 = vmul.f32 1.0, %v1590
    %v1592 = vtanh.pop %v1574
    %v1593 = vxor.u32 %v1576, 2147483648
    %v1594 = vmul.f32 %v1593, 1.442695
    %v1595 = vpow.pop %v1594
    %v1596 = vadd.f32 %v1595, 1.0
    %v1597 = vrcp.pop %v1596
    %v1598 = vmul.f32 1.0, %v1597
    %v1599 = vld [vmem:[#allocation3] sm:$0xff]
    %v1600 = vmul.f32 %v1591, %v1599
    %v1601 = vmul.f32 %v1585, %v1592
    %v1602 = vadd.f32 %v1600, %v1601
    %v1603 = vtanh.pop %v1602
    %v1604 = vmul.f32 %v1598, %v1603
    %1605 = vst [vmem:[#allocation3] sm:$0xff] %v1602
    %v1606 = vpack.c.bf16 %v1604, %v1604
    %1607 = vst [vmem:[#allocation2 + $0x4] sm:$0xf] %v1606
    %v1608 = vstv %s1102
    %vm1609 = vcmp.eq.s32.totalorder %v48, %v1608
    %v1610 = vld [vmem:[#allocation4] sm:$0xff]
    %v1611 = vsel %vm1609, 1, 0
    %1612 = vset.pattern.permute.xlu0 0
    %1613 = vperm.xlu0 %1612, %v1611
    %v1614 = vpop.permute.xlu0 %1613
    %vm1615 = vcmp.eq.s32.totalorder %v1614, 1
    %v1616 = vsel %vm1615, %v1604, %v1610
    %1617 = vst [vmem:[#allocation4] sm:$0xff] %v1616
    %s1618 = sadd.s32 %s50, 3
    %s1619 = scalar_lea.vmem %s1, 12
    %v1620 = vld [vmem:[%s1619] sm:$0xf]
    %1621 = vst [vmem:[#allocation2] sm:$0xf] %v1620
    %v1622 = vld [vmem:[#allocation2] sm:$0xff]
    %v1623 = vld [vmem:[#allocation6] sm:$0xff]
    %v1624 = vld [vmem:[#allocation6 + $0x8] sm:$0xff]
    %v1625 = vld [vmem:[#allocation6 + $0x10] sm:$0xff]
    %v1626 = vld [vmem:[#allocation6 + $0x18] sm:$0xff]
    %v1627 = vld [vmem:[#allocation6 + $0x20] sm:$0xff]
    %v1628 = vld [vmem:[#allocation6 + $0x28] sm:$0xff]
    %v1629 = vld [vmem:[#allocation6 + $0x30] sm:$0xff]
    %v1630 = vld [vmem:[#allocation6 + $0x38] sm:$0xff]
    %v1631 = vld [vmem:[#allocation6 + $0x40] sm:$0xff]
    %v1632 = vld [vmem:[#allocation6 + $0x48] sm:$0xff]
    %v1633 = vld [vmem:[#allocation6 + $0x50] sm:$0xff]
    %v1634 = vld [vmem:[#allocation6 + $0x58] sm:$0xff]
    %v1635 = vld [vmem:[#allocation6 + $0x60] sm:$0xff]
    %v1636 = vld [vmem:[#allocation6 + $0x68] sm:$0xff]
    %v1637 = vld [vmem:[#allocation6 + $0x70] sm:$0xff]
    %v1638 = vld [vmem:[#allocation6 + $0x78] sm:$0xff]
    %v1639 = vld [vmem:[#allocation6 + $0x80] sm:$0xff]
    %v1640 = vld [vmem:[#allocation6 + $0x88] sm:$0xff]
    %v1641 = vld [vmem:[#allocation6 + $0x90] sm:$0xff]
    %v1642 = vld [vmem:[#allocation6 + $0x98] sm:$0xff]
    %v1643 = vld [vmem:[#allocation6 + $0xa0] sm:$0xff]
    %v1644 = vld [vmem:[#allocation6 + $0xa8] sm:$0xff]
    %v1645 = vld [vmem:[#allocation6 + $0xb0] sm:$0xff]
    %v1646 = vld [vmem:[#allocation6 + $0xb8] sm:$0xff]
    %v1647 = vld [vmem:[#allocation6 + $0xc0] sm:$0xff]
    %v1648 = vld [vmem:[#allocation6 + $0xc8] sm:$0xff]
    %v1649 = vld [vmem:[#allocation6 + $0xd0] sm:$0xff]
    %v1650 = vld [vmem:[#allocation6 + $0xd8] sm:$0xff]
    %v1651 = vld [vmem:[#allocation6 + $0xe0] sm:$0xff]
    %v1652 = vld [vmem:[#allocation6 + $0xe8] sm:$0xff]
    %v1653 = vld [vmem:[#allocation6 + $0xf0] sm:$0xff]
    %v1654 = vld [vmem:[#allocation6 + $0xf8] sm:$0xff]
    %v1655 = vld [vmem:[#allocation6 + $0x100] sm:$0xff]
    %v1656 = vld [vmem:[#allocation6 + $0x108] sm:$0xff]
    %v1657 = vld [vmem:[#allocation6 + $0x110] sm:$0xff]
    %v1658 = vld [vmem:[#allocation6 + $0x118] sm:$0xff]
    %v1659 = vld [vmem:[#allocation6 + $0x120] sm:$0xff]
    %v1660 = vld [vmem:[#allocation6 + $0x128] sm:$0xff]
    %v1661 = vld [vmem:[#allocation6 + $0x130] sm:$0xff]
    %v1662 = vld [vmem:[#allocation6 + $0x138] sm:$0xff]
    %v1663 = vld [vmem:[#allocation6 + $0x140] sm:$0xff]
    %v1664 = vld [vmem:[#allocation6 + $0x148] sm:$0xff]
    %v1665 = vld [vmem:[#allocation6 + $0x150] sm:$0xff]
    %v1666 = vld [vmem:[#allocation6 + $0x158] sm:$0xff]
    %v1667 = vld [vmem:[#allocation6 + $0x160] sm:$0xff]
    %v1668 = vld [vmem:[#allocation6 + $0x168] sm:$0xff]
    %v1669 = vld [vmem:[#allocation6 + $0x170] sm:$0xff]
    %v1670 = vld [vmem:[#allocation6 + $0x178] sm:$0xff]
    %v1671 = vld [vmem:[#allocation6 + $0x180] sm:$0xff]
    %v1672 = vld [vmem:[#allocation6 + $0x188] sm:$0xff]
    %v1673 = vld [vmem:[#allocation6 + $0x190] sm:$0xff]
    %v1674 = vld [vmem:[#allocation6 + $0x198] sm:$0xff]
    %v1675 = vld [vmem:[#allocation6 + $0x1a0] sm:$0xff]
    %v1676 = vld [vmem:[#allocation6 + $0x1a8] sm:$0xff]
    %v1677 = vld [vmem:[#allocation6 + $0x1b0] sm:$0xff]
    %v1678 = vld [vmem:[#allocation6 + $0x1b8] sm:$0xff]
    %v1679 = vld [vmem:[#allocation6 + $0x1c0] sm:$0xff]
    %v1680 = vld [vmem:[#allocation6 + $0x1c8] sm:$0xff]
    %v1681 = vld [vmem:[#allocation6 + $0x1d0] sm:$0xff]
    %v1682 = vld [vmem:[#allocation6 + $0x1d8] sm:$0xff]
    %v1683 = vld [vmem:[#allocation6 + $0x1e0] sm:$0xff]
    %v1684 = vld [vmem:[#allocation6 + $0x1e8] sm:$0xff]
    %v1685 = vld [vmem:[#allocation6 + $0x1f0] sm:$0xff]
    %v1686 = vld [vmem:[#allocation6 + $0x1f8] sm:$0xff]
    %v1688 = vunpack.c.l.b16 %v1622
    %v1689 = vunpack.c.h.b16 %v1622
    %v1690 = vpack.c.b16 %v1688, %v1688
    %v1691 = vpack.c.b16 %v1689, %v1689
    %v1758 = vunpack.c.l.b16 %v1623
    %v1759 = vunpack.c.h.b16 %v1623
    %v1760 = vunpack.c.l.b16 %v1624
    %v1761 = vunpack.c.h.b16 %v1624
    %v1762 = vunpack.c.l.b16 %v1625
    %v1763 = vunpack.c.h.b16 %v1625
    %v1764 = vunpack.c.l.b16 %v1626
    %v1765 = vunpack.c.h.b16 %v1626
    %v1766 = vunpack.c.l.b16 %v1627
    %v1767 = vunpack.c.h.b16 %v1627
    %v1768 = vunpack.c.l.b16 %v1628
    %v1769 = vunpack.c.h.b16 %v1628
    %v1770 = vunpack.c.l.b16 %v1629
    %v1771 = vunpack.c.h.b16 %v1629
    %v1772 = vunpack.c.l.b16 %v1630
    %v1773 = vunpack.c.h.b16 %v1630
    %v1774 = vunpack.c.l.b16 %v1631
    %v1775 = vunpack.c.h.b16 %v1631
    %v1776 = vunpack.c.l.b16 %v1632
    %v1777 = vunpack.c.h.b16 %v1632
    %v1778 = vunpack.c.l.b16 %v1633
    %v1779 = vunpack.c.h.b16 %v1633
    %v1780 = vunpack.c.l.b16 %v1634
    %v1781 = vunpack.c.h.b16 %v1634
    %v1782 = vunpack.c.l.b16 %v1635
    %v1783 = vunpack.c.h.b16 %v1635
    %v1784 = vunpack.c.l.b16 %v1636
    %v1785 = vunpack.c.h.b16 %v1636
    %v1786 = vunpack.c.l.b16 %v1637
    %v1787 = vunpack.c.h.b16 %v1637
    %v1788 = vunpack.c.l.b16 %v1638
    %v1789 = vunpack.c.h.b16 %v1638
    %v1790 = vunpack.c.l.b16 %v1639
    %v1791 = vunpack.c.h.b16 %v1639
    %v1792 = vunpack.c.l.b16 %v1640
    %v1793 = vunpack.c.h.b16 %v1640
    %v1794 = vunpack.c.l.b16 %v1641
    %v1795 = vunpack.c.h.b16 %v1641
    %v1796 = vunpack.c.l.b16 %v1642
    %v1797 = vunpack.c.h.b16 %v1642
    %v1798 = vunpack.c.l.b16 %v1643
    %v1799 = vunpack.c.h.b16 %v1643
    %v1800 = vunpack.c.l.b16 %v1644
    %v1801 = vunpack.c.h.b16 %v1644
    %v1802 = vunpack.c.l.b16 %v1645
    %v1803 = vunpack.c.h.b16 %v1645
    %v1804 = vunpack.c.l.b16 %v1646
    %v1805 = vunpack.c.h.b16 %v1646
    %v1806 = vunpack.c.l.b16 %v1647
    %v1807 = vunpack.c.h.b16 %v1647
    %v1808 = vunpack.c.l.b16 %v1648
    %v1809 = vunpack.c.h.b16 %v1648
    %v1810 = vunpack.c.l.b16 %v1649
    %v1811 = vunpack.c.h.b16 %v1649
    %v1812 = vunpack.c.l.b16 %v1650
    %v1813 = vunpack.c.h.b16 %v1650
    %v1814 = vunpack.c.l.b16 %v1651
    %v1815 = vunpack.c.h.b16 %v1651
    %v1816 = vunpack.c.l.b16 %v1652
    %v1817 = vunpack.c.h.b16 %v1652
    %v1818 = vunpack.c.l.b16 %v1653
    %v1819 = vunpack.c.h.b16 %v1653
    %v1820 = vunpack.c.l.b16 %v1654
    %v1821 = vunpack.c.h.b16 %v1654
    %v1822 = vunpack.c.l.b16 %v1655
    %v1823 = vunpack.c.h.b16 %v1655
    %v1824 = vunpack.c.l.b16 %v1656
    %v1825 = vunpack.c.h.b16 %v1656
    %v1826 = vunpack.c.l.b16 %v1657
    %v1827 = vunpack.c.h.b16 %v1657
    %v1828 = vunpack.c.l.b16 %v1658
    %v1829 = vunpack.c.h.b16 %v1658
    %v1830 = vunpack.c.l.b16 %v1659
    %v1831 = vunpack.c.h.b16 %v1659
    %v1832 = vunpack.c.l.b16 %v1660
    %v1833 = vunpack.c.h.b16 %v1660
    %v1834 = vunpack.c.l.b16 %v1661
    %v1835 = vunpack.c.h.b16 %v1661
    %v1836 = vunpack.c.l.b16 %v1662
    %v1837 = vunpack.c.h.b16 %v1662
    %v1838 = vunpack.c.l.b16 %v1663
    %v1839 = vunpack.c.h.b16 %v1663
    %v1840 = vunpack.c.l.b16 %v1664
    %v1841 = vunpack.c.h.b16 %v1664
    %v1842 = vunpack.c.l.b16 %v1665
    %v1843 = vunpack.c.h.b16 %v1665
    %v1844 = vunpack.c.l.b16 %v1666
    %v1845 = vunpack.c.h.b16 %v1666
    %v1846 = vunpack.c.l.b16 %v1667
    %v1847 = vunpack.c.h.b16 %v1667
    %v1848 = vunpack.c.l.b16 %v1668
    %v1849 = vunpack.c.h.b16 %v1668
    %v1850 = vunpack.c.l.b16 %v1669
    %v1851 = vunpack.c.h.b16 %v1669
    %v1852 = vunpack.c.l.b16 %v1670
    %v1853 = vunpack.c.h.b16 %v1670
    %v1854 = vunpack.c.l.b16 %v1671
    %v1855 = vunpack.c.h.b16 %v1671
    %v1856 = vunpack.c.l.b16 %v1672
    %v1857 = vunpack.c.h.b16 %v1672
    %v1858 = vunpack.c.l.b16 %v1673
    %v1859 = vunpack.c.h.b16 %v1673
    %v1860 = vunpack.c.l.b16 %v1674
    %v1861 = vunpack.c.h.b16 %v1674
    %v1862 = vunpack.c.l.b16 %v1675
    %v1863 = vunpack.c.h.b16 %v1675
    %v1864 = vunpack.c.l.b16 %v1676
    %v1865 = vunpack.c.h.b16 %v1676
    %v1866 = vunpack.c.l.b16 %v1677
    %v1867 = vunpack.c.h.b16 %v1677
    %v1868 = vunpack.c.l.b16 %v1678
    %v1869 = vunpack.c.h.b16 %v1678
    %v1870 = vunpack.c.l.b16 %v1679
    %v1871 = vunpack.c.h.b16 %v1679
    %v1872 = vunpack.c.l.b16 %v1680
    %v1873 = vunpack.c.h.b16 %v1680
    %v1874 = vunpack.c.l.b16 %v1681
    %v1875 = vunpack.c.h.b16 %v1681
    %v1876 = vunpack.c.l.b16 %v1682
    %v1877 = vunpack.c.h.b16 %v1682
    %v1878 = vunpack.c.l.b16 %v1683
    %v1879 = vunpack.c.h.b16 %v1683
    %v1880 = vunpack.c.l.b16 %v1684
    %v1881 = vunpack.c.h.b16 %v1684
    %v1882 = vunpack.c.l.b16 %v1685
    %v1883 = vunpack.c.h.b16 %v1685
    %v1884 = vunpack.c.l.b16 %v1686
    %v1885 = vunpack.c.h.b16 %v1686
    %v1886 = vpack.c.b16 %v1762, %v1758
    %v1887 = vpack.c.b16 %v1763, %v1759
    %v1888 = vpack.c.b16 %v1764, %v1760
    %v1889 = vpack.c.b16 %v1765, %v1761
    %v1890 = vpack.c.b16 %v1770, %v1766
    %v1891 = vpack.c.b16 %v1771, %v1767
    %v1892 = vpack.c.b16 %v1772, %v1768
    %v1893 = vpack.c.b16 %v1773, %v1769
    %v1894 = vpack.c.b16 %v1778, %v1774
    %v1895 = vpack.c.b16 %v1779, %v1775
    %v1896 = vpack.c.b16 %v1780, %v1776
    %v1897 = vpack.c.b16 %v1781, %v1777
    %v1898 = vpack.c.b16 %v1786, %v1782
    %v1899 = vpack.c.b16 %v1787, %v1783
    %v1900 = vpack.c.b16 %v1788, %v1784
    %v1901 = vpack.c.b16 %v1789, %v1785
    %v1902 = vpack.c.b16 %v1794, %v1790
    %v1903 = vpack.c.b16 %v1795, %v1791
    %v1904 = vpack.c.b16 %v1796, %v1792
    %v1905 = vpack.c.b16 %v1797, %v1793
    %v1906 = vpack.c.b16 %v1802, %v1798
    %v1907 = vpack.c.b16 %v1803, %v1799
    %v1908 = vpack.c.b16 %v1804, %v1800
    %v1909 = vpack.c.b16 %v1805, %v1801
    %v1910 = vpack.c.b16 %v1810, %v1806
    %v1911 = vpack.c.b16 %v1811, %v1807
    %v1912 = vpack.c.b16 %v1812, %v1808
    %v1913 = vpack.c.b16 %v1813, %v1809
    %v1914 = vpack.c.b16 %v1818, %v1814
    %v1915 = vpack.c.b16 %v1819, %v1815
    %v1916 = vpack.c.b16 %v1820, %v1816
    %v1917 = vpack.c.b16 %v1821, %v1817
    %v1918 = vpack.c.b16 %v1826, %v1822
    %v1919 = vpack.c.b16 %v1827, %v1823
    %v1920 = vpack.c.b16 %v1828, %v1824
    %v1921 = vpack.c.b16 %v1829, %v1825
    %v1922 = vpack.c.b16 %v1834, %v1830
    %v1923 = vpack.c.b16 %v1835, %v1831
    %v1924 = vpack.c.b16 %v1836, %v1832
    %v1925 = vpack.c.b16 %v1837, %v1833
    %v1926 = vpack.c.b16 %v1842, %v1838
    %v1927 = vpack.c.b16 %v1843, %v1839
    %v1928 = vpack.c.b16 %v1844, %v1840
    %v1929 = vpack.c.b16 %v1845, %v1841
    %v1930 = vpack.c.b16 %v1850, %v1846
    %v1931 = vpack.c.b16 %v1851, %v1847
    %v1932 = vpack.c.b16 %v1852, %v1848
    %v1933 = vpack.c.b16 %v1853, %v1849
    %v1934 = vpack.c.b16 %v1858, %v1854
    %v1935 = vpack.c.b16 %v1859, %v1855
    %v1936 = vpack.c.b16 %v1860, %v1856
    %v1937 = vpack.c.b16 %v1861, %v1857
    %v1938 = vpack.c.b16 %v1866, %v1862
    %v1939 = vpack.c.b16 %v1867, %v1863
    %v1940 = vpack.c.b16 %v1868, %v1864
    %v1941 = vpack.c.b16 %v1869, %v1865
    %v1942 = vpack.c.b16 %v1874, %v1870
    %v1943 = vpack.c.b16 %v1875, %v1871
    %v1944 = vpack.c.b16 %v1876, %v1872
    %v1945 = vpack.c.b16 %v1877, %v1873
    %v1946 = vpack.c.b16 %v1882, %v1878
    %v1947 = vpack.c.b16 %v1883, %v1879
    %v1948 = vpack.c.b16 %v1884, %v1880
    %v1949 = vpack.c.b16 %v1885, %v1881
    %2014 = vmatprep.subr.bf16.mxu0 %v1915
    %2015 = vmatpush1.bf16.msra.mxu0 %v1914
    %2016 = vmatprep.subr.bf16.mxu0 %v1911
    %2017 = vmatpush1.bf16.msra.mxu0 %v1910
    %2018 = vmatprep.subr.bf16.mxu0 %v1907
    %2019 = vmatpush1.bf16.msra.mxu0 %v1906
    %2020 = vmatprep.subr.bf16.mxu0 %v1903
    %2021 = vmatpush1.bf16.msra.mxu0 %v1902
    %2022 = vmatprep.subr.bf16.mxu0 %v1899
    %2023 = vmatpush1.bf16.msra.mxu0 %v1898
    %2024 = vmatprep.subr.bf16.mxu0 %v1895
    %2025 = vmatpush1.bf16.msra.mxu0 %v1894
    %2026 = vmatprep.subr.bf16.mxu0 %v1891
    %2027 = vmatpush1.bf16.msra.mxu0 %v1890
    %2028 = vmatprep.subr.bf16.mxu0 %v1887
    %2029 = vmatpush1.bf16.msra.mxu0 %v1886
    %2030 = vmatprep.subr.bf16.mxu0 %v1947
    %2031 = vmatpush2.bf16.msra.mxu0 %v1946
    %2032 = vmatprep.subr.bf16.mxu0 %v1943
    %2033 = vmatpush2.bf16.msra.mxu0 %v1942
    %2034 = vmatprep.subr.bf16.mxu0 %v1939
    %2035 = vmatpush2.bf16.msra.mxu0 %v1938
    %2036 = vmatprep.subr.bf16.mxu0 %v1935
    %2037 = vmatpush2.bf16.msra.mxu0 %v1934
    %2038 = vmatprep.subr.bf16.mxu0 %v1931
    %2039 = vmatpush2.bf16.msra.mxu0 %v1930
    %2040 = vmatprep.subr.bf16.mxu0 %v1927
    %2041 = vmatpush2.bf16.msra.mxu0 %v1926
    %2042 = vmatprep.subr.bf16.mxu0 %v1923
    %2043 = vmatpush2.bf16.msra.mxu0 %v1922
    %2044 = vmatprep.subr.bf16.mxu0 %v1919
    %2045 = vmatpush2.bf16.msra.mxu0 %v1918
    %2046 = vmatprep.mubr.bf16.mxu0 %v1691
    %2047 = vmatmul.mubr.bf16.gmra.mxu0 %v1690
    %v2048 = vpop.f32.mrf.mxu0
    %v2049 = vadd.f32 %v122, %v2048
    %v2050 = vpop.f32.mrf.mxu0
    %v2051 = vadd.f32 %v126, %v2050
    %v2052 = vpop.f32.mrf.mxu0
    %v2053 = vpop.f32.mrf.mxu0
    %2054 = vdwg.mxu0
    %2055 = vmatprep.subr.bf16.mxu0 %v1917
    %2056 = vmatpush1.bf16.msra.mxu0 %v1916
    %2057 = vmatprep.subr.bf16.mxu0 %v1913
    %2058 = vmatpush1.bf16.msra.mxu0 %v1912
    %2059 = vmatprep.subr.bf16.mxu0 %v1909
    %2060 = vmatpush1.bf16.msra.mxu0 %v1908
    %2061 = vmatprep.subr.bf16.mxu0 %v1905
    %2062 = vmatpush1.bf16.msra.mxu0 %v1904
    %2063 = vmatprep.subr.bf16.mxu0 %v1901
    %2064 = vmatpush1.bf16.msra.mxu0 %v1900
    %2065 = vmatprep.subr.bf16.mxu0 %v1897
    %2066 = vmatpush1.bf16.msra.mxu0 %v1896
    %2067 = vmatprep.subr.bf16.mxu0 %v1893
    %2068 = vmatpush1.bf16.msra.mxu0 %v1892
    %2069 = vmatprep.subr.bf16.mxu0 %v1889
    %2070 = vmatpush1.bf16.msra.mxu0 %v1888
    %2071 = vmatprep.subr.bf16.mxu0 %v1949
    %2072 = vmatpush2.bf16.msra.mxu0 %v1948
    %2073 = vmatprep.subr.bf16.mxu0 %v1945
    %2074 = vmatpush2.bf16.msra.mxu0 %v1944
    %2075 = vmatprep.subr.bf16.mxu0 %v1941
    %2076 = vmatpush2.bf16.msra.mxu0 %v1940
    %2077 = vmatprep.subr.bf16.mxu0 %v1937
    %2078 = vmatpush2.bf16.msra.mxu0 %v1936
    %2079 = vmatprep.subr.bf16.mxu0 %v1933
    %2080 = vmatpush2.bf16.msra.mxu0 %v1932
    %2081 = vmatprep.subr.bf16.mxu0 %v1929
    %2082 = vmatpush2.bf16.msra.mxu0 %v1928
    %2083 = vmatprep.subr.bf16.mxu0 %v1925
    %2084 = vmatpush2.bf16.msra.mxu0 %v1924
    %2085 = vmatprep.subr.bf16.mxu0 %v1921
    %2086 = vmatpush2.bf16.msra.mxu0 %v1920
    %2087 = vmatprep.mubr.bf16.mxu0 %v1691
    %2088 = vmatmul.mubr.bf16.gmra.mxu0 %v1690
    %v2089 = vpop.f32.mrf.mxu0
    %v2090 = vadd.f32 %v130, %v2089
    %v2091 = vpop.f32.mrf.mxu0
    %v2092 = vadd.f32 %v134, %v2091
    %v2093 = vpop.f32.mrf.mxu0
    %v2094 = vpop.f32.mrf.mxu0
    %2095 = vdwg.mxu0
    %v2096 = vxor.u32 %v2049, 2147483648
    %v2097 = vmul.f32 %v2096, 1.442695
    %v2098 = vpow.pop %v2097
    %v2099 = vadd.f32 %v2098, 1.0
    %v2100 = vrcp.pop %v2099
    %v2101 = vmul.f32 1.0, %v2100
    %v2102 = vxor.u32 %v2051, 2147483648
    %v2103 = vmul.f32 %v2102, 1.442695
    %v2104 = vpow.pop %v2103
    %v2105 = vadd.f32 %v2104, 1.0
    %v2106 = vrcp.pop %v2105
    %v2107 = vmul.f32 1.0, %v2106
    %v2108 = vtanh.pop %v2090
    %v2109 = vxor.u32 %v2092, 2147483648
    %v2110 = vmul.f32 %v2109, 1.442695
    %v2111 = vpow.pop %v2110
    %v2112 = vadd.f32 %v2111, 1.0
    %v2113 = vrcp.pop %v2112
    %v2114 = vmul.f32 1.0, %v2113
    %v2115 = vld [vmem:[#allocation3] sm:$0xff]
    %v2116 = vmul.f32 %v2107, %v2115
    %v2117 = vmul.f32 %v2101, %v2108
    %v2118 = vadd.f32 %v2116, %v2117
    %v2119 = vtanh.pop %v2118
    %v2120 = vmul.f32 %v2114, %v2119
    %2121 = vst [vmem:[#allocation3] sm:$0xff] %v2118
    %v2122 = vpack.c.bf16 %v2120, %v2120
    %2123 = vst [vmem:[#allocation2 + $0x4] sm:$0xf] %v2122
    %v2124 = vstv %s1618
    %vm2125 = vcmp.eq.s32.totalorder %v48, %v2124
    %v2126 = vld [vmem:[#allocation4] sm:$0xff]
    %v2127 = vsel %vm2125, 1, 0
    %2128 = vset.pattern.permute.xlu0 0
    %2129 = vperm.xlu0 %2128, %v2127
    %v2130 = vpop.permute.xlu0 %2129
    %vm2131 = vcmp.eq.s32.totalorder %v2130, 1
    %v2132 = vsel %vm2131, %v2120, %v2126
    %2133 = vst [vmem:[#allocation4] sm:$0xff] %v2132
    %s2134 = sadd.s32 %s50, 4
    %s2135 = scalar_lea.vmem %s1, 16
    %v2136 = vld [vmem:[%s2135] sm:$0xf]
    %2137 = vst [vmem:[#allocation2] sm:$0xf] %v2136
    %v2138 = vld [vmem:[#allocation2] sm:$0xff]
    %v2139 = vld [vmem:[#allocation6] sm:$0xff]
    %v2140 = vld [vmem:[#allocation6 + $0x8] sm:$0xff]
    %v2141 = vld [vmem:[#allocation6 + $0x10] sm:$0xff]
    %v2142 = vld [vmem:[#allocation6 + $0x18] sm:$0xff]
    %v2143 = vld [vmem:[#allocation6 + $0x20] sm:$0xff]
    %v2144 = vld [vmem:[#allocation6 + $0x28] sm:$0xff]
    %v2145 = vld [vmem:[#allocation6 + $0x30] sm:$0xff]
    %v2146 = vld [vmem:[#allocation6 + $0x38] sm:$0xff]
    %v2147 = vld [vmem:[#allocation6 + $0x40] sm:$0xff]
    %v2148 = vld [vmem:[#allocation6 + $0x48] sm:$0xff]
    %v2149 = vld [vmem:[#allocation6 + $0x50] sm:$0xff]
    %v2150 = vld [vmem:[#allocation6 + $0x58] sm:$0xff]
    %v2151 = vld [vmem:[#allocation6 + $0x60] sm:$0xff]
    %v2152 = vld [vmem:[#allocation6 + $0x68] sm:$0xff]
    %v2153 = vld [vmem:[#allocation6 + $0x70] sm:$0xff]
    %v2154 = vld [vmem:[#allocation6 + $0x78] sm:$0xff]
    %v2155 = vld [vmem:[#allocation6 + $0x80] sm:$0xff]
    %v2156 = vld [vmem:[#allocation6 + $0x88] sm:$0xff]
    %v2157 = vld [vmem:[#allocation6 + $0x90] sm:$0xff]
    %v2158 = vld [vmem:[#allocation6 + $0x98] sm:$0xff]
    %v2159 = vld [vmem:[#allocation6 + $0xa0] sm:$0xff]
    %v2160 = vld [vmem:[#allocation6 + $0xa8] sm:$0xff]
    %v2161 = vld [vmem:[#allocation6 + $0xb0] sm:$0xff]
    %v2162 = vld [vmem:[#allocation6 + $0xb8] sm:$0xff]
    %v2163 = vld [vmem:[#allocation6 + $0xc0] sm:$0xff]
    %v2164 = vld [vmem:[#allocation6 + $0xc8] sm:$0xff]
    %v2165 = vld [vmem:[#allocation6 + $0xd0] sm:$0xff]
    %v2166 = vld [vmem:[#allocation6 + $0xd8] sm:$0xff]
    %v2167 = vld [vmem:[#allocation6 + $0xe0] sm:$0xff]
    %v2168 = vld [vmem:[#allocation6 + $0xe8] sm:$0xff]
    %v2169 = vld [vmem:[#allocation6 + $0xf0] sm:$0xff]
    %v2170 = vld [vmem:[#allocation6 + $0xf8] sm:$0xff]
    %v2171 = vld [vmem:[#allocation6 + $0x100] sm:$0xff]
    %v2172 = vld [vmem:[#allocation6 + $0x108] sm:$0xff]
    %v2173 = vld [vmem:[#allocation6 + $0x110] sm:$0xff]
    %v2174 = vld [vmem:[#allocation6 + $0x118] sm:$0xff]
    %v2175 = vld [vmem:[#allocation6 + $0x120] sm:$0xff]
    %v2176 = vld [vmem:[#allocation6 + $0x128] sm:$0xff]
    %v2177 = vld [vmem:[#allocation6 + $0x130] sm:$0xff]
    %v2178 = vld [vmem:[#allocation6 + $0x138] sm:$0xff]
    %v2179 = vld [vmem:[#allocation6 + $0x140] sm:$0xff]
    %v2180 = vld [vmem:[#allocation6 + $0x148] sm:$0xff]
    %v2181 = vld [vmem:[#allocation6 + $0x150] sm:$0xff]
    %v2182 = vld [vmem:[#allocation6 + $0x158] sm:$0xff]
    %v2183 = vld [vmem:[#allocation6 + $0x160] sm:$0xff]
    %v2184 = vld [vmem:[#allocation6 + $0x168] sm:$0xff]
    %v2185 = vld [vmem:[#allocation6 + $0x170] sm:$0xff]
    %v2186 = vld [vmem:[#allocation6 + $0x178] sm:$0xff]
    %v2187 = vld [vmem:[#allocation6 + $0x180] sm:$0xff]
    %v2188 = vld [vmem:[#allocation6 + $0x188] sm:$0xff]
    %v2189 = vld [vmem:[#allocation6 + $0x190] sm:$0xff]
    %v2190 = vld [vmem:[#allocation6 + $0x198] sm:$0xff]
    %v2191 = vld [vmem:[#allocation6 + $0x1a0] sm:$0xff]
    %v2192 = vld [vmem:[#allocation6 + $0x1a8] sm:$0xff]
    %v2193 = vld [vmem:[#allocation6 + $0x1b0] sm:$0xff]
    %v2194 = vld [vmem:[#allocation6 + $0x1b8] sm:$0xff]
    %v2195 = vld [vmem:[#allocation6 + $0x1c0] sm:$0xff]
    %v2196 = vld [vmem:[#allocation6 + $0x1c8] sm:$0xff]
    %v2197 = vld [vmem:[#allocation6 + $0x1d0] sm:$0xff]
    %v2198 = vld [vmem:[#allocation6 + $0x1d8] sm:$0xff]
    %v2199 = vld [vmem:[#allocation6 + $0x1e0] sm:$0xff]
    %v2200 = vld [vmem:[#allocation6 + $0x1e8] sm:$0xff]
    %v2201 = vld [vmem:[#allocation6 + $0x1f0] sm:$0xff]
    %v2202 = vld [vmem:[#allocation6 + $0x1f8] sm:$0xff]
    %v2204 = vunpack.c.l.b16 %v2138
    %v2205 = vunpack.c.h.b16 %v2138
    %v2206 = vpack.c.b16 %v2204, %v2204
    %v2207 = vpack.c.b16 %v2205, %v2205
    %v2274 = vunpack.c.l.b16 %v2139
    %v2275 = vunpack.c.h.b16 %v2139
    %v2276 = vunpack.c.l.b16 %v2140
    %v2277 = vunpack.c.h.b16 %v2140
    %v2278 = vunpack.c.l.b16 %v2141
    %v2279 = vunpack.c.h.b16 %v2141
    %v2280 = vunpack.c.l.b16 %v2142
    %v2281 = vunpack.c.h.b16 %v2142
    %v2282 = vunpack.c.l.b16 %v2143
    %v2283 = vunpack.c.h.b16 %v2143
    %v2284 = vunpack.c.l.b16 %v2144
    %v2285 = vunpack.c.h.b16 %v2144
    %v2286 = vunpack.c.l.b16 %v2145
    %v2287 = vunpack.c.h.b16 %v2145
    %v2288 = vunpack.c.l.b16 %v2146
    %v2289 = vunpack.c.h.b16 %v2146
    %v2290 = vunpack.c.l.b16 %v2147
    %v2291 = vunpack.c.h.b16 %v2147
    %v2292 = vunpack.c.l.b16 %v2148
    %v2293 = vunpack.c.h.b16 %v2148
    %v2294 = vunpack.c.l.b16 %v2149
    %v2295 = vunpack.c.h.b16 %v2149
    %v2296 = vunpack.c.l.b16 %v2150
    %v2297 = vunpack.c.h.b16 %v2150
    %v2298 = vunpack.c.l.b16 %v2151
    %v2299 = vunpack.c.h.b16 %v2151
    %v2300 = vunpack.c.l.b16 %v2152
    %v2301 = vunpack.c.h.b16 %v2152
    %v2302 = vunpack.c.l.b16 %v2153
    %v2303 = vunpack.c.h.b16 %v2153
    %v2304 = vunpack.c.l.b16 %v2154
    %v2305 = vunpack.c.h.b16 %v2154
    %v2306 = vunpack.c.l.b16 %v2155
    %v2307 = vunpack.c.h.b16 %v2155
    %v2308 = vunpack.c.l.b16 %v2156
    %v2309 = vunpack.c.h.b16 %v2156
    %v2310 = vunpack.c.l.b16 %v2157
    %v2311 = vunpack.c.h.b16 %v2157
    %v2312 = vunpack.c.l.b16 %v2158
    %v2313 = vunpack.c.h.b16 %v2158
    %v2314 = vunpack.c.l.b16 %v2159
    %v2315 = vunpack.c.h.b16 %v2159
    %v2316 = vunpack.c.l.b16 %v2160
    %v2317 = vunpack.c.h.b16 %v2160
    %v2318 = vunpack.c.l.b16 %v2161
    %v2319 = vunpack.c.h.b16 %v2161
    %v2320 = vunpack.c.l.b16 %v2162
    %v2321 = vunpack.c.h.b16 %v2162
    %v2322 = vunpack.c.l.b16 %v2163
    %v2323 = vunpack.c.h.b16 %v2163
    %v2324 = vunpack.c.l.b16 %v2164
    %v2325 = vunpack.c.h.b16 %v2164
    %v2326 = vunpack.c.l.b16 %v2165
    %v2327 = vunpack.c.h.b16 %v2165
    %v2328 = vunpack.c.l.b16 %v2166
    %v2329 = vunpack.c.h.b16 %v2166
    %v2330 = vunpack.c.l.b16 %v2167
    %v2331 = vunpack.c.h.b16 %v2167
    %v2332 = vunpack.c.l.b16 %v2168
    %v2333 = vunpack.c.h.b16 %v2168
    %v2334 = vunpack.c.l.b16 %v2169
    %v2335 = vunpack.c.h.b16 %v2169
    %v2336 = vunpack.c.l.b16 %v2170
    %v2337 = vunpack.c.h.b16 %v2170
    %v2338 = vunpack.c.l.b16 %v2171
    %v2339 = vunpack.c.h.b16 %v2171
    %v2340 = vunpack.c.l.b16 %v2172
    %v2341 = vunpack.c.h.b16 %v2172
    %v2342 = vunpack.c.l.b16 %v2173
    %v2343 = vunpack.c.h.b16 %v2173
    %v2344 = vunpack.c.l.b16 %v2174
    %v2345 = vunpack.c.h.b16 %v2174
    %v2346 = vunpack.c.l.b16 %v2175
    %v2347 = vunpack.c.h.b16 %v2175
    %v2348 = vunpack.c.l.b16 %v2176
    %v2349 = vunpack.c.h.b16 %v2176
    %v2350 = vunpack.c.l.b16 %v2177
    %v2351 = vunpack.c.h.b16 %v2177
    %v2352 = vunpack.c.l.b16 %v2178
    %v2353 = vunpack.c.h.b16 %v2178
    %v2354 = vunpack.c.l.b16 %v2179
    %v2355 = vunpack.c.h.b16 %v2179
    %v2356 = vunpack.c.l.b16 %v2180
    %v2357 = vunpack.c.h.b16 %v2180
    %v2358 = vunpack.c.l.b16 %v2181
    %v2359 = vunpack.c.h.b16 %v2181
    %v2360 = vunpack.c.l.b16 %v2182
    %v2361 = vunpack.c.h.b16 %v2182
    %v2362 = vunpack.c.l.b16 %v2183
    %v2363 = vunpack.c.h.b16 %v2183
    %v2364 = vunpack.c.l.b16 %v2184
    %v2365 = vunpack.c.h.b16 %v2184
    %v2366 = vunpack.c.l.b16 %v2185
    %v2367 = vunpack.c.h.b16 %v2185
    %v2368 = vunpack.c.l.b16 %v2186
    %v2369 = vunpack.c.h.b16 %v2186
    %v2370 = vunpack.c.l.b16 %v2187
    %v2371 = vunpack.c.h.b16 %v2187
    %v2372 = vunpack.c.l.b16 %v2188
    %v2373 = vunpack.c.h.b16 %v2188
    %v2374 = vunpack.c.l.b16 %v2189
    %v2375 = vunpack.c.h.b16 %v2189
    %v2376 = vunpack.c.l.b16 %v2190
    %v2377 = vunpack.c.h.b16 %v2190
    %v2378 = vunpack.c.l.b16 %v2191
    %v2379 = vunpack.c.h.b16 %v2191
    %v2380 = vunpack.c.l.b16 %v2192
    %v2381 = vunpack.c.h.b16 %v2192
    %v2382 = vunpack.c.l.b16 %v2193
    %v2383 = vunpack.c.h.b16 %v2193
    %v2384 = vunpack.c.l.b16 %v2194
    %v2385 = vunpack.c.h.b16 %v2194
    %v2386 = vunpack.c.l.b16 %v2195
    %v2387 = vunpack.c.h.b16 %v2195
    %v2388 = vunpack.c.l.b16 %v2196
    %v2389 = vunpack.c.h.b16 %v2196
    %v2390 = vunpack.c.l.b16 %v2197
    %v2391 = vunpack.c.h.b16 %v2197
    %v2392 = vunpack.c.l.b16 %v2198
    %v2393 = vunpack.c.h.b16 %v2198
    %v2394 = vunpack.c.l.b16 %v2199
    %v2395 = vunpack.c.h.b16 %v2199
    %v2396 = vunpack.c.l.b16 %v2200
    %v2397 = vunpack.c.h.b16 %v2200
    %v2398 = vunpack.c.l.b16 %v2201
    %v2399 = vunpack.c.h.b16 %v2201
    %v2400 = vunpack.c.l.b16 %v2202
    %v2401 = vunpack.c.h.b16 %v2202
    %v2402 = vpack.c.b16 %v2278, %v2274
    %v2403 = vpack.c.b16 %v2279, %v2275
    %v2404 = vpack.c.b16 %v2280, %v2276
    %v2405 = vpack.c.b16 %v2281, %v2277
    %v2406 = vpack.c.b16 %v2286, %v2282
    %v2407 = vpack.c.b16 %v2287, %v2283
    %v2408 = vpack.c.b16 %v2288, %v2284
    %v2409 = vpack.c.b16 %v2289, %v2285
    %v2410 = vpack.c.b16 %v2294, %v2290
    %v2411 = vpack.c.b16 %v2295, %v2291
    %v2412 = vpack.c.b16 %v2296, %v2292
    %v2413 = vpack.c.b16 %v2297, %v2293
    %v2414 = vpack.c.b16 %v2302, %v2298
    %v2415 = vpack.c.b16 %v2303, %v2299
    %v2416 = vpack.c.b16 %v2304, %v2300
    %v2417 = vpack.c.b16 %v2305, %v2301
    %v2418 = vpack.c.b16 %v2310, %v2306
    %v2419 = vpack.c.b16 %v2311, %v2307
    %v2420 = vpack.c.b16 %v2312, %v2308
    %v2421 = vpack.c.b16 %v2313, %v2309
    %v2422 = vpack.c.b16 %v2318, %v2314
    %v2423 = vpack.c.b16 %v2319, %v2315
    %v2424 = vpack.c.b16 %v2320, %v2316
    %v2425 = vpack.c.b16 %v2321, %v2317
    %v2426 = vpack.c.b16 %v2326, %v2322
    %v2427 = vpack.c.b16 %v2327, %v2323
    %v2428 = vpack.c.b16 %v2328, %v2324
    %v2429 = vpack.c.b16 %v2329, %v2325
    %v2430 = vpack.c.b16 %v2334, %v2330
    %v2431 = vpack.c.b16 %v2335, %v2331
    %v2432 = vpack.c.b16 %v2336, %v2332
    %v2433 = vpack.c.b16 %v2337, %v2333
    %v2434 = vpack.c.b16 %v2342, %v2338
    %v2435 = vpack.c.b16 %v2343, %v2339
    %v2436 = vpack.c.b16 %v2344, %v2340
    %v2437 = vpack.c.b16 %v2345, %v2341
    %v2438 = vpack.c.b16 %v2350, %v2346
    %v2439 = vpack.c.b16 %v2351, %v2347
    %v2440 = vpack.c.b16 %v2352, %v2348
    %v2441 = vpack.c.b16 %v2353, %v2349
    %v2442 = vpack.c.b16 %v2358, %v2354
    %v2443 = vpack.c.b16 %v2359, %v2355
    %v2444 = vpack.c.b16 %v2360, %v2356
    %v2445 = vpack.c.b16 %v2361, %v2357
    %v2446 = vpack.c.b16 %v2366, %v2362
    %v2447 = vpack.c.b16 %v2367, %v2363
    %v2448 = vpack.c.b16 %v2368, %v2364
    %v2449 = vpack.c.b16 %v2369, %v2365
    %v2450 = vpack.c.b16 %v2374, %v2370
    %v2451 = vpack.c.b16 %v2375, %v2371
    %v2452 = vpack.c.b16 %v2376, %v2372
    %v2453 = vpack.c.b16 %v2377, %v2373
    %v2454 = vpack.c.b16 %v2382, %v2378
    %v2455 = vpack.c.b16 %v2383, %v2379
    %v2456 = vpack.c.b16 %v2384, %v2380
    %v2457 = vpack.c.b16 %v2385, %v2381
    %v2458 = vpack.c.b16 %v2390, %v2386
    %v2459 = vpack.c.b16 %v2391, %v2387
    %v2460 = vpack.c.b16 %v2392, %v2388
    %v2461 = vpack.c.b16 %v2393, %v2389
    %v2462 = vpack.c.b16 %v2398, %v2394
    %v2463 = vpack.c.b16 %v2399, %v2395
    %v2464 = vpack.c.b16 %v2400, %v2396
    %v2465 = vpack.c.b16 %v2401, %v2397
    %2530 = vmatprep.subr.bf16.mxu0 %v2431
    %2531 = vmatpush1.bf16.msra.mxu0 %v2430
    %2532 = vmatprep.subr.bf16.mxu0 %v2427
    %2533 = vmatpush1.bf16.msra.mxu0 %v2426
    %2534 = vmatprep.subr.bf16.mxu0 %v2423
    %2535 = vmatpush1.bf16.msra.mxu0 %v2422
    %2536 = vmatprep.subr.bf16.mxu0 %v2419
    %2537 = vmatpush1.bf16.msra.mxu0 %v2418
    %2538 = vmatprep.subr.bf16.mxu0 %v2415
    %2539 = vmatpush1.bf16.msra.mxu0 %v2414
    %2540 = vmatprep.subr.bf16.mxu0 %v2411
    %2541 = vmatpush1.bf16.msra.mxu0 %v2410
    %2542 = vmatprep.subr.bf16.mxu0 %v2407
    %2543 = vmatpush1.bf16.msra.mxu0 %v2406
    %2544 = vmatprep.subr.bf16.mxu0 %v2403
    %2545 = vmatpush1.bf16.msra.mxu0 %v2402
    %2546 = vmatprep.subr.bf16.mxu0 %v2463
    %2547 = vmatpush2.bf16.msra.mxu0 %v2462
    %2548 = vmatprep.subr.bf16.mxu0 %v2459
    %2549 = vmatpush2.bf16.msra.mxu0 %v2458
    %2550 = vmatprep.subr.bf16.mxu0 %v2455
    %2551 = vmatpush2.bf16.msra.mxu0 %v2454
    %2552 = vmatprep.subr.bf16.mxu0 %v2451
    %2553 = vmatpush2.bf16.msra.mxu0 %v2450
    %2554 = vmatprep.subr.bf16.mxu0 %v2447
    %2555 = vmatpush2.bf16.msra.mxu0 %v2446
    %2556 = vmatprep.subr.bf16.mxu0 %v2443
    %2557 = vmatpush2.bf16.msra.mxu0 %v2442
    %2558 = vmatprep.subr.bf16.mxu0 %v2439
    %2559 = vmatpush2.bf16.msra.mxu0 %v2438
    %2560 = vmatprep.subr.bf16.mxu0 %v2435
    %2561 = vmatpush2.bf16.msra.mxu0 %v2434
    %2562 = vmatprep.mubr.bf16.mxu0 %v2207
    %2563 = vmatmul.mubr.bf16.gmra.mxu0 %v2206
    %v2564 = vpop.f32.mrf.mxu0
    %v2565 = vadd.f32 %v122, %v2564
    %v2566 = vpop.f32.mrf.mxu0
    %v2567 = vadd.f32 %v126, %v2566
    %v2568 = vpop.f32.mrf.mxu0
    %v2569 = vpop.f32.mrf.mxu0
    %2570 = vdwg.mxu0
    %2571 = vmatprep.subr.bf16.mxu0 %v2433
    %2572 = vmatpush1.bf16.msra.mxu0 %v2432
    %2573 = vmatprep.subr.bf16.mxu0 %v2429
    %2574 = vmatpush1.bf16.msra.mxu0 %v2428
    %2575 = vmatprep.subr.bf16.mxu0 %v2425
    %2576 = vmatpush1.bf16.msra.mxu0 %v2424
    %2577 = vmatprep.subr.bf16.mxu0 %v2421
    %2578 = vmatpush1.bf16.msra.mxu0 %v2420
    %2579 = vmatprep.subr.bf16.mxu0 %v2417
    %2580 = vmatpush1.bf16.msra.mxu0 %v2416
    %2581 = vmatprep.subr.bf16.mxu0 %v2413
    %2582 = vmatpush1.bf16.msra.mxu0 %v2412
    %2583 = vmatprep.subr.bf16.mxu0 %v2409
    %2584 = vmatpush1.bf16.msra.mxu0 %v2408
    %2585 = vmatprep.subr.bf16.mxu0 %v2405
    %2586 = vmatpush1.bf16.msra.mxu0 %v2404
    %2587 = vmatprep.subr.bf16.mxu0 %v2465
    %2588 = vmatpush2.bf16.msra.mxu0 %v2464
    %2589 = vmatprep.subr.bf16.mxu0 %v2461
    %2590 = vmatpush2.bf16.msra.mxu0 %v2460
    %2591 = vmatprep.subr.bf16.mxu0 %v2457
    %2592 = vmatpush2.bf16.msra.mxu0 %v2456
    %2593 = vmatprep.subr.bf16.mxu0 %v2453
    %2594 = vmatpush2.bf16.msra.mxu0 %v2452
    %2595 = vmatprep.subr.bf16.mxu0 %v2449
    %2596 = vmatpush2.bf16.msra.mxu0 %v2448
    %2597 = vmatprep.subr.bf16.mxu0 %v2445
    %2598 = vmatpush2.bf16.msra.mxu0 %v2444
    %2599 = vmatprep.subr.bf16.mxu0 %v2441
    %2600 = vmatpush2.bf16.msra.mxu0 %v2440
    %2601 = vmatprep.subr.bf16.mxu0 %v2437
    %2602 = vmatpush2.bf16.msra.mxu0 %v2436
    %2603 = vmatprep.mubr.bf16.mxu0 %v2207
    %2604 = vmatmul.mubr.bf16.gmra.mxu0 %v2206
    %v2605 = vpop.f32.mrf.mxu0
    %v2606 = vadd.f32 %v130, %v2605
    %v2607 = vpop.f32.mrf.mxu0
    %v2608 = vadd.f32 %v134, %v2607
    %v2609 = vpop.f32.mrf.mxu0
    %v2610 = vpop.f32.mrf.mxu0
    %2611 = vdwg.mxu0
    %v2612 = vxor.u32 %v2565, 2147483648
    %v2613 = vmul.f32 %v2612, 1.442695
    %v2614 = vpow.pop %v2613
    %v2615 = vadd.f32 %v2614, 1.0
    %v2616 = vrcp.pop %v2615
    %v2617 = vmul.f32 1.0, %v2616
    %v2618 = vxor.u32 %v2567, 2147483648
    %v2619 = vmul.f32 %v2618, 1.442695
    %v2620 = vpow.pop %v2619
    %v2621 = vadd.f32 %v2620, 1.0
    %v2622 = vrcp.pop %v2621
    %v2623 = vmul.f32 1.0, %v2622
    %v2624 = vtanh.pop %v2606
    %v2625 = vxor.u32 %v2608, 2147483648
    %v2626 = vmul.f32 %v2625, 1.442695
    %v2627 = vpow.pop %v2626
    %v2628 = vadd.f32 %v2627, 1.0
    %v2629 = vrcp.pop %v2628
    %v2630 = vmul.f32 1.0, %v2629
    %v2631 = vld [vmem:[#allocation3] sm:$0xff]
    %v2632 = vmul.f32 %v2623, %v2631
    %v2633 = vmul.f32 %v2617, %v2624
    %v2634 = vadd.f32 %v2632, %v2633
    %v2635 = vtanh.pop %v2634
    %v2636 = vmul.f32 %v2630, %v2635
    %2637 = vst [vmem:[#allocation3] sm:$0xff] %v2634
    %v2638 = vpack.c.bf16 %v2636, %v2636
    %2639 = vst [vmem:[#allocation2 + $0x4] sm:$0xf] %v2638
    %v2640 = vstv %s2134
    %vm2641 = vcmp.eq.s32.totalorder %v48, %v2640
    %v2642 = vld [vmem:[#allocation4] sm:$0xff]
    %v2643 = vsel %vm2641, 1, 0
    %2644 = vset.pattern.permute.xlu0 0
    %2645 = vperm.xlu0 %2644, %v2643
    %v2646 = vpop.permute.xlu0 %2645
    %vm2647 = vcmp.eq.s32.totalorder %v2646, 1
    %v2648 = vsel %vm2647, %v2636, %v2642
    %2649 = vst [vmem:[#allocation4] sm:$0xff] %v2648
    %s2650 = sadd.s32 %s50, 5
    %s2651 = scalar_lea.vmem %s1, 20
    %v2652 = vld [vmem:[%s2651] sm:$0xf]
    %2653 = vst [vmem:[#allocation2] sm:$0xf] %v2652
    %v2654 = vld [vmem:[#allocation2] sm:$0xff]
    %v2655 = vld [vmem:[#allocation6] sm:$0xff]
    %v2656 = vld [vmem:[#allocation6 + $0x8] sm:$0xff]
    %v2657 = vld [vmem:[#allocation6 + $0x10] sm:$0xff]
    %v2658 = vld [vmem:[#allocation6 + $0x18] sm:$0xff]
    %v2659 = vld [vmem:[#allocation6 + $0x20] sm:$0xff]
    %v2660 = vld [vmem:[#allocation6 + $0x28] sm:$0xff]
    %v2661 = vld [vmem:[#allocation6 + $0x30] sm:$0xff]
    %v2662 = vld [vmem:[#allocation6 + $0x38] sm:$0xff]
    %v2663 = vld [vmem:[#allocation6 + $0x40] sm:$0xff]
    %v2664 = vld [vmem:[#allocation6 + $0x48] sm:$0xff]
    %v2665 = vld [vmem:[#allocation6 + $0x50] sm:$0xff]
    %v2666 = vld [vmem:[#allocation6 + $0x58] sm:$0xff]
    %v2667 = vld [vmem:[#allocation6 + $0x60] sm:$0xff]
    %v2668 = vld [vmem:[#allocation6 + $0x68] sm:$0xff]
    %v2669 = vld [vmem:[#allocation6 + $0x70] sm:$0xff]
    %v2670 = vld [vmem:[#allocation6 + $0x78] sm:$0xff]
    %v2671 = vld [vmem:[#allocation6 + $0x80] sm:$0xff]
    %v2672 = vld [vmem:[#allocation6 + $0x88] sm:$0xff]
    %v2673 = vld [vmem:[#allocation6 + $0x90] sm:$0xff]
    %v2674 = vld [vmem:[#allocation6 + $0x98] sm:$0xff]
    %v2675 = vld [vmem:[#allocation6 + $0xa0] sm:$0xff]
    %v2676 = vld [vmem:[#allocation6 + $0xa8] sm:$0xff]
    %v2677 = vld [vmem:[#allocation6 + $0xb0] sm:$0xff]
    %v2678 = vld [vmem:[#allocation6 + $0xb8] sm:$0xff]
    %v2679 = vld [vmem:[#allocation6 + $0xc0] sm:$0xff]
    %v2680 = vld [vmem:[#allocation6 + $0xc8] sm:$0xff]
    %v2681 = vld [vmem:[#allocation6 + $0xd0] sm:$0xff]
    %v2682 = vld [vmem:[#allocation6 + $0xd8] sm:$0xff]
    %v2683 = vld [vmem:[#allocation6 + $0xe0] sm:$0xff]
    %v2684 = vld [vmem:[#allocation6 + $0xe8] sm:$0xff]
    %v2685 = vld [vmem:[#allocation6 + $0xf0] sm:$0xff]
    %v2686 = vld [vmem:[#allocation6 + $0xf8] sm:$0xff]
    %v2687 = vld [vmem:[#allocation6 + $0x100] sm:$0xff]
    %v2688 = vld [vmem:[#allocation6 + $0x108] sm:$0xff]
    %v2689 = vld [vmem:[#allocation6 + $0x110] sm:$0xff]
    %v2690 = vld [vmem:[#allocation6 + $0x118] sm:$0xff]
    %v2691 = vld [vmem:[#allocation6 + $0x120] sm:$0xff]
    %v2692 = vld [vmem:[#allocation6 + $0x128] sm:$0xff]
    %v2693 = vld [vmem:[#allocation6 + $0x130] sm:$0xff]
    %v2694 = vld [vmem:[#allocation6 + $0x138] sm:$0xff]
    %v2695 = vld [vmem:[#allocation6 + $0x140] sm:$0xff]
    %v2696 = vld [vmem:[#allocation6 + $0x148] sm:$0xff]
    %v2697 = vld [vmem:[#allocation6 + $0x150] sm:$0xff]
    %v2698 = vld [vmem:[#allocation6 + $0x158] sm:$0xff]
    %v2699 = vld [vmem:[#allocation6 + $0x160] sm:$0xff]
    %v2700 = vld [vmem:[#allocation6 + $0x168] sm:$0xff]
    %v2701 = vld [vmem:[#allocation6 + $0x170] sm:$0xff]
    %v2702 = vld [vmem:[#allocation6 + $0x178] sm:$0xff]
    %v2703 = vld [vmem:[#allocation6 + $0x180] sm:$0xff]
    %v2704 = vld [vmem:[#allocation6 + $0x188] sm:$0xff]
    %v2705 = vld [vmem:[#allocation6 + $0x190] sm:$0xff]
    %v2706 = vld [vmem:[#allocation6 + $0x198] sm:$0xff]
    %v2707 = vld [vmem:[#allocation6 + $0x1a0] sm:$0xff]
    %v2708 = vld [vmem:[#allocation6 + $0x1a8] sm:$0xff]
    %v2709 = vld [vmem:[#allocation6 + $0x1b0] sm:$0xff]
    %v2710 = vld [vmem:[#allocation6 + $0x1b8] sm:$0xff]
    %v2711 = vld [vmem:[#allocation6 + $0x1c0] sm:$0xff]
    %v2712 = vld [vmem:[#allocation6 + $0x1c8] sm:$0xff]
    %v2713 = vld [vmem:[#allocation6 + $0x1d0] sm:$0xff]
    %v2714 = vld [vmem:[#allocation6 + $0x1d8] sm:$0xff]
    %v2715 = vld [vmem:[#allocation6 + $0x1e0] sm:$0xff]
    %v2716 = vld [vmem:[#allocation6 + $0x1e8] sm:$0xff]
    %v2717 = vld [vmem:[#allocation6 + $0x1f0] sm:$0xff]
    %v2718 = vld [vmem:[#allocation6 + $0x1f8] sm:$0xff]
    %v2720 = vunpack.c.l.b16 %v2654
    %v2721 = vunpack.c.h.b16 %v2654
    %v2722 = vpack.c.b16 %v2720, %v2720
    %v2723 = vpack.c.b16 %v2721, %v2721
    %v2790 = vunpack.c.l.b16 %v2655
    %v2791 = vunpack.c.h.b16 %v2655
    %v2792 = vunpack.c.l.b16 %v2656
    %v2793 = vunpack.c.h.b16 %v2656
    %v2794 = vunpack.c.l.b16 %v2657
    %v2795 = vunpack.c.h.b16 %v2657
    %v2796 = vunpack.c.l.b16 %v2658
    %v2797 = vunpack.c.h.b16 %v2658
    %v2798 = vunpack.c.l.b16 %v2659
    %v2799 = vunpack.c.h.b16 %v2659
    %v2800 = vunpack.c.l.b16 %v2660
    %v2801 = vunpack.c.h.b16 %v2660
    %v2802 = vunpack.c.l.b16 %v2661
    %v2803 = vunpack.c.h.b16 %v2661
    %v2804 = vunpack.c.l.b16 %v2662
    %v2805 = vunpack.c.h.b16 %v2662
    %v2806 = vunpack.c.l.b16 %v2663
    %v2807 = vunpack.c.h.b16 %v2663
    %v2808 = vunpack.c.l.b16 %v2664
    %v2809 = vunpack.c.h.b16 %v2664
    %v2810 = vunpack.c.l.b16 %v2665
    %v2811 = vunpack.c.h.b16 %v2665
    %v2812 = vunpack.c.l.b16 %v2666
    %v2813 = vunpack.c.h.b16 %v2666
    %v2814 = vunpack.c.l.b16 %v2667
    %v2815 = vunpack.c.h.b16 %v2667
    %v2816 = vunpack.c.l.b16 %v2668
    %v2817 = vunpack.c.h.b16 %v2668
    %v2818 = vunpack.c.l.b16 %v2669
    %v2819 = vunpack.c.h.b16 %v2669
    %v2820 = vunpack.c.l.b16 %v2670
    %v2821 = vunpack.c.h.b16 %v2670
    %v2822 = vunpack.c.l.b16 %v2671
    %v2823 = vunpack.c.h.b16 %v2671
    %v2824 = vunpack.c.l.b16 %v2672
    %v2825 = vunpack.c.h.b16 %v2672
    %v2826 = vunpack.c.l.b16 %v2673
    %v2827 = vunpack.c.h.b16 %v2673
    %v2828 = vunpack.c.l.b16 %v2674
    %v2829 = vunpack.c.h.b16 %v2674
    %v2830 = vunpack.c.l.b16 %v2675
    %v2831 = vunpack.c.h.b16 %v2675
    %v2832 = vunpack.c.l.b16 %v2676
    %v2833 = vunpack.c.h.b16 %v2676
    %v2834 = vunpack.c.l.b16 %v2677
    %v2835 = vunpack.c.h.b16 %v2677
    %v2836 = vunpack.c.l.b16 %v2678
    %v2837 = vunpack.c.h.b16 %v2678
    %v2838 = vunpack.c.l.b16 %v2679
    %v2839 = vunpack.c.h.b16 %v2679
    %v2840 = vunpack.c.l.b16 %v2680
    %v2841 = vunpack.c.h.b16 %v2680
    %v2842 = vunpack.c.l.b16 %v2681
    %v2843 = vunpack.c.h.b16 %v2681
    %v2844 = vunpack.c.l.b16 %v2682
    %v2845 = vunpack.c.h.b16 %v2682
    %v2846 = vunpack.c.l.b16 %v2683
    %v2847 = vunpack.c.h.b16 %v2683
    %v2848 = vunpack.c.l.b16 %v2684
    %v2849 = vunpack.c.h.b16 %v2684
    %v2850 = vunpack.c.l.b16 %v2685
    %v2851 = vunpack.c.h.b16 %v2685
    %v2852 = vunpack.c.l.b16 %v2686
    %v2853 = vunpack.c.h.b16 %v2686
    %v2854 = vunpack.c.l.b16 %v2687
    %v2855 = vunpack.c.h.b16 %v2687
    %v2856 = vunpack.c.l.b16 %v2688
    %v2857 = vunpack.c.h.b16 %v2688
    %v2858 = vunpack.c.l.b16 %v2689
    %v2859 = vunpack.c.h.b16 %v2689
    %v2860 = vunpack.c.l.b16 %v2690
    %v2861 = vunpack.c.h.b16 %v2690
    %v2862 = vunpack.c.l.b16 %v2691
    %v2863 = vunpack.c.h.b16 %v2691
    %v2864 = vunpack.c.l.b16 %v2692
    %v2865 = vunpack.c.h.b16 %v2692
    %v2866 = vunpack.c.l.b16 %v2693
    %v2867 = vunpack.c.h.b16 %v2693
    %v2868 = vunpack.c.l.b16 %v2694
    %v2869 = vunpack.c.h.b16 %v2694
    %v2870 = vunpack.c.l.b16 %v2695
    %v2871 = vunpack.c.h.b16 %v2695
    %v2872 = vunpack.c.l.b16 %v2696
    %v2873 = vunpack.c.h.b16 %v2696
    %v2874 = vunpack.c.l.b16 %v2697
    %v2875 = vunpack.c.h.b16 %v2697
    %v2876 = vunpack.c.l.b16 %v2698
    %v2877 = vunpack.c.h.b16 %v2698
    %v2878 = vunpack.c.l.b16 %v2699
    %v2879 = vunpack.c.h.b16 %v2699
    %v2880 = vunpack.c.l.b16 %v2700
    %v2881 = vunpack.c.h.b16 %v2700
    %v2882 = vunpack.c.l.b16 %v2701
    %v2883 = vunpack.c.h.b16 %v2701
    %v2884 = vunpack.c.l.b16 %v2702
    %v2885 = vunpack.c.h.b16 %v2702
    %v2886 = vunpack.c.l.b16 %v2703
    %v2887 = vunpack.c.h.b16 %v2703
    %v2888 = vunpack.c.l.b16 %v2704
    %v2889 = vunpack.c.h.b16 %v2704
    %v2890 = vunpack.c.l.b16 %v2705
    %v2891 = vunpack.c.h.b16 %v2705
    %v2892 = vunpack.c.l.b16 %v2706
    %v2893 = vunpack.c.h.b16 %v2706
    %v2894 = vunpack.c.l.b16 %v2707
    %v2895 = vunpack.c.h.b16 %v2707
    %v2896 = vunpack.c.l.b16 %v2708
    %v2897 = vunpack.c.h.b16 %v2708
    %v2898 = vunpack.c.l.b16 %v2709
    %v2899 = vunpack.c.h.b16 %v2709
    %v2900 = vunpack.c.l.b16 %v2710
    %v2901 = vunpack.c.h.b16 %v2710
    %v2902 = vunpack.c.l.b16 %v2711
    %v2903 = vunpack.c.h.b16 %v2711
    %v2904 = vunpack.c.l.b16 %v2712
    %v2905 = vunpack.c.h.b16 %v2712
    %v2906 = vunpack.c.l.b16 %v2713
    %v2907 = vunpack.c.h.b16 %v2713
    %v2908 = vunpack.c.l.b16 %v2714
    %v2909 = vunpack.c.h.b16 %v2714
    %v2910 = vunpack.c.l.b16 %v2715
    %v2911 = vunpack.c.h.b16 %v2715
    %v2912 = vunpack.c.l.b16 %v2716
    %v2913 = vunpack.c.h.b16 %v2716
    %v2914 = vunpack.c.l.b16 %v2717
    %v2915 = vunpack.c.h.b16 %v2717
    %v2916 = vunpack.c.l.b16 %v2718
    %v2917 = vunpack.c.h.b16 %v2718
    %v2918 = vpack.c.b16 %v2794, %v2790
    %v2919 = vpack.c.b16 %v2795, %v2791
    %v2920 = vpack.c.b16 %v2796, %v2792
    %v2921 = vpack.c.b16 %v2797, %v2793
    %v2922 = vpack.c.b16 %v2802, %v2798
    %v2923 = vpack.c.b16 %v2803, %v2799
    %v2924 = vpack.c.b16 %v2804, %v2800
    %v2925 = vpack.c.b16 %v2805, %v2801
    %v2926 = vpack.c.b16 %v2810, %v2806
    %v2927 = vpack.c.b16 %v2811, %v2807
    %v2928 = vpack.c.b16 %v2812, %v2808
    %v2929 = vpack.c.b16 %v2813, %v2809
    %v2930 = vpack.c.b16 %v2818, %v2814
    %v2931 = vpack.c.b16 %v2819, %v2815
    %v2932 = vpack.c.b16 %v2820, %v2816
    %v2933 = vpack.c.b16 %v2821, %v2817
    %v2934 = vpack.c.b16 %v2826, %v2822
    %v2935 = vpack.c.b16 %v2827, %v2823
    %v2936 = vpack.c.b16 %v2828, %v2824
    %v2937 = vpack.c.b16 %v2829, %v2825
    %v2938 = vpack.c.b16 %v2834, %v2830
    %v2939 = vpack.c.b16 %v2835, %v2831
    %v2940 = vpack.c.b16 %v2836, %v2832
    %v2941 = vpack.c.b16 %v2837, %v2833
    %v2942 = vpack.c.b16 %v2842, %v2838
    %v2943 = vpack.c.b16 %v2843, %v2839
    %v2944 = vpack.c.b16 %v2844, %v2840
    %v2945 = vpack.c.b16 %v2845, %v2841
    %v2946 = vpack.c.b16 %v2850, %v2846
    %v2947 = vpack.c.b16 %v2851, %v2847
    %v2948 = vpack.c.b16 %v2852, %v2848
    %v2949 = vpack.c.b16 %v2853, %v2849
    %v2950 = vpack.c.b16 %v2858, %v2854
    %v2951 = vpack.c.b16 %v2859, %v2855
    %v2952 = vpack.c.b16 %v2860, %v2856
    %v2953 = vpack.c.b16 %v2861, %v2857
    %v2954 = vpack.c.b16 %v2866, %v2862
    %v2955 = vpack.c.b16 %v2867, %v2863
    %v2956 = vpack.c.b16 %v2868, %v2864
    %v2957 = vpack.c.b16 %v2869, %v2865
    %v2958 = vpack.c.b16 %v2874, %v2870
    %v2959 = vpack.c.b16 %v2875, %v2871
    %v2960 = vpack.c.b16 %v2876, %v2872
    %v2961 = vpack.c.b16 %v2877, %v2873
    %v2962 = vpack.c.b16 %v2882, %v2878
    %v2963 = vpack.c.b16 %v2883, %v2879
    %v2964 = vpack.c.b16 %v2884, %v2880
    %v2965 = vpack.c.b16 %v2885, %v2881
    %v2966 = vpack.c.b16 %v2890, %v2886
    %v2967 = vpack.c.b16 %v2891, %v2887
    %v2968 = vpack.c.b16 %v2892, %v2888
    %v2969 = vpack.c.b16 %v2893, %v2889
    %v2970 = vpack.c.b16 %v2898, %v2894
    %v2971 = vpack.c.b16 %v2899, %v2895
    %v2972 = vpack.c.b16 %v2900, %v2896
    %v2973 = vpack.c.b16 %v2901, %v2897
    %v2974 = vpack.c.b16 %v2906, %v2902
    %v2975 = vpack.c.b16 %v2907, %v2903
    %v2976 = vpack.c.b16 %v2908, %v2904
    %v2977 = vpack.c.b16 %v2909, %v2905
    %v2978 = vpack.c.b16 %v2914, %v2910
    %v2979 = vpack.c.b16 %v2915, %v2911
    %v2980 = vpack.c.b16 %v2916, %v2912
    %v2981 = vpack.c.b16 %v2917, %v2913
    %3046 = vmatprep.subr.bf16.mxu0 %v2947
    %3047 = vmatpush1.bf16.msra.mxu0 %v2946
    %3048 = vmatprep.subr.bf16.mxu0 %v2943
    %3049 = vmatpush1.bf16.msra.mxu0 %v2942
    %3050 = vmatprep.subr.bf16.mxu0 %v2939
    %3051 = vmatpush1.bf16.msra.mxu0 %v2938
    %3052 = vmatprep.subr.bf16.mxu0 %v2935
    %3053 = vmatpush1.bf16.msra.mxu0 %v2934
    %3054 = vmatprep.subr.bf16.mxu0 %v2931
    %3055 = vmatpush1.bf16.msra.mxu0 %v2930
    %3056 = vmatprep.subr.bf16.mxu0 %v2927
    %3057 = vmatpush1.bf16.msra.mxu0 %v2926
    %3058 = vmatprep.subr.bf16.mxu0 %v2923
    %3059 = vmatpush1.bf16.msra.mxu0 %v2922
    %3060 = vmatprep.subr.bf16.mxu0 %v2919
    %3061 = vmatpush1.bf16.msra.mxu0 %v2918
    %3062 = vmatprep.subr.bf16.mxu0 %v2979
    %3063 = vmatpush2.bf16.msra.mxu0 %v2978
    %3064 = vmatprep.subr.bf16.mxu0 %v2975
    %3065 = vmatpush2.bf16.msra.mxu0 %v2974
    %3066 = vmatprep.subr.bf16.mxu0 %v2971
    %3067 = vmatpush2.bf16.msra.mxu0 %v2970
    %3068 = vmatprep.subr.bf16.mxu0 %v2967
    %3069 = vmatpush2.bf16.msra.mxu0 %v2966
    %3070 = vmatprep.subr.bf16.mxu0 %v2963
    %3071 = vmatpush2.bf16.msra.mxu0 %v2962
    %3072 = vmatprep.subr.bf16.mxu0 %v2959
    %3073 = vmatpush2.bf16.msra.mxu0 %v2958
    %3074 = vmatprep.subr.bf16.mxu0 %v2955
    %3075 = vmatpush2.bf16.msra.mxu0 %v2954
    %3076 = vmatprep.subr.bf16.mxu0 %v2951
    %3077 = vmatpush2.bf16.msra.mxu0 %v2950
    %3078 = vmatprep.mubr.bf16.mxu0 %v2723
    %3079 = vmatmul.mubr.bf16.gmra.mxu0 %v2722
    %v3080 = vpop.f32.mrf.mxu0
    %v3081 = vadd.f32 %v122, %v3080
    %v3082 = vpop.f32.mrf.mxu0
    %v3083 = vadd.f32 %v126, %v3082
    %v3084 = vpop.f32.mrf.mxu0
    %v3085 = vpop.f32.mrf.mxu0
    %3086 = vdwg.mxu0
    %3087 = vmatprep.subr.bf16.mxu0 %v2949
    %3088 = vmatpush1.bf16.msra.mxu0 %v2948
    %3089 = vmatprep.subr.bf16.mxu0 %v2945
    %3090 = vmatpush1.bf16.msra.mxu0 %v2944
    %3091 = vmatprep.subr.bf16.mxu0 %v2941
    %3092 = vmatpush1.bf16.msra.mxu0 %v2940
    %3093 = vmatprep.subr.bf16.mxu0 %v2937
    %3094 = vmatpush1.bf16.msra.mxu0 %v2936
    %3095 = vmatprep.subr.bf16.mxu0 %v2933
    %3096 = vmatpush1.bf16.msra.mxu0 %v2932
    %3097 = vmatprep.subr.bf16.mxu0 %v2929
    %3098 = vmatpush1.bf16.msra.mxu0 %v2928
    %3099 = vmatprep.subr.bf16.mxu0 %v2925
    %3100 = vmatpush1.bf16.msra.mxu0 %v2924
    %3101 = vmatprep.subr.bf16.mxu0 %v2921
    %3102 = vmatpush1.bf16.msra.mxu0 %v2920
    %3103 = vmatprep.subr.bf16.mxu0 %v2981
    %3104 = vmatpush2.bf16.msra.mxu0 %v2980
    %3105 = vmatprep.subr.bf16.mxu0 %v2977
    %3106 = vmatpush2.bf16.msra.mxu0 %v2976
    %3107 = vmatprep.subr.bf16.mxu0 %v2973
    %3108 = vmatpush2.bf16.msra.mxu0 %v2972
    %3109 = vmatprep.subr.bf16.mxu0 %v2969
    %3110 = vmatpush2.bf16.msra.mxu0 %v2968
    %3111 = vmatprep.subr.bf16.mxu0 %v2965
    %3112 = vmatpush2.bf16.msra.mxu0 %v2964
    %3113 = vmatprep.subr.bf16.mxu0 %v2961
    %3114 = vmatpush2.bf16.msra.mxu0 %v2960
    %3115 = vmatprep.subr.bf16.mxu0 %v2957
    %3116 = vmatpush2.bf16.msra.mxu0 %v2956
    %3117 = vmatprep.subr.bf16.mxu0 %v2953
    %3118 = vmatpush2.bf16.msra.mxu0 %v2952
    %3119 = vmatprep.mubr.bf16.mxu0 %v2723
    %3120 = vmatmul.mubr.bf16.gmra.mxu0 %v2722
    %v3121 = vpop.f32.mrf.mxu0
    %v3122 = vadd.f32 %v130, %v3121
    %v3123 = vpop.f32.mrf.mxu0
    %v3124 = vadd.f32 %v134, %v3123
    %v3125 = vpop.f32.mrf.mxu0
    %v3126 = vpop.f32.mrf.mxu0
    %3127 = vdwg.mxu0
    %v3128 = vxor.u32 %v3081, 2147483648
    %v3129 = vmul.f32 %v3128, 1.442695
    %v3130 = vpow.pop %v3129
    %v3131 = vadd.f32 %v3130, 1.0
    %v3132 = vrcp.pop %v3131
    %v3133 = vmul.f32 1.0, %v3132
    %v3134 = vxor.u32 %v3083, 2147483648
    %v3135 = vmul.f32 %v3134, 1.442695
    %v3136 = vpow.pop %v3135
    %v3137 = vadd.f32 %v3136, 1.0
    %v3138 = vrcp.pop %v3137
    %v3139 = vmul.f32 1.0, %v3138
    %v3140 = vtanh.pop %v3122
    %v3141 = vxor.u32 %v3124, 2147483648
    %v3142 = vmul.f32 %v3141, 1.442695
    %v3143 = vpow.pop %v3142
    %v3144 = vadd.f32 %v3143, 1.0
    %v3145 = vrcp.pop %v3144
    %v3146 = vmul.f32 1.0, %v3145
    %v3147 = vld [vmem:[#allocation3] sm:$0xff]
    %v3148 = vmul.f32 %v3139, %v3147
    %v3149 = vmul.f32 %v3133, %v3140
    %v3150 = vadd.f32 %v3148, %v3149
    %v3151 = vtanh.pop %v3150
    %v3152 = vmul.f32 %v3146, %v3151
    %3153 = vst [vmem:[#allocation3] sm:$0xff] %v3150
    %v3154 = vpack.c.bf16 %v3152, %v3152
    %3155 = vst [vmem:[#allocation2 + $0x4] sm:$0xf] %v3154
    %v3156 = vstv %s2650
    %vm3157 = vcmp.eq.s32.totalorder %v48, %v3156
    %v3158 = vld [vmem:[#allocation4] sm:$0xff]
    %v3159 = vsel %vm3157, 1, 0
    %3160 = vset.pattern.permute.xlu0 0
    %3161 = vperm.xlu0 %3160, %v3159
    %v3162 = vpop.permute.xlu0 %3161
    %vm3163 = vcmp.eq.s32.totalorder %v3162, 1
    %v3164 = vsel %vm3163, %v3152, %v3158
    %3165 = vst [vmem:[#allocation4] sm:$0xff] %v3164
    %s3166 = sadd.s32 %s50, 6
    %s3167 = scalar_lea.vmem %s1, 24
    %v3168 = vld [vmem:[%s3167] sm:$0xf]
    %3169 = vst [vmem:[#allocation2] sm:$0xf] %v3168
    %v3170 = vld [vmem:[#allocation2] sm:$0xff]
    %v3171 = vld [vmem:[#allocation6] sm:$0xff]
    %v3172 = vld [vmem:[#allocation6 + $0x8] sm:$0xff]
    %v3173 = vld [vmem:[#allocation6 + $0x10] sm:$0xff]
    %v3174 = vld [vmem:[#allocation6 + $0x18] sm:$0xff]
    %v3175 = vld [vmem:[#allocation6 + $0x20] sm:$0xff]
    %v3176 = vld [vmem:[#allocation6 + $0x28] sm:$0xff]
    %v3177 = vld [vmem:[#allocation6 + $0x30] sm:$0xff]
    %v3178 = vld [vmem:[#allocation6 + $0x38] sm:$0xff]
    %v3179 = vld [vmem:[#allocation6 + $0x40] sm:$0xff]
    %v3180 = vld [vmem:[#allocation6 + $0x48] sm:$0xff]
    %v3181 = vld [vmem:[#allocation6 + $0x50] sm:$0xff]
    %v3182 = vld [vmem:[#allocation6 + $0x58] sm:$0xff]
    %v3183 = vld [vmem:[#allocation6 + $0x60] sm:$0xff]
    %v3184 = vld [vmem:[#allocation6 + $0x68] sm:$0xff]
    %v3185 = vld [vmem:[#allocation6 + $0x70] sm:$0xff]
    %v3186 = vld [vmem:[#allocation6 + $0x78] sm:$0xff]
    %v3187 = vld [vmem:[#allocation6 + $0x80] sm:$0xff]
    %v3188 = vld [vmem:[#allocation6 + $0x88] sm:$0xff]
    %v3189 = vld [vmem:[#allocation6 + $0x90] sm:$0xff]
    %v3190 = vld [vmem:[#allocation6 + $0x98] sm:$0xff]
    %v3191 = vld [vmem:[#allocation6 + $0xa0] sm:$0xff]
    %v3192 = vld [vmem:[#allocation6 + $0xa8] sm:$0xff]
    %v3193 = vld [vmem:[#allocation6 + $0xb0] sm:$0xff]
    %v3194 = vld [vmem:[#allocation6 + $0xb8] sm:$0xff]
    %v3195 = vld [vmem:[#allocation6 + $0xc0] sm:$0xff]
    %v3196 = vld [vmem:[#allocation6 + $0xc8] sm:$0xff]
    %v3197 = vld [vmem:[#allocation6 + $0xd0] sm:$0xff]
    %v3198 = vld [vmem:[#allocation6 + $0xd8] sm:$0xff]
    %v3199 = vld [vmem:[#allocation6 + $0xe0] sm:$0xff]
    %v3200 = vld [vmem:[#allocation6 + $0xe8] sm:$0xff]
    %v3201 = vld [vmem:[#allocation6 + $0xf0] sm:$0xff]
    %v3202 = vld [vmem:[#allocation6 + $0xf8] sm:$0xff]
    %v3203 = vld [vmem:[#allocation6 + $0x100] sm:$0xff]
    %v3204 = vld [vmem:[#allocation6 + $0x108] sm:$0xff]
    %v3205 = vld [vmem:[#allocation6 + $0x110] sm:$0xff]
    %v3206 = vld [vmem:[#allocation6 + $0x118] sm:$0xff]
    %v3207 = vld [vmem:[#allocation6 + $0x120] sm:$0xff]
    %v3208 = vld [vmem:[#allocation6 + $0x128] sm:$0xff]
    %v3209 = vld [vmem:[#allocation6 + $0x130] sm:$0xff]
    %v3210 = vld [vmem:[#allocation6 + $0x138] sm:$0xff]
    %v3211 = vld [vmem:[#allocation6 + $0x140] sm:$0xff]
    %v3212 = vld [vmem:[#allocation6 + $0x148] sm:$0xff]
    %v3213 = vld [vmem:[#allocation6 + $0x150] sm:$0xff]
    %v3214 = vld [vmem:[#allocation6 + $0x158] sm:$0xff]
    %v3215 = vld [vmem:[#allocation6 + $0x160] sm:$0xff]
    %v3216 = vld [vmem:[#allocation6 + $0x168] sm:$0xff]
    %v3217 = vld [vmem:[#allocation6 + $0x170] sm:$0xff]
    %v3218 = vld [vmem:[#allocation6 + $0x178] sm:$0xff]
    %v3219 = vld [vmem:[#allocation6 + $0x180] sm:$0xff]
    %v3220 = vld [vmem:[#allocation6 + $0x188] sm:$0xff]
    %v3221 = vld [vmem:[#allocation6 + $0x190] sm:$0xff]
    %v3222 = vld [vmem:[#allocation6 + $0x198] sm:$0xff]
    %v3223 = vld [vmem:[#allocation6 + $0x1a0] sm:$0xff]
    %v3224 = vld [vmem:[#allocation6 + $0x1a8] sm:$0xff]
    %v3225 = vld [vmem:[#allocation6 + $0x1b0] sm:$0xff]
    %v3226 = vld [vmem:[#allocation6 + $0x1b8] sm:$0xff]
    %v3227 = vld [vmem:[#allocation6 + $0x1c0] sm:$0xff]
    %v3228 = vld [vmem:[#allocation6 + $0x1c8] sm:$0xff]
    %v3229 = vld [vmem:[#allocation6 + $0x1d0] sm:$0xff]
    %v3230 = vld [vmem:[#allocation6 + $0x1d8] sm:$0xff]
    %v3231 = vld [vmem:[#allocation6 + $0x1e0] sm:$0xff]
    %v3232 = vld [vmem:[#allocation6 + $0x1e8] sm:$0xff]
    %v3233 = vld [vmem:[#allocation6 + $0x1f0] sm:$0xff]
    %v3234 = vld [vmem:[#allocation6 + $0x1f8] sm:$0xff]
    %v3236 = vunpack.c.l.b16 %v3170
    %v3237 = vunpack.c.h.b16 %v3170
    %v3238 = vpack.c.b16 %v3236, %v3236
    %v3239 = vpack.c.b16 %v3237, %v3237
    %v3306 = vunpack.c.l.b16 %v3171
    %v3307 = vunpack.c.h.b16 %v3171
    %v3308 = vunpack.c.l.b16 %v3172
    %v3309 = vunpack.c.h.b16 %v3172
    %v3310 = vunpack.c.l.b16 %v3173
    %v3311 = vunpack.c.h.b16 %v3173
    %v3312 = vunpack.c.l.b16 %v3174
    %v3313 = vunpack.c.h.b16 %v3174
    %v3314 = vunpack.c.l.b16 %v3175
    %v3315 = vunpack.c.h.b16 %v3175
    %v3316 = vunpack.c.l.b16 %v3176
    %v3317 = vunpack.c.h.b16 %v3176
    %v3318 = vunpack.c.l.b16 %v3177
    %v3319 = vunpack.c.h.b16 %v3177
    %v3320 = vunpack.c.l.b16 %v3178
    %v3321 = vunpack.c.h.b16 %v3178
    %v3322 = vunpack.c.l.b16 %v3179
    %v3323 = vunpack.c.h.b16 %v3179
    %v3324 = vunpack.c.l.b16 %v3180
    %v3325 = vunpack.c.h.b16 %v3180
    %v3326 = vunpack.c.l.b16 %v3181
    %v3327 = vunpack.c.h.b16 %v3181
    %v3328 = vunpack.c.l.b16 %v3182
    %v3329 = vunpack.c.h.b16 %v3182
    %v3330 = vunpack.c.l.b16 %v3183
    %v3331 = vunpack.c.h.b16 %v3183
    %v3332 = vunpack.c.l.b16 %v3184
    %v3333 = vunpack.c.h.b16 %v3184
    %v3334 = vunpack.c.l.b16 %v3185
    %v3335 = vunpack.c.h.b16 %v3185
    %v3336 = vunpack.c.l.b16 %v3186
    %v3337 = vunpack.c.h.b16 %v3186
    %v3338 = vunpack.c.l.b16 %v3187
    %v3339 = vunpack.c.h.b16 %v3187
    %v3340 = vunpack.c.l.b16 %v3188
    %v3341 = vunpack.c.h.b16 %v3188
    %v3342 = vunpack.c.l.b16 %v3189
    %v3343 = vunpack.c.h.b16 %v3189
    %v3344 = vunpack.c.l.b16 %v3190
    %v3345 = vunpack.c.h.b16 %v3190
    %v3346 = vunpack.c.l.b16 %v3191
    %v3347 = vunpack.c.h.b16 %v3191
    %v3348 = vunpack.c.l.b16 %v3192
    %v3349 = vunpack.c.h.b16 %v3192
    %v3350 = vunpack.c.l.b16 %v3193
    %v3351 = vunpack.c.h.b16 %v3193
    %v3352 = vunpack.c.l.b16 %v3194
    %v3353 = vunpack.c.h.b16 %v3194
    %v3354 = vunpack.c.l.b16 %v3195
    %v3355 = vunpack.c.h.b16 %v3195
    %v3356 = vunpack.c.l.b16 %v3196
    %v3357 = vunpack.c.h.b16 %v3196
    %v3358 = vunpack.c.l.b16 %v3197
    %v3359 = vunpack.c.h.b16 %v3197
    %v3360 = vunpack.c.l.b16 %v3198
    %v3361 = vunpack.c.h.b16 %v3198
    %v3362 = vunpack.c.l.b16 %v3199
    %v3363 = vunpack.c.h.b16 %v3199
    %v3364 = vunpack.c.l.b16 %v3200
    %v3365 = vunpack.c.h.b16 %v3200
    %v3366 = vunpack.c.l.b16 %v3201
    %v3367 = vunpack.c.h.b16 %v3201
    %v3368 = vunpack.c.l.b16 %v3202
    %v3369 = vunpack.c.h.b16 %v3202
    %v3370 = vunpack.c.l.b16 %v3203
    %v3371 = vunpack.c.h.b16 %v3203
    %v3372 = vunpack.c.l.b16 %v3204
    %v3373 = vunpack.c.h.b16 %v3204
    %v3374 = vunpack.c.l.b16 %v3205
    %v3375 = vunpack.c.h.b16 %v3205
    %v3376 = vunpack.c.l.b16 %v3206
    %v3377 = vunpack.c.h.b16 %v3206
    %v3378 = vunpack.c.l.b16 %v3207
    %v3379 = vunpack.c.h.b16 %v3207
    %v3380 = vunpack.c.l.b16 %v3208
    %v3381 = vunpack.c.h.b16 %v3208
    %v3382 = vunpack.c.l.b16 %v3209
    %v3383 = vunpack.c.h.b16 %v3209
    %v3384 = vunpack.c.l.b16 %v3210
    %v3385 = vunpack.c.h.b16 %v3210
    %v3386 = vunpack.c.l.b16 %v3211
    %v3387 = vunpack.c.h.b16 %v3211
    %v3388 = vunpack.c.l.b16 %v3212
    %v3389 = vunpack.c.h.b16 %v3212
    %v3390 = vunpack.c.l.b16 %v3213
    %v3391 = vunpack.c.h.b16 %v3213
    %v3392 = vunpack.c.l.b16 %v3214
    %v3393 = vunpack.c.h.b16 %v3214
    %v3394 = vunpack.c.l.b16 %v3215
    %v3395 = vunpack.c.h.b16 %v3215
    %v3396 = vunpack.c.l.b16 %v3216
    %v3397 = vunpack.c.h.b16 %v3216
    %v3398 = vunpack.c.l.b16 %v3217
    %v3399 = vunpack.c.h.b16 %v3217
    %v3400 = vunpack.c.l.b16 %v3218
    %v3401 = vunpack.c.h.b16 %v3218
    %v3402 = vunpack.c.l.b16 %v3219
    %v3403 = vunpack.c.h.b16 %v3219
    %v3404 = vunpack.c.l.b16 %v3220
    %v3405 = vunpack.c.h.b16 %v3220
    %v3406 = vunpack.c.l.b16 %v3221
    %v3407 = vunpack.c.h.b16 %v3221
    %v3408 = vunpack.c.l.b16 %v3222
    %v3409 = vunpack.c.h.b16 %v3222
    %v3410 = vunpack.c.l.b16 %v3223
    %v3411 = vunpack.c.h.b16 %v3223
    %v3412 = vunpack.c.l.b16 %v3224
    %v3413 = vunpack.c.h.b16 %v3224
    %v3414 = vunpack.c.l.b16 %v3225
    %v3415 = vunpack.c.h.b16 %v3225
    %v3416 = vunpack.c.l.b16 %v3226
    %v3417 = vunpack.c.h.b16 %v3226
    %v3418 = vunpack.c.l.b16 %v3227
    %v3419 = vunpack.c.h.b16 %v3227
    %v3420 = vunpack.c.l.b16 %v3228
    %v3421 = vunpack.c.h.b16 %v3228
    %v3422 = vunpack.c.l.b16 %v3229
    %v3423 = vunpack.c.h.b16 %v3229
    %v3424 = vunpack.c.l.b16 %v3230
    %v3425 = vunpack.c.h.b16 %v3230
    %v3426 = vunpack.c.l.b16 %v3231
    %v3427 = vunpack.c.h.b16 %v3231
    %v3428 = vunpack.c.l.b16 %v3232
    %v3429 = vunpack.c.h.b16 %v3232
    %v3430 = vunpack.c.l.b16 %v3233
    %v3431 = vunpack.c.h.b16 %v3233
    %v3432 = vunpack.c.l.b16 %v3234
    %v3433 = vunpack.c.h.b16 %v3234
    %v3434 = vpack.c.b16 %v3310, %v3306
    %v3435 = vpack.c.b16 %v3311, %v3307
    %v3436 = vpack.c.b16 %v3312, %v3308
    %v3437 = vpack.c.b16 %v3313, %v3309
    %v3438 = vpack.c.b16 %v3318, %v3314
    %v3439 = vpack.c.b16 %v3319, %v3315
    %v3440 = vpack.c.b16 %v3320, %v3316
    %v3441 = vpack.c.b16 %v3321, %v3317
    %v3442 = vpack.c.b16 %v3326, %v3322
    %v3443 = vpack.c.b16 %v3327, %v3323
    %v3444 = vpack.c.b16 %v3328, %v3324
    %v3445 = vpack.c.b16 %v3329, %v3325
    %v3446 = vpack.c.b16 %v3334, %v3330
    %v3447 = vpack.c.b16 %v3335, %v3331
    %v3448 = vpack.c.b16 %v3336, %v3332
    %v3449 = vpack.c.b16 %v3337, %v3333
    %v3450 = vpack.c.b16 %v3342, %v3338
    %v3451 = vpack.c.b16 %v3343, %v3339
    %v3452 = vpack.c.b16 %v3344, %v3340
    %v3453 = vpack.c.b16 %v3345, %v3341
    %v3454 = vpack.c.b16 %v3350, %v3346
    %v3455 = vpack.c.b16 %v3351, %v3347
    %v3456 = vpack.c.b16 %v3352, %v3348
    %v3457 = vpack.c.b16 %v3353, %v3349
    %v3458 = vpack.c.b16 %v3358, %v3354
    %v3459 = vpack.c.b16 %v3359, %v3355
    %v3460 = vpack.c.b16 %v3360, %v3356
    %v3461 = vpack.c.b16 %v3361, %v3357
    %v3462 = vpack.c.b16 %v3366, %v3362
    %v3463 = vpack.c.b16 %v3367, %v3363
    %v3464 = vpack.c.b16 %v3368, %v3364
    %v3465 = vpack.c.b16 %v3369, %v3365
    %v3466 = vpack.c.b16 %v3374, %v3370
    %v3467 = vpack.c.b16 %v3375, %v3371
    %v3468 = vpack.c.b16 %v3376, %v3372
    %v3469 = vpack.c.b16 %v3377, %v3373
    %v3470 = vpack.c.b16 %v3382, %v3378
    %v3471 = vpack.c.b16 %v3383, %v3379
    %v3472 = vpack.c.b16 %v3384, %v3380
    %v3473 = vpack.c.b16 %v3385, %v3381
    %v3474 = vpack.c.b16 %v3390, %v3386
    %v3475 = vpack.c.b16 %v3391, %v3387
    %v3476 = vpack.c.b16 %v3392, %v3388
    %v3477 = vpack.c.b16 %v3393, %v3389
    %v3478 = vpack.c.b16 %v3398, %v3394
    %v3479 = vpack.c.b16 %v3399, %v3395
    %v3480 = vpack.c.b16 %v3400, %v3396
    %v3481 = vpack.c.b16 %v3401, %v3397
    %v3482 = vpack.c.b16 %v3406, %v3402
    %v3483 = vpack.c.b16 %v3407, %v3403
    %v3484 = vpack.c.b16 %v3408, %v3404
    %v3485 = vpack.c.b16 %v3409, %v3405
    %v3486 = vpack.c.b16 %v3414, %v3410
    %v3487 = vpack.c.b16 %v3415, %v3411
    %v3488 = vpack.c.b16 %v3416, %v3412
    %v3489 = vpack.c.b16 %v3417, %v3413
    %v3490 = vpack.c.b16 %v3422, %v3418
    %v3491 = vpack.c.b16 %v3423, %v3419
    %v3492 = vpack.c.b16 %v3424, %v3420
    %v3493 = vpack.c.b16 %v3425, %v3421
    %v3494 = vpack.c.b16 %v3430, %v3426
    %v3495 = vpack.c.b16 %v3431, %v3427
    %v3496 = vpack.c.b16 %v3432, %v3428
    %v3497 = vpack.c.b16 %v3433, %v3429
    %3562 = vmatprep.subr.bf16.mxu0 %v3463
    %3563 = vmatpush1.bf16.msra.mxu0 %v3462
    %3564 = vmatprep.subr.bf16.mxu0 %v3459
    %3565 = vmatpush1.bf16.msra.mxu0 %v3458
    %3566 = vmatprep.subr.bf16.mxu0 %v3455
    %3567 = vmatpush1.bf16.msra.mxu0 %v3454
    %3568 = vmatprep.subr.bf16.mxu0 %v3451
    %3569 = vmatpush1.bf16.msra.mxu0 %v3450
    %3570 = vmatprep.subr.bf16.mxu0 %v3447
    %3571 = vmatpush1.bf16.msra.mxu0 %v3446
    %3572 = vmatprep.subr.bf16.mxu0 %v3443
    %3573 = vmatpush1.bf16.msra.mxu0 %v3442
    %3574 = vmatprep.subr.bf16.mxu0 %v3439
    %3575 = vmatpush1.bf16.msra.mxu0 %v3438
    %3576 = vmatprep.subr.bf16.mxu0 %v3435
    %3577 = vmatpush1.bf16.msra.mxu0 %v3434
    %3578 = vmatprep.subr.bf16.mxu0 %v3495
    %3579 = vmatpush2.bf16.msra.mxu0 %v3494
    %3580 = vmatprep.subr.bf16.mxu0 %v3491
    %3581 = vmatpush2.bf16.msra.mxu0 %v3490
    %3582 = vmatprep.subr.bf16.mxu0 %v3487
    %3583 = vmatpush2.bf16.msra.mxu0 %v3486
    %3584 = vmatprep.subr.bf16.mxu0 %v3483
    %3585 = vmatpush2.bf16.msra.mxu0 %v3482
    %3586 = vmatprep.subr.bf16.mxu0 %v3479
    %3587 = vmatpush2.bf16.msra.mxu0 %v3478
    %3588 = vmatprep.subr.bf16.mxu0 %v3475
    %3589 = vmatpush2.bf16.msra.mxu0 %v3474
    %3590 = vmatprep.subr.bf16.mxu0 %v3471
    %3591 = vmatpush2.bf16.msra.mxu0 %v3470
    %3592 = vmatprep.subr.bf16.mxu0 %v3467
    %3593 = vmatpush2.bf16.msra.mxu0 %v3466
    %3594 = vmatprep.mubr.bf16.mxu0 %v3239
    %3595 = vmatmul.mubr.bf16.gmra.mxu0 %v3238
    %v3596 = vpop.f32.mrf.mxu0
    %v3597 = vadd.f32 %v122, %v3596
    %v3598 = vpop.f32.mrf.mxu0
    %v3599 = vadd.f32 %v126, %v3598
    %v3600 = vpop.f32.mrf.mxu0
    %v3601 = vpop.f32.mrf.mxu0
    %3602 = vdwg.mxu0
    %3603 = vmatprep.subr.bf16.mxu0 %v3465
    %3604 = vmatpush1.bf16.msra.mxu0 %v3464
    %3605 = vmatprep.subr.bf16.mxu0 %v3461
    %3606 = vmatpush1.bf16.msra.mxu0 %v3460
    %3607 = vmatprep.subr.bf16.mxu0 %v3457
    %3608 = vmatpush1.bf16.msra.mxu0 %v3456
    %3609 = vmatprep.subr.bf16.mxu0 %v3453
    %3610 = vmatpush1.bf16.msra.mxu0 %v3452
    %3611 = vmatprep.subr.bf16.mxu0 %v3449
    %3612 = vmatpush1.bf16.msra.mxu0 %v3448
    %3613 = vmatprep.subr.bf16.mxu0 %v3445
    %3614 = vmatpush1.bf16.msra.mxu0 %v3444
    %3615 = vmatprep.subr.bf16.mxu0 %v3441
    %3616 = vmatpush1.bf16.msra.mxu0 %v3440
    %3617 = vmatprep.subr.bf16.mxu0 %v3437
    %3618 = vmatpush1.bf16.msra.mxu0 %v3436
    %3619 = vmatprep.subr.bf16.mxu0 %v3497
    %3620 = vmatpush2.bf16.msra.mxu0 %v3496
    %3621 = vmatprep.subr.bf16.mxu0 %v3493
    %3622 = vmatpush2.bf16.msra.mxu0 %v3492
    %3623 = vmatprep.subr.bf16.mxu0 %v3489
    %3624 = vmatpush2.bf16.msra.mxu0 %v3488
    %3625 = vmatprep.subr.bf16.mxu0 %v3485
    %3626 = vmatpush2.bf16.msra.mxu0 %v3484
    %3627 = vmatprep.subr.bf16.mxu0 %v3481
    %3628 = vmatpush2.bf16.msra.mxu0 %v3480
    %3629 = vmatprep.subr.bf16.mxu0 %v3477
    %3630 = vmatpush2.bf16.msra.mxu0 %v3476
    %3631 = vmatprep.subr.bf16.mxu0 %v3473
    %3632 = vmatpush2.bf16.msra.mxu0 %v3472
    %3633 = vmatprep.subr.bf16.mxu0 %v3469
    %3634 = vmatpush2.bf16.msra.mxu0 %v3468
    %3635 = vmatprep.mubr.bf16.mxu0 %v3239
    %3636 = vmatmul.mubr.bf16.gmra.mxu0 %v3238
    %v3637 = vpop.f32.mrf.mxu0
    %v3638 = vadd.f32 %v130, %v3637
    %v3639 = vpop.f32.mrf.mxu0
    %v3640 = vadd.f32 %v134, %v3639
    %v3641 = vpop.f32.mrf.mxu0
    %v3642 = vpop.f32.mrf.mxu0
    %3643 = vdwg.mxu0
    %v3644 = vxor.u32 %v3597, 2147483648
    %v3645 = vmul.f32 %v3644, 1.442695
    %v3646 = vpow.pop %v3645
    %v3647 = vadd.f32 %v3646, 1.0
    %v3648 = vrcp.pop %v3647
    %v3649 = vmul.f32 1.0, %v3648
    %v3650 = vxor.u32 %v3599, 2147483648
    %v3651 = vmul.f32 %v3650, 1.442695
    %v3652 = vpow.pop %v3651
    %v3653 = vadd.f32 %v3652, 1.0
    %v3654 = vrcp.pop %v3653
    %v3655 = vmul.f32 1.0, %v3654
    %v3656 = vtanh.pop %v3638
    %v3657 = vxor.u32 %v3640, 2147483648
    %v3658 = vmul.f32 %v3657, 1.442695
    %v3659 = vpow.pop %v3658
    %v3660 = vadd.f32 %v3659, 1.0
    %v3661 = vrcp.pop %v3660
    %v3662 = vmul.f32 1.0, %v3661
    %v3663 = vld [vmem:[#allocation3] sm:$0xff]
    %v3664 = vmul.f32 %v3655, %v3663
    %v3665 = vmul.f32 %v3649, %v3656
    %v3666 = vadd.f32 %v3664, %v3665
    %v3667 = vtanh.pop %v3666
    %v3668 = vmul.f32 %v3662, %v3667
    %3669 = vst [vmem:[#allocation3] sm:$0xff] %v3666
    %v3670 = vpack.c.bf16 %v3668, %v3668
    %3671 = vst [vmem:[#allocation2 + $0x4] sm:$0xf] %v3670
    %v3672 = vstv %s3166
    %vm3673 = vcmp.eq.s32.totalorder %v48, %v3672
    %v3674 = vld [vmem:[#allocation4] sm:$0xff]
    %v3675 = vsel %vm3673, 1, 0
    %3676 = vset.pattern.permute.xlu0 0
    %3677 = vperm.xlu0 %3676, %v3675
    %v3678 = vpop.permute.xlu0 %3677
    %vm3679 = vcmp.eq.s32.totalorder %v3678, 1
    %v3680 = vsel %vm3679, %v3668, %v3674
    %3681 = vst [vmem:[#allocation4] sm:$0xff] %v3680
    %s3682 = sadd.s32 %s50, 7
    %s3683 = scalar_lea.vmem %s1, 28
    %v3684 = vld [vmem:[%s3683] sm:$0xf]
    %3685 = vst [vmem:[#allocation2] sm:$0xf] %v3684
    %v3686 = vld [vmem:[#allocation2] sm:$0xff]
    %v3687 = vld [vmem:[#allocation6] sm:$0xff]
    %v3688 = vld [vmem:[#allocation6 + $0x8] sm:$0xff]
    %v3689 = vld [vmem:[#allocation6 + $0x10] sm:$0xff]
    %v3690 = vld [vmem:[#allocation6 + $0x18] sm:$0xff]
    %v3691 = vld [vmem:[#allocation6 + $0x20] sm:$0xff]
    %v3692 = vld [vmem:[#allocation6 + $0x28] sm:$0xff]
    %v3693 = vld [vmem:[#allocation6 + $0x30] sm:$0xff]
    %v3694 = vld [vmem:[#allocation6 + $0x38] sm:$0xff]
    %v3695 = vld [vmem:[#allocation6 + $0x40] sm:$0xff]
    %v3696 = vld [vmem:[#allocation6 + $0x48] sm:$0xff]
    %v3697 = vld [vmem:[#allocation6 + $0x50] sm:$0xff]
    %v3698 = vld [vmem:[#allocation6 + $0x58] sm:$0xff]
    %v3699 = vld [vmem:[#allocation6 + $0x60] sm:$0xff]
    %v3700 = vld [vmem:[#allocation6 + $0x68] sm:$0xff]
    %v3701 = vld [vmem:[#allocation6 + $0x70] sm:$0xff]
    %v3702 = vld [vmem:[#allocation6 + $0x78] sm:$0xff]
    %v3703 = vld [vmem:[#allocation6 + $0x80] sm:$0xff]
    %v3704 = vld [vmem:[#allocation6 + $0x88] sm:$0xff]
    %v3705 = vld [vmem:[#allocation6 + $0x90] sm:$0xff]
    %v3706 = vld [vmem:[#allocation6 + $0x98] sm:$0xff]
    %v3707 = vld [vmem:[#allocation6 + $0xa0] sm:$0xff]
    %v3708 = vld [vmem:[#allocation6 + $0xa8] sm:$0xff]
    %v3709 = vld [vmem:[#allocation6 + $0xb0] sm:$0xff]
    %v3710 = vld [vmem:[#allocation6 + $0xb8] sm:$0xff]
    %v3711 = vld [vmem:[#allocation6 + $0xc0] sm:$0xff]
    %v3712 = vld [vmem:[#allocation6 + $0xc8] sm:$0xff]
    %v3713 = vld [vmem:[#allocation6 + $0xd0] sm:$0xff]
    %v3714 = vld [vmem:[#allocation6 + $0xd8] sm:$0xff]
    %v3715 = vld [vmem:[#allocation6 + $0xe0] sm:$0xff]
    %v3716 = vld [vmem:[#allocation6 + $0xe8] sm:$0xff]
    %v3717 = vld [vmem:[#allocation6 + $0xf0] sm:$0xff]
    %v3718 = vld [vmem:[#allocation6 + $0xf8] sm:$0xff]
    %v3719 = vld [vmem:[#allocation6 + $0x100] sm:$0xff]
    %v3720 = vld [vmem:[#allocation6 + $0x108] sm:$0xff]
    %v3721 = vld [vmem:[#allocation6 + $0x110] sm:$0xff]
    %v3722 = vld [vmem:[#allocation6 + $0x118] sm:$0xff]
    %v3723 = vld [vmem:[#allocation6 + $0x120] sm:$0xff]
    %v3724 = vld [vmem:[#allocation6 + $0x128] sm:$0xff]
    %v3725 = vld [vmem:[#allocation6 + $0x130] sm:$0xff]
    %v3726 = vld [vmem:[#allocation6 + $0x138] sm:$0xff]
    %v3727 = vld [vmem:[#allocation6 + $0x140] sm:$0xff]
    %v3728 = vld [vmem:[#allocation6 + $0x148] sm:$0xff]
    %v3729 = vld [vmem:[#allocation6 + $0x150] sm:$0xff]
    %v3730 = vld [vmem:[#allocation6 + $0x158] sm:$0xff]
    %v3731 = vld [vmem:[#allocation6 + $0x160] sm:$0xff]
    %v3732 = vld [vmem:[#allocation6 + $0x168] sm:$0xff]
    %v3733 = vld [vmem:[#allocation6 + $0x170] sm:$0xff]
    %v3734 = vld [vmem:[#allocation6 + $0x178] sm:$0xff]
    %v3735 = vld [vmem:[#allocation6 + $0x180] sm:$0xff]
    %v3736 = vld [vmem:[#allocation6 + $0x188] sm:$0xff]
    %v3737 = vld [vmem:[#allocation6 + $0x190] sm:$0xff]
    %v3738 = vld [vmem:[#allocation6 + $0x198] sm:$0xff]
    %v3739 = vld [vmem:[#allocation6 + $0x1a0] sm:$0xff]
    %v3740 = vld [vmem:[#allocation6 + $0x1a8] sm:$0xff]
    %v3741 = vld [vmem:[#allocation6 + $0x1b0] sm:$0xff]
    %v3742 = vld [vmem:[#allocation6 + $0x1b8] sm:$0xff]
    %v3743 = vld [vmem:[#allocation6 + $0x1c0] sm:$0xff]
    %v3744 = vld [vmem:[#allocation6 + $0x1c8] sm:$0xff]
    %v3745 = vld [vmem:[#allocation6 + $0x1d0] sm:$0xff]
    %v3746 = vld [vmem:[#allocation6 + $0x1d8] sm:$0xff]
    %v3747 = vld [vmem:[#allocation6 + $0x1e0] sm:$0xff]
    %v3748 = vld [vmem:[#allocation6 + $0x1e8] sm:$0xff]
    %v3749 = vld [vmem:[#allocation6 + $0x1f0] sm:$0xff]
    %v3750 = vld [vmem:[#allocation6 + $0x1f8] sm:$0xff]
    %v3752 = vunpack.c.l.b16 %v3686
    %v3753 = vunpack.c.h.b16 %v3686
    %v3754 = vpack.c.b16 %v3752, %v3752
    %v3755 = vpack.c.b16 %v3753, %v3753
    %v3822 = vunpack.c.l.b16 %v3687
    %v3823 = vunpack.c.h.b16 %v3687
    %v3824 = vunpack.c.l.b16 %v3688
    %v3825 = vunpack.c.h.b16 %v3688
    %v3826 = vunpack.c.l.b16 %v3689
    %v3827 = vunpack.c.h.b16 %v3689
    %v3828 = vunpack.c.l.b16 %v3690
    %v3829 = vunpack.c.h.b16 %v3690
    %v3830 = vunpack.c.l.b16 %v3691
    %v3831 = vunpack.c.h.b16 %v3691
    %v3832 = vunpack.c.l.b16 %v3692
    %v3833 = vunpack.c.h.b16 %v3692
    %v3834 = vunpack.c.l.b16 %v3693
    %v3835 = vunpack.c.h.b16 %v3693
    %v3836 = vunpack.c.l.b16 %v3694
    %v3837 = vunpack.c.h.b16 %v3694
    %v3838 = vunpack.c.l.b16 %v3695
    %v3839 = vunpack.c.h.b16 %v3695
    %v3840 = vunpack.c.l.b16 %v3696
    %v3841 = vunpack.c.h.b16 %v3696
    %v3842 = vunpack.c.l.b16 %v3697
    %v3843 = vunpack.c.h.b16 %v3697
    %v3844 = vunpack.c.l.b16 %v3698
    %v3845 = vunpack.c.h.b16 %v3698
    %v3846 = vunpack.c.l.b16 %v3699
    %v3847 = vunpack.c.h.b16 %v3699
    %v3848 = vunpack.c.l.b16 %v3700
    %v3849 = vunpack.c.h.b16 %v3700
    %v3850 = vunpack.c.l.b16 %v3701
    %v3851 = vunpack.c.h.b16 %v3701
    %v3852 = vunpack.c.l.b16 %v3702
    %v3853 = vunpack.c.h.b16 %v3702
    %v3854 = vunpack.c.l.b16 %v3703
    %v3855 = vunpack.c.h.b16 %v3703
    %v3856 = vunpack.c.l.b16 %v3704
    %v3857 = vunpack.c.h.b16 %v3704
    %v3858 = vunpack.c.l.b16 %v3705
    %v3859 = vunpack.c.h.b16 %v3705
    %v3860 = vunpack.c.l.b16 %v3706
    %v3861 = vunpack.c.h.b16 %v3706
    %v3862 = vunpack.c.l.b16 %v3707
    %v3863 = vunpack.c.h.b16 %v3707
    %v3864 = vunpack.c.l.b16 %v3708
    %v3865 = vunpack.c.h.b16 %v3708
    %v3866 = vunpack.c.l.b16 %v3709
    %v3867 = vunpack.c.h.b16 %v3709
    %v3868 = vunpack.c.l.b16 %v3710
    %v3869 = vunpack.c.h.b16 %v3710
    %v3870 = vunpack.c.l.b16 %v3711
    %v3871 = vunpack.c.h.b16 %v3711
    %v3872 = vunpack.c.l.b16 %v3712
    %v3873 = vunpack.c.h.b16 %v3712
    %v3874 = vunpack.c.l.b16 %v3713
    %v3875 = vunpack.c.h.b16 %v3713
    %v3876 = vunpack.c.l.b16 %v3714
    %v3877 = vunpack.c.h.b16 %v3714
    %v3878 = vunpack.c.l.b16 %v3715
    %v3879 = vunpack.c.h.b16 %v3715
    %v3880 = vunpack.c.l.b16 %v3716
    %v3881 = vunpack.c.h.b16 %v3716
    %v3882 = vunpack.c.l.b16 %v3717
    %v3883 = vunpack.c.h.b16 %v3717
    %v3884 = vunpack.c.l.b16 %v3718
    %v3885 = vunpack.c.h.b16 %v3718
    %v3886 = vunpack.c.l.b16 %v3719
    %v3887 = vunpack.c.h.b16 %v3719
    %v3888 = vunpack.c.l.b16 %v3720
    %v3889 = vunpack.c.h.b16 %v3720
    %v3890 = vunpack.c.l.b16 %v3721
    %v3891 = vunpack.c.h.b16 %v3721
    %v3892 = vunpack.c.l.b16 %v3722
    %v3893 = vunpack.c.h.b16 %v3722
    %v3894 = vunpack.c.l.b16 %v3723
    %v3895 = vunpack.c.h.b16 %v3723
    %v3896 = vunpack.c.l.b16 %v3724
    %v3897 = vunpack.c.h.b16 %v3724
    %v3898 = vunpack.c.l.b16 %v3725
    %v3899 = vunpack.c.h.b16 %v3725
    %v3900 = vunpack.c.l.b16 %v3726
    %v3901 = vunpack.c.h.b16 %v3726
    %v3902 = vunpack.c.l.b16 %v3727
    %v3903 = vunpack.c.h.b16 %v3727
    %v3904 = vunpack.c.l.b16 %v3728
    %v3905 = vunpack.c.h.b16 %v3728
    %v3906 = vunpack.c.l.b16 %v3729
    %v3907 = vunpack.c.h.b16 %v3729
    %v3908 = vunpack.c.l.b16 %v3730
    %v3909 = vunpack.c.h.b16 %v3730
    %v3910 = vunpack.c.l.b16 %v3731
    %v3911 = vunpack.c.h.b16 %v3731
    %v3912 = vunpack.c.l.b16 %v3732
    %v3913 = vunpack.c.h.b16 %v3732
    %v3914 = vunpack.c.l.b16 %v3733
    %v3915 = vunpack.c.h.b16 %v3733
    %v3916 = vunpack.c.l.b16 %v3734
    %v3917 = vunpack.c.h.b16 %v3734
    %v3918 = vunpack.c.l.b16 %v3735
    %v3919 = vunpack.c.h.b16 %v3735
    %v3920 = vunpack.c.l.b16 %v3736
    %v3921 = vunpack.c.h.b16 %v3736
    %v3922 = vunpack.c.l.b16 %v3737
    %v3923 = vunpack.c.h.b16 %v3737
    %v3924 = vunpack.c.l.b16 %v3738
    %v3925 = vunpack.c.h.b16 %v3738
    %v3926 = vunpack.c.l.b16 %v3739
    %v3927 = vunpack.c.h.b16 %v3739
    %v3928 = vunpack.c.l.b16 %v3740
    %v3929 = vunpack.c.h.b16 %v3740
    %v3930 = vunpack.c.l.b16 %v3741
    %v3931 = vunpack.c.h.b16 %v3741
    %v3932 = vunpack.c.l.b16 %v3742
    %v3933 = vunpack.c.h.b16 %v3742
    %v3934 = vunpack.c.l.b16 %v3743
    %v3935 = vunpack.c.h.b16 %v3743
    %v3936 = vunpack.c.l.b16 %v3744
    %v3937 = vunpack.c.h.b16 %v3744
    %v3938 = vunpack.c.l.b16 %v3745
    %v3939 = vunpack.c.h.b16 %v3745
    %v3940 = vunpack.c.l.b16 %v3746
    %v3941 = vunpack.c.h.b16 %v3746
    %v3942 = vunpack.c.l.b16 %v3747
    %v3943 = vunpack.c.h.b16 %v3747
    %v3944 = vunpack.c.l.b16 %v3748
    %v3945 = vunpack.c.h.b16 %v3748
    %v3946 = vunpack.c.l.b16 %v3749
    %v3947 = vunpack.c.h.b16 %v3749
    %v3948 = vunpack.c.l.b16 %v3750
    %v3949 = vunpack.c.h.b16 %v3750
    %v3950 = vpack.c.b16 %v3826, %v3822
    %v3951 = vpack.c.b16 %v3827, %v3823
    %v3952 = vpack.c.b16 %v3828, %v3824
    %v3953 = vpack.c.b16 %v3829, %v3825
    %v3954 = vpack.c.b16 %v3834, %v3830
    %v3955 = vpack.c.b16 %v3835, %v3831
    %v3956 = vpack.c.b16 %v3836, %v3832
    %v3957 = vpack.c.b16 %v3837, %v3833
    %v3958 = vpack.c.b16 %v3842, %v3838
    %v3959 = vpack.c.b16 %v3843, %v3839
    %v3960 = vpack.c.b16 %v3844, %v3840
    %v3961 = vpack.c.b16 %v3845, %v3841
    %v3962 = vpack.c.b16 %v3850, %v3846
    %v3963 = vpack.c.b16 %v3851, %v3847
    %v3964 = vpack.c.b16 %v3852, %v3848
    %v3965 = vpack.c.b16 %v3853, %v3849
    %v3966 = vpack.c.b16 %v3858, %v3854
    %v3967 = vpack.c.b16 %v3859, %v3855
    %v3968 = vpack.c.b16 %v3860, %v3856
    %v3969 = vpack.c.b16 %v3861, %v3857
    %v3970 = vpack.c.b16 %v3866, %v3862
    %v3971 = vpack.c.b16 %v3867, %v3863
    %v3972 = vpack.c.b16 %v3868, %v3864
    %v3973 = vpack.c.b16 %v3869, %v3865
    %v3974 = vpack.c.b16 %v3874, %v3870
    %v3975 = vpack.c.b16 %v3875, %v3871
    %v3976 = vpack.c.b16 %v3876, %v3872
    %v3977 = vpack.c.b16 %v3877, %v3873
    %v3978 = vpack.c.b16 %v3882, %v3878
    %v3979 = vpack.c.b16 %v3883, %v3879
    %v3980 = vpack.c.b16 %v3884, %v3880
    %v3981 = vpack.c.b16 %v3885, %v3881
    %v3982 = vpack.c.b16 %v3890, %v3886
    %v3983 = vpack.c.b16 %v3891, %v3887
    %v3984 = vpack.c.b16 %v3892, %v3888
    %v3985 = vpack.c.b16 %v3893, %v3889
    %v3986 = vpack.c.b16 %v3898, %v3894
    %v3987 = vpack.c.b16 %v3899, %v3895
    %v3988 = vpack.c.b16 %v3900, %v3896
    %v3989 = vpack.c.b16 %v3901, %v3897
    %v3990 = vpack.c.b16 %v3906, %v3902
    %v3991 = vpack.c.b16 %v3907, %v3903
    %v3992 = vpack.c.b16 %v3908, %v3904
    %v3993 = vpack.c.b16 %v3909, %v3905
    %v3994 = vpack.c.b16 %v3914, %v3910
    %v3995 = vpack.c.b16 %v3915, %v3911
    %v3996 = vpack.c.b16 %v3916, %v3912
    %v3997 = vpack.c.b16 %v3917, %v3913
    %v3998 = vpack.c.b16 %v3922, %v3918
    %v3999 = vpack.c.b16 %v3923, %v3919
    %v4000 = vpack.c.b16 %v3924, %v3920
    %v4001 = vpack.c.b16 %v3925, %v3921
    %v4002 = vpack.c.b16 %v3930, %v3926
    %v4003 = vpack.c.b16 %v3931, %v3927
    %v4004 = vpack.c.b16 %v3932, %v3928
    %v4005 = vpack.c.b16 %v3933, %v3929
    %v4006 = vpack.c.b16 %v3938, %v3934
    %v4007 = vpack.c.b16 %v3939, %v3935
    %v4008 = vpack.c.b16 %v3940, %v3936
    %v4009 = vpack.c.b16 %v3941, %v3937
    %v4010 = vpack.c.b16 %v3946, %v3942
    %v4011 = vpack.c.b16 %v3947, %v3943
    %v4012 = vpack.c.b16 %v3948, %v3944
    %v4013 = vpack.c.b16 %v3949, %v3945
    %4078 = vmatprep.subr.bf16.mxu0 %v3979
    %4079 = vmatpush1.bf16.msra.mxu0 %v3978
    %4080 = vmatprep.subr.bf16.mxu0 %v3975
    %4081 = vmatpush1.bf16.msra.mxu0 %v3974
    %4082 = vmatprep.subr.bf16.mxu0 %v3971
    %4083 = vmatpush1.bf16.msra.mxu0 %v3970
    %4084 = vmatprep.subr.bf16.mxu0 %v3967
    %4085 = vmatpush1.bf16.msra.mxu0 %v3966
    %4086 = vmatprep.subr.bf16.mxu0 %v3963
    %4087 = vmatpush1.bf16.msra.mxu0 %v3962
    %4088 = vmatprep.subr.bf16.mxu0 %v3959
    %4089 = vmatpush1.bf16.msra.mxu0 %v3958
    %4090 = vmatprep.subr.bf16.mxu0 %v3955
    %4091 = vmatpush1.bf16.msra.mxu0 %v3954
    %4092 = vmatprep.subr.bf16.mxu0 %v3951
    %4093 = vmatpush1.bf16.msra.mxu0 %v3950
    %4094 = vmatprep.subr.bf16.mxu0 %v4011
    %4095 = vmatpush2.bf16.msra.mxu0 %v4010
    %4096 = vmatprep.subr.bf16.mxu0 %v4007
    %4097 = vmatpush2.bf16.msra.mxu0 %v4006
    %4098 = vmatprep.subr.bf16.mxu0 %v4003
    %4099 = vmatpush2.bf16.msra.mxu0 %v4002
    %4100 = vmatprep.subr.bf16.mxu0 %v3999
    %4101 = vmatpush2.bf16.msra.mxu0 %v3998
    %4102 = vmatprep.subr.bf16.mxu0 %v3995
    %4103 = vmatpush2.bf16.msra.mxu0 %v3994
    %4104 = vmatprep.subr.bf16.mxu0 %v3991
    %4105 = vmatpush2.bf16.msra.mxu0 %v3990
    %4106 = vmatprep.subr.bf16.mxu0 %v3987
    %4107 = vmatpush2.bf16.msra.mxu0 %v3986
    %4108 = vmatprep.subr.bf16.mxu0 %v3983
    %4109 = vmatpush2.bf16.msra.mxu0 %v3982
    %4110 = vmatprep.mubr.bf16.mxu0 %v3755
    %4111 = vmatmul.mubr.bf16.gmra.mxu0 %v3754
    %v4112 = vpop.f32.mrf.mxu0
    %v4113 = vadd.f32 %v122, %v4112
    %v4114 = vpop.f32.mrf.mxu0
    %v4115 = vadd.f32 %v126, %v4114
    %v4116 = vpop.f32.mrf.mxu0
    %v4117 = vpop.f32.mrf.mxu0
    %4118 = vdwg.mxu0
    %4119 = vmatprep.subr.bf16.mxu0 %v3981
    %4120 = vmatpush1.bf16.msra.mxu0 %v3980
    %4121 = vmatprep.subr.bf16.mxu0 %v3977
    %4122 = vmatpush1.bf16.msra.mxu0 %v3976
    %4123 = vmatprep.subr.bf16.mxu0 %v3973
    %4124 = vmatpush1.bf16.msra.mxu0 %v3972
    %4125 = vmatprep.subr.bf16.mxu0 %v3969
    %4126 = vmatpush1.bf16.msra.mxu0 %v3968
    %4127 = vmatprep.subr.bf16.mxu0 %v3965
    %4128 = vmatpush1.bf16.msra.mxu0 %v3964
    %4129 = vmatprep.subr.bf16.mxu0 %v3961
    %4130 = vmatpush1.bf16.msra.mxu0 %v3960
    %4131 = vmatprep.subr.bf16.mxu0 %v3957
    %4132 = vmatpush1.bf16.msra.mxu0 %v3956
    %4133 = vmatprep.subr.bf16.mxu0 %v3953
    %4134 = vmatpush1.bf16.msra.mxu0 %v3952
    %4135 = vmatprep.subr.bf16.mxu0 %v4013
    %4136 = vmatpush2.bf16.msra.mxu0 %v4012
    %4137 = vmatprep.subr.bf16.mxu0 %v4009
    %4138 = vmatpush2.bf16.msra.mxu0 %v4008
    %4139 = vmatprep.subr.bf16.mxu0 %v4005
    %4140 = vmatpush2.bf16.msra.mxu0 %v4004
    %4141 = vmatprep.subr.bf16.mxu0 %v4001
    %4142 = vmatpush2.bf16.msra.mxu0 %v4000
    %4143 = vmatprep.subr.bf16.mxu0 %v3997
    %4144 = vmatpush2.bf16.msra.mxu0 %v3996
    %4145 = vmatprep.subr.bf16.mxu0 %v3993
    %4146 = vmatpush2.bf16.msra.mxu0 %v3992
    %4147 = vmatprep.subr.bf16.mxu0 %v3989
    %4148 = vmatpush2.bf16.msra.mxu0 %v3988
    %4149 = vmatprep.subr.bf16.mxu0 %v3985
    %4150 = vmatpush2.bf16.msra.mxu0 %v3984
    %4151 = vmatprep.mubr.bf16.mxu0 %v3755
    %4152 = vmatmul.mubr.bf16.gmra.mxu0 %v3754
    %v4153 = vpop.f32.mrf.mxu0
    %v4154 = vadd.f32 %v130, %v4153
    %v4155 = vpop.f32.mrf.mxu0
    %v4156 = vadd.f32 %v134, %v4155
    %v4157 = vpop.f32.mrf.mxu0
    %v4158 = vpop.f32.mrf.mxu0
    %4159 = vdwg.mxu0
    %v4160 = vxor.u32 %v4113, 2147483648
    %v4161 = vmul.f32 %v4160, 1.442695
    %v4162 = vpow.pop %v4161
    %v4163 = vadd.f32 %v4162, 1.0
    %v4164 = vrcp.pop %v4163
    %v4165 = vmul.f32 1.0, %v4164
    %v4166 = vxor.u32 %v4115, 2147483648
    %v4167 = vmul.f32 %v4166, 1.442695
    %v4168 = vpow.pop %v4167
    %v4169 = vadd.f32 %v4168, 1.0
    %v4170 = vrcp.pop %v4169
    %v4171 = vmul.f32 1.0, %v4170
    %v4172 = vtanh.pop %v4154
    %v4173 = vxor.u32 %v4156, 2147483648
    %v4174 = vmul.f32 %v4173, 1.442695
    %v4175 = vpow.pop %v4174
    %v4176 = vadd.f32 %v4175, 1.0
    %v4177 = vrcp.pop %v4176
    %v4178 = vmul.f32 1.0, %v4177
    %v4179 = vld [vmem:[#allocation3] sm:$0xff]
    %v4180 = vmul.f32 %v4171, %v4179
    %v4181 = vmul.f32 %v4165, %v4172
    %v4182 = vadd.f32 %v4180, %v4181
    %v4183 = vtanh.pop %v4182
    %v4184 = vmul.f32 %v4178, %v4183
    %4185 = vst [vmem:[#allocation3] sm:$0xff] %v4182
    %v4186 = vpack.c.bf16 %v4184, %v4184
    %4187 = vst [vmem:[#allocation2 + $0x4] sm:$0xf] %v4186
    %v4188 = vstv %s3682
    %vm4189 = vcmp.eq.s32.totalorder %v48, %v4188
    %v4190 = vld [vmem:[#allocation4] sm:$0xff]
    %v4191 = vsel %vm4189, 1, 0
    %4192 = vset.pattern.permute.xlu0 0
    %4193 = vperm.xlu0 %4192, %v4191
    %v4194 = vpop.permute.xlu0 %4193
    %vm4195 = vcmp.eq.s32.totalorder %v4194, 1
    %v4196 = vsel %vm4195, %v4184, %v4190
    %4197 = vst [vmem:[#allocation4] sm:$0xff] %v4196
    // Predicated region
    $region34: #{tpu_custom_call.1} parent=1 // pred_check
      %p4198 = pneg %p40
    $region35: #{tpu_custom_call.1} parent=1 // pred_check_branch
      %4200 = sbr.rel (%p4198) target = $region37
    $region36: #{tpu_custom_call.1} parent=1 // pred_region
      %v4201 = vld [vmem:[#allocation4] sm:$0xff]
      %v4202 = vld [vmem:[%s4] sm:$0xff]
      %v4203 = vld [vmem:[%s4 + $0x8] sm:$0xff]
      %v4204 = vld [vmem:[%s4 + $0x10] sm:$0xff]
      %v4205 = vld [vmem:[%s4 + $0x18] sm:$0xff]
      %v4206 = vld [vmem:[%s4 + $0x20] sm:$0xff]
      %v4207 = vld [vmem:[%s4 + $0x28] sm:$0xff]
      %v4208 = vld [vmem:[%s4 + $0x30] sm:$0xff]
      %v4209 = vld [vmem:[%s4 + $0x38] sm:$0xff]
      %v4210 = vld [vmem:[%s4 + $0x40] sm:$0xff]
      %v4211 = vld [vmem:[%s4 + $0x48] sm:$0xff]
      %v4212 = vld [vmem:[%s4 + $0x50] sm:$0xff]
      %v4213 = vld [vmem:[%s4 + $0x58] sm:$0xff]
      %v4214 = vld [vmem:[%s4 + $0x60] sm:$0xff]
      %v4215 = vld [vmem:[%s4 + $0x68] sm:$0xff]
      %v4216 = vld [vmem:[%s4 + $0x70] sm:$0xff]
      %v4217 = vld [vmem:[%s4 + $0x78] sm:$0xff]
      %v4218 = vld [vmem:[#allocation5] sm:$0x1]
      %v4220 = vlaneseq
      %v4221 = vshrl.u32 %v4220, 7
      %v4222 = vsub.s32 0, %v4221
      %v4223 = vrot.slane %v4218, %v4222
      %4225 = vmatprep.subr.mxu0 0.0
      %4226 = vmatpush1.msra.mxu0 %v4217
      %4227 = vmatprep.subr.mxu0 0.0
      %4228 = vmatpush1.msra.mxu0 %v4216
      %4229 = vmatprep.subr.mxu0 0.0
      %4230 = vmatpush1.msra.mxu0 %v4215
      %4231 = vmatprep.subr.mxu0 0.0
      %4232 = vmatpush1.msra.mxu0 %v4214
      %4233 = vmatprep.subr.mxu0 0.0
      %4234 = vmatpush1.msra.mxu0 %v4213
      %4235 = vmatprep.subr.mxu0 0.0
      %4236 = vmatpush1.msra.mxu0 %v4212
      %4237 = vmatprep.subr.mxu0 0.0
      %4238 = vmatpush1.msra.mxu0 %v4211
      %4239 = vmatprep.subr.mxu0 0.0
      %4240 = vmatpush1.msra.mxu0 %v4210
      %4241 = vmatprep.subr.mxu0 0.0
      %4242 = vmatpush1.msra.mxu0 %v4209
      %4243 = vmatprep.subr.mxu0 0.0
      %4244 = vmatpush1.msra.mxu0 %v4208
      %4245 = vmatprep.subr.mxu0 0.0
      %4246 = vmatpush1.msra.mxu0 %v4207
      %4247 = vmatprep.subr.mxu0 0.0
      %4248 = vmatpush1.msra.mxu0 %v4206
      %4249 = vmatprep.subr.mxu0 0.0
      %4250 = vmatpush1.msra.mxu0 %v4205
      %4251 = vmatprep.subr.mxu0 0.0
      %4252 = vmatpush1.msra.mxu0 %v4204
      %4253 = vmatprep.subr.mxu0 0.0
      %4254 = vmatpush1.msra.mxu0 %v4203
      %4255 = vmatprep.subr.mxu0 0.0
      %4256 = vmatpush1.msra.mxu0 %v4202
      %4257 = vmatprep.subr.mxu0 0.0
      %4258 = vmatpush2.msra.mxu0 0.0
      %4259 = vmatprep.subr.mxu0 0.0
      %4260 = vmatpush2.msra.mxu0 0.0
      %4261 = vmatprep.subr.mxu0 0.0
      %4262 = vmatpush2.msra.mxu0 0.0
      %4263 = vmatprep.subr.mxu0 0.0
      %4264 = vmatpush2.msra.mxu0 0.0
      %4265 = vmatprep.subr.mxu0 0.0
      %4266 = vmatpush2.msra.mxu0 0.0
      %4267 = vmatprep.subr.mxu0 0.0
      %4268 = vmatpush2.msra.mxu0 0.0
      %4269 = vmatprep.subr.mxu0 0.0
      %4270 = vmatpush2.msra.mxu0 0.0
      %4271 = vmatprep.subr.mxu0 0.0
      %4272 = vmatpush2.msra.mxu0 0.0
      %4273 = vmatprep.subr.mxu0 0.0
      %4274 = vmatpush2.msra.mxu0 0.0
      %4275 = vmatprep.subr.mxu0 0.0
      %4276 = vmatpush2.msra.mxu0 0.0
      %4277 = vmatprep.subr.mxu0 0.0
      %4278 = vmatpush2.msra.mxu0 0.0
      %4279 = vmatprep.subr.mxu0 0.0
      %4280 = vmatpush2.msra.mxu0 0.0
      %4281 = vmatprep.subr.mxu0 0.0
      %4282 = vmatpush2.msra.mxu0 0.0
      %4283 = vmatprep.subr.mxu0 0.0
      %4284 = vmatpush2.msra.mxu0 0.0
      %4285 = vmatprep.subr.mxu0 0.0
      %4286 = vmatpush2.msra.mxu0 0.0
      %4287 = vmatprep.subr.mxu0 0.0
      %4288 = vmatpush2.msra.mxu0 0.0
      %4289 = vmatprep.mubr.f32.mxu0 0.0
      %4290 = vmatmul.mubr.f32.gmra.mxu0 %v4201
      %v4291 = vpop.f32.mrf.mxu0
      %v4292 = vadd.f32 %v4223, %v4291
      %v4293 = vpop.f32.mrf.mxu0
      %4294 = vdwg.mxu0
      %v4295 = vxor.u32 %v4292, 2147483648
      %v4296 = vmul.f32 %v4295, 1.442695
      %v4297 = vpow.pop %v4296
      %v4298 = vadd.f32 %v4297, 1.0
      %v4299 = vrcp.pop %v4298
      %v4300 = vmul.f32 1.0, %v4299
      %vm4301 = vcmask 7168
      %4302 = vst.msk [vmem:[%s6] sm:$0xff] %vm4301, %v4300
    $region37: #{tpu_custom_call.1} parent=1 // pred_fallthru
      _
    // Predicated region
    $region38: #{tpu_custom_call.1} parent=1 // pred_check
      _
    $region39: #{tpu_custom_call.1} parent=1 // pred_check_branch
      %4304 = sbr.rel (0) target = $region41
    $region40: #{tpu_custom_call.1} parent=1 // pred_region
      _
    $region41: #{tpu_custom_call.1} parent=1 // pred_fallthru
      _
    // Predicated region
    $region42: #{tpu_custom_call.1} parent=1 // pred_check
      _
    $region43: #{tpu_custom_call.1} parent=1 // pred_check_branch
      %4306 = sbr.rel (0) target = $region45
    $region44: #{tpu_custom_call.1} parent=1 // pred_region
      _
    $region45: #{tpu_custom_call.1} parent=1 // pred_fallthru
      _
    %4307 = vsyncpa [#allocation7], 1

</llo_original>
